<compile_context>
chip_gen: v7x
topology: tpu7x:2x2x1
jax: 0.10.0
libtpu: 0.0.40
codegen_flags: <defaults>
</compile_context>

<pallas_src>
import functools

import jax
import jax.numpy as jnp
from jax.experimental import pallas as pl
from jax.experimental.pallas import tpu as pltpu

# ------------------------- model hyper-parameters (small) -------------------
IN_DIM = 3
IMG = 16
PATCH = 4
NUM_PATCHS = (IMG // PATCH) ** 2        # 16 tokens
DIM = 32
NUM_BLOCKS = 2
EXPANSION = 2
DIM_FFN = DIM * EXPANSION               # 64
HALF = DIM_FFN // 2                     # 32
NUM_CLASSES = 10
EPS = 1e-5                              # PyTorch LayerNorm default eps
LANE = 128                              # lane-dense padding width
MATMUL_DTYPE = jnp.bfloat16             # MXU-native operand dtype (f32 accumulation)

# Batch tile: 8 images * 16 tokens = 128 rows/tile -> full MXU M pass, (8,128) output tile,
# and a "parallel" grid over tiles engages both TensorCores on v7x once batch grows.
TILE_B = 8

# packed-parameter slab layout (each row is one 128-lane-padded f32 vector)
ROW_PE_B = 0
ROW_NORM_G = 1
ROW_NORM_B = 2
ROW_FC_B = 3
ROW_BLOCKS = 4
ROWS_PER_BLOCK = 6                      # ln1_g, ln1_b, b_in(packed), ln2_g, ln2_b, b_out


# ------------------------------ in-kernel math -------------------------------
def _layernorm(x, g, b):
    mu = jnp.mean(x, axis=-1, keepdims=True)
    var = jnp.mean((x - mu) ** 2, axis=-1, keepdims=True)
    return (x - mu) * jax.lax.rsqrt(var + EPS) * g + b


def _gelu(x):
    # tanh-approx GELU (EUP-friendly). TODO(synk): exact-erf GELU (torch default) differs ~1e-3.
    c = 0.7978845608028654  # sqrt(2/pi)
    return 0.5 * x * (1.0 + jnp.tanh(c * (x + 0.044715 * x * x * x)))


# ------------------------------ fused Pallas kernel ---------------------------
def gmlp_fused_kernel(patches_ref, pe_w_ref, w_in_ref, w_sp_ref, b_sp_ref,
                      w_out_ref, fc_w_ref, pool_ref, slab_ref, o_ref, *, tile_b, pool):
    f32 = jnp.float32
    N = NUM_PATCHS

    def mm(a, b):
        # bf16 MXU operands, f32 accumulation.
        return jnp.dot(a.astype(MATMUL_DTYPE), b.astype(MATMUL_DTYPE),
                       preferred_element_type=f32)

    # ---- patch embedding: one (TB*N, C*p*p) @ (C*p*p, D) matmul ----
    x = mm(patches_ref[...], pe_w_ref[...]) + slab_ref[ROW_PE_B, :DIM]   # (TB*N, D)

    # ---- gMLP blocks (statically unrolled) ----
    for blk in range(NUM_BLOCKS):
        r = ROW_BLOCKS + blk * ROWS_PER_BLOCK
        ln1_g = slab_ref[r + 0, :DIM]
        ln1_b = slab_ref[r + 1, :DIM]
        b_in = slab_ref[r + 2, :DIM_FFN]     # packed [b_v | b_u]
        ln2_g = slab_ref[r + 3, :HALF]
        ln2_b = slab_ref[r + 4, :HALF]
        b_out = slab_ref[r + 5, :DIM]

        xn = _layernorm(x, ln1_g, ln1_b)                                 # (TB*N, D)
        # W_in columns packed as [W_v | W_u]: critical-path v is lane-aligned at 0.
        h = _gelu(mm(xn, w_in_ref[blk]) + b_in)                          # (TB*N, F)
        v = h[:, :HALF]                                                  # original 2nd chunk
        u = h[:, HALF:]                                                  # original 1st chunk
        vn = _layernorm(v, ln2_g, ln2_b)

        # spatial gating unit: ONE block-diagonal token-mixing matmul over the whole tile
        v_sp = mm(w_sp_ref[blk], vn) + b_sp_ref[blk]                     # (TB*N, H)

        x = x + mm(u * v_sp, w_out_ref[blk]) + b_out                     # residual

    # ---- head: LayerNorm -> global pool over tokens -> FC (128-lane padded) ----
    xn = _layernorm(x, slab_ref[ROW_NORM_G, :DIM], slab_ref[ROW_NORM_B, :DIM])
    if pool == "avg":
        # pooling-as-matmul: (TB, TB*N) @ (TB*N, D); kept f32 (tiny, better fidelity)
        pooled = jnp.dot(pool_ref[...], xn, preferred_element_type=f32)  # (TB, D)
    elif pool == "max":
        pooled = jnp.concatenate(
            [jnp.max(xn[bi * N:(bi + 1) * N, :], axis=0, keepdims=True)
             for bi in range(tile_b)], axis=0)                           # (TB, D)
    else:
        raise ValueError(f"Unknown pool way:{pool}")
    logits = mm(pooled, fc_w_ref[...]) + slab_ref[ROW_FC_B, :]
    o_ref[...] = logits                                                  # (TB, 128) exact tile


# ------------------------------ glue (pure JAX) --------------------------------
def extract_patches(x, p):
    # x: (B, C, H, W) NCHW -> (B, N, C*p*p), per-patch flattened as (C, ph, pw)
    # (matches Conv2d(k=p, stride=p) followed by flatten(2).transpose(1, 2))
    B, C, H, W = x.shape
    hp, wp = H // p, W // p
    x = x.reshape(B, C, hp, p, wp, p)
    x = x.transpose(0, 2, 4, 1, 3, 5)          # (B, hp, wp, C, p, p)
    return x.reshape(B, hp * wp, C * p * p)


def _pad_lane(v):
    v = jnp.asarray(v, jnp.float32).reshape(-1)
    return jnp.pad(v, (0, LANE - v.shape[0]))


def _pack_params(params, tile_b):
    m_tile = tile_b * NUM_PATCHS
    eye_tb = jnp.eye(tile_b, dtype=jnp.float32)

    rows = [
        _pad_lane(params["pe_b"]),
        _pad_lane(params["norm_g"]),
        _pad_lane(params["norm_b"]),
        _pad_lane(params["fc_b"]),
    ]
    w_in_list, w_sp_list, b_sp_list, w_out_list = [], [], [], []
    for blk in params["blocks"]:
        # pack W_in columns / b_in as [v-half | u-half] so in-kernel v is lane 0..HALF-1
        w_in_p = jnp.concatenate([blk["w_in"][:, HALF:], blk["w_in"][:, :HALF]], axis=1)
        b_in_p = jnp.concatenate([blk["b_in"][HALF:], blk["b_in"][:HALF]])
        rows += [
            _pad_lane(blk["ln1_g"]), _pad_lane(blk["ln1_b"]),
            _pad_lane(b_in_p),
            _pad_lane(blk["ln2_g"]), _pad_lane(blk["ln2_b"]),
            _pad_lane(blk["b_out"]),
        ]
        w_in_list.append(w_in_p)
        # block-diagonal token-mixing weight (one copy of (N,N) per image in the tile)
        w_sp_list.append(jnp.kron(eye_tb, blk["w_sp"]))                   # (TB*N, TB*N)
        # pre-broadcast spatial bias -> drops the width-1 operand + in-kernel lane broadcast
        b_sp_list.append(jnp.broadcast_to(jnp.tile(blk["b_sp"], (tile_b, 1)),
                                          (m_tile, HALF)))                # (TB*N, H)
        w_out_list.append(blk["w_out"])

    slab = jnp.stack(rows, axis=0)                                        # (16, 128) f32

    pe_w = params["pe_w"].astype(MATMUL_DTYPE)                            # (C*p*p, D)
    w_in_all = jnp.stack(w_in_list).astype(MATMUL_DTYPE)                  # (NB, D, F)
    w_sp_bd = jnp.stack(w_sp_list).astype(MATMUL_DTYPE)                   # (NB, TB*N, TB*N)
    b_sp_bd = jnp.stack(b_sp_list)                                        # (NB, TB*N, H) f32
    w_out_all = jnp.stack(w_out_list).astype(MATMUL_DTYPE)                # (NB, H, D)
    fc_w_pad = jnp.pad(params["fc_w"],
                       ((0, 0), (0, LANE - NUM_CLASSES))).astype(MATMUL_DTYPE)  # (D, 128)
    pool_mat = jnp.kron(eye_tb, jnp.ones((1, NUM_PATCHS), jnp.float32)) / NUM_PATCHS  # (TB, TB*N)

    return pe_w, w_in_all, w_sp_bd, b_sp_bd, w_out_all, fc_w_pad, pool_mat, slab


def _resident_spec(arr):
    # whole array, kept VMEM-resident across all grid steps
    zeros = (0,) * arr.ndim
    return pl.BlockSpec(arr.shape, lambda t, _z=zeros: _z)


def gmlp_forward(x, params, pool="avg", tile_b=TILE_B):
    B = x.shape[0]
    num_tiles = -(-B // tile_b)
    b_pad = num_tiles * tile_b
    m_tile = tile_b * NUM_PATCHS

    patches = extract_patches(x, PATCH).reshape(B * NUM_PATCHS, -1)       # (B*N, C*p*p)
    if b_pad != B:                                                        # pad batch to tile
        patches = jnp.pad(patches, ((0, (b_pad - B) * NUM_PATCHS), (0, 0)))
    patch_dim = patches.shape[1]

    operands = _pack_params(params, tile_b)

    in_specs = [pl.BlockSpec((m_tile, patch_dim), lambda t: (t, 0))]      # per-tile activations
    in_specs += [_resident_spec(op) for op in operands]                   # resident weights

    logits_pad = pl.pallas_call(
        functools.partial(gmlp_fused_kernel, tile_b=tile_b, pool=pool),
        out_shape=jax.ShapeDtypeStruct((b_pad, LANE), jnp.float32),
        grid=(num_tiles,),
        in_specs=in_specs,
        out_specs=pl.BlockSpec((tile_b, LANE), lambda t: (t, 0)),
        compiler_params=pltpu.CompilerParams(dimension_semantics=("parallel",)),
    )(patches, *operands)
    return logits_pad[:B, :NUM_CLASSES]


def init_params(key):
    scale = 0.02
    P = IN_DIM * PATCH * PATCH
    keys = jax.random.split(key, NUM_BLOCKS + 2)
    params = {
        "pe_w": scale * jax.random.normal(keys[0], (P, DIM), jnp.float32),
        "pe_b": jnp.zeros((DIM,), jnp.float32),
        "norm_g": jnp.ones((DIM,), jnp.float32),
        "norm_b": jnp.zeros((DIM,), jnp.float32),
        "fc_w": scale * jax.random.normal(keys[1], (DIM, NUM_CLASSES), jnp.float32),
        "fc_b": jnp.zeros((NUM_CLASSES,), jnp.float32),
        "blocks": [],
    }
    for i in range(NUM_BLOCKS):
        bk = jax.random.split(keys[2 + i], 3)
        params["blocks"].append({
            "ln1_g": jnp.ones((DIM,), jnp.float32),
            "ln1_b": jnp.zeros((DIM,), jnp.float32),
            "w_in": scale * jax.random.normal(bk[0], (DIM, DIM_FFN), jnp.float32),
            "b_in": jnp.zeros((DIM_FFN,), jnp.float32),
            "ln2_g": jnp.ones((HALF,), jnp.float32),
            "ln2_b": jnp.zeros((HALF,), jnp.float32),
            "w_sp": (scale / NUM_PATCHS) * jax.random.normal(bk[1], (NUM_PATCHS, NUM_PATCHS), jnp.float32),
            "b_sp": jnp.ones((NUM_PATCHS, 1), jnp.float32),   # gMLP paper: spatial bias init = 1
            "w_out": scale * jax.random.normal(bk[2], (HALF, DIM), jnp.float32),
            "b_out": jnp.zeros((DIM,), jnp.float32),
        })
    return params


# ------------------------------------ main -------------------------------------
if __name__ == "__main__":
    key = jax.random.PRNGKey(0)
    kx, kp = jax.random.split(key)
    x = jax.random.normal(kx, (2, IN_DIM, IMG, IMG), jnp.float32)     # NCHW, like PyTorch
    params = init_params(kp)

    fwd = jax.jit(lambda inp: gmlp_forward(inp, params, pool="avg"))
    logits = fwd(x)
    jax.block_until_ready(logits)

    assert logits.shape == (2, NUM_CLASSES), logits.shape
    assert bool(jnp.all(jnp.isfinite(logits)))
    print("KERNEL_OK")
</pallas_src>

<mosaic_0001>
module attributes {stable_mosaic.version = 11 : i64} {
  func.func @gmlp_fused_kernel(%arg0: i32, %arg1: memref<128x48xf32, #tpu.memory_space<vmem>>, %arg2: memref<48x32xbf16, #tpu.memory_space<vmem>>, %arg3: memref<2x32x64xbf16, #tpu.memory_space<vmem>>, %arg4: memref<2x128x128xbf16, #tpu.memory_space<vmem>>, %arg5: memref<2x128x32xf32, #tpu.memory_space<vmem>>, %arg6: memref<2x32x32xbf16, #tpu.memory_space<vmem>>, %arg7: memref<32x128xbf16, #tpu.memory_space<vmem>>, %arg8: memref<8x128xf32, #tpu.memory_space<vmem>>, %arg9: memref<16x128xf32, #tpu.memory_space<vmem>>, %arg10: memref<8x128xf32, #tpu.memory_space<vmem>>) attributes {dimension_semantics = [#tpu.dimension_semantics<parallel>], iteration_bounds = array<i64: 1>, scalar_prefetch = 0 : i64, scratch_operands = 0 : i64, tpu.core_type = #tpu.core_type<tc>, window_params = [{transform_indices = @transform_0, window_bounds = array<i64: 128, 48>}, {pipeline_mode = #tpu.pipeline_mode<synchronous>, transform_indices = @transform_1, window_bounds = array<i64: 48, 32>}, {pipeline_mode = #tpu.pipeline_mode<synchronous>, transform_indices = @transform_2, window_bounds = array<i64: 2, 32, 64>}, {pipeline_mode = #tpu.pipeline_mode<synchronous>, transform_indices = @transform_3, window_bounds = array<i64: 2, 128, 128>}, {pipeline_mode = #tpu.pipeline_mode<synchronous>, transform_indices = @transform_4, window_bounds = array<i64: 2, 128, 32>}, {pipeline_mode = #tpu.pipeline_mode<synchronous>, transform_indices = @transform_5, window_bounds = array<i64: 2, 32, 32>}, {pipeline_mode = #tpu.pipeline_mode<synchronous>, transform_indices = @transform_6, window_bounds = array<i64: 32, 128>}, {pipeline_mode = #tpu.pipeline_mode<synchronous>, transform_indices = @transform_7, window_bounds = array<i64: 8, 128>}, {pipeline_mode = #tpu.pipeline_mode<synchronous>, transform_indices = @transform_8, window_bounds = array<i64: 16, 128>}, {transform_indices = @transform_9, window_bounds = array<i64: 8, 128>}]} {
    %c0 = arith.constant 0 : index
    %c0_0 = arith.constant 0 : index
    %0 = vector.load %arg1[%c0, %c0_0] : memref<128x48xf32, #tpu.memory_space<vmem>>, vector<128x48xf32>
    %c0_1 = arith.constant 0 : index
    %c0_2 = arith.constant 0 : index
    %1 = vector.load %arg2[%c0_1, %c0_2] : memref<48x32xbf16, #tpu.memory_space<vmem>>, vector<48x32xbf16>
    %2 = arith.truncf %0 : vector<128x48xf32> to vector<128x48xbf16>
    %cst = arith.constant dense<0.000000e+00> : vector<128x32xf32>
    %3 = tpu.matmul %2, %1, %cst {dimension_numbers = #tpu.dot_dimension_numbers<[1], [0], [0], [1], [0, 0, 1, 1], [], []>} : vector<128x48xbf16>, vector<48x32xbf16>, vector<128x32xf32> -> vector<128x32xf32>
    %c0_3 = arith.constant 0 : index
    %c0_4 = arith.constant 0 : index
    %4 = vector.load %arg9[%c0_3, %c0_4] : memref<16x128xf32, #tpu.memory_space<vmem>>, vector<1x32xf32>
    %5 = vector.shape_cast %4 : vector<1x32xf32> to vector<32xf32>
    %6 = vector.shape_cast %5 : vector<32xf32> to vector<1x32xf32>
    %7 = vector.broadcast %6 : vector<1x32xf32> to vector<128x32xf32>
    %8 = arith.addf %3, %7 : vector<128x32xf32>
    %c4 = arith.constant 4 : index
    %c0_5 = arith.constant 0 : index
    %9 = vector.load %arg9[%c4, %c0_5] : memref<16x128xf32, #tpu.memory_space<vmem>>, vector<1x32xf32>
    %10 = vector.shape_cast %9 : vector<1x32xf32> to vector<32xf32>
    %c5 = arith.constant 5 : index
    %c0_6 = arith.constant 0 : index
    %11 = vector.load %arg9[%c5, %c0_6] : memref<16x128xf32, #tpu.memory_space<vmem>>, vector<1x32xf32>
    %12 = vector.shape_cast %11 : vector<1x32xf32> to vector<32xf32>
    %c6 = arith.constant 6 : index
    %c0_7 = arith.constant 0 : index
    %13 = vector.load %arg9[%c6, %c0_7] : memref<16x128xf32, #tpu.memory_space<vmem>>, vector<1x64xf32>
    %14 = vector.shape_cast %13 : vector<1x64xf32> to vector<64xf32>
    %c7 = arith.constant 7 : index
    %c0_8 = arith.constant 0 : index
    %15 = vector.load %arg9[%c7, %c0_8] : memref<16x128xf32, #tpu.memory_space<vmem>>, vector<1x32xf32>
    %16 = vector.shape_cast %15 : vector<1x32xf32> to vector<32xf32>
    %c8 = arith.constant 8 : index
    %c0_9 = arith.constant 0 : index
    %17 = vector.load %arg9[%c8, %c0_9] : memref<16x128xf32, #tpu.memory_space<vmem>>, vector<1x32xf32>
    %18 = vector.shape_cast %17 : vector<1x32xf32> to vector<32xf32>
    %c9 = arith.constant 9 : index
    %c0_10 = arith.constant 0 : index
    %19 = vector.load %arg9[%c9, %c0_10] : memref<16x128xf32, #tpu.memory_space<vmem>>, vector<1x32xf32>
    %20 = vector.shape_cast %19 : vector<1x32xf32> to vector<32xf32>
    %cst_11 = arith.constant dense<0.000000e+00> : vector<128xf32>
    %21 = vector.multi_reduction <add>, %8, %cst_11 [1] : vector<128x32xf32> to vector<128xf32>
    %22 = vector.shape_cast %21 : vector<128xf32> to vector<128x1xf32>
    %cst_12 = arith.constant 3.200000e+01 : f32
    %23 = vector.broadcast %cst_12 : f32 to vector<128x1xf32>
    %24 = arith.divf %22, %23 : vector<128x1xf32>
    %25 = vector.broadcast %24 : vector<128x1xf32> to vector<128x32xf32>
    %26 = arith.subf %8, %25 : vector<128x32xf32>
    %27 = arith.mulf %26, %26 : vector<128x32xf32>
    %cst_13 = arith.constant dense<0.000000e+00> : vector<128xf32>
    %28 = vector.multi_reduction <add>, %27, %cst_13 [1] : vector<128x32xf32> to vector<128xf32>
    %29 = vector.shape_cast %28 : vector<128xf32> to vector<128x1xf32>
    %cst_14 = arith.constant 3.200000e+01 : f32
    %30 = vector.broadcast %cst_14 : f32 to vector<128x1xf32>
    %31 = arith.divf %29, %30 : vector<128x1xf32>
    %32 = vector.broadcast %24 : vector<128x1xf32> to vector<128x32xf32>
    %33 = arith.subf %8, %32 : vector<128x32xf32>
    %cst_15 = arith.constant 9.99999974E-6 : f32
    %34 = vector.broadcast %cst_15 : f32 to vector<128x1xf32>
    %35 = arith.addf %31, %34 : vector<128x1xf32>
    %36 = math.rsqrt %35 : vector<128x1xf32>
    %37 = vector.broadcast %36 : vector<128x1xf32> to vector<128x32xf32>
    %38 = arith.mulf %33, %37 : vector<128x32xf32>
    %39 = vector.shape_cast %10 : vector<32xf32> to vector<1x32xf32>
    %40 = vector.broadcast %39 : vector<1x32xf32> to vector<128x32xf32>
    %41 = arith.mulf %38, %40 : vector<128x32xf32>
    %42 = vector.shape_cast %12 : vector<32xf32> to vector<1x32xf32>
    %43 = vector.broadcast %42 : vector<1x32xf32> to vector<128x32xf32>
    %44 = arith.addf %41, %43 : vector<128x32xf32>
    %c0_16 = arith.constant 0 : index
    %c0_17 = arith.constant 0 : index
    %c0_18 = arith.constant 0 : index
    %45 = vector.load %arg3[%c0_16, %c0_17, %c0_18] : memref<2x32x64xbf16, #tpu.memory_space<vmem>>, vector<1x32x64xbf16>
    %46 = vector.shape_cast %45 : vector<1x32x64xbf16> to vector<32x64xbf16>
    %47 = arith.truncf %44 : vector<128x32xf32> to vector<128x32xbf16>
    %cst_19 = arith.constant dense<0.000000e+00> : vector<128x64xf32>
    %48 = tpu.matmul %47, %46, %cst_19 {dimension_numbers = #tpu.dot_dimension_numbers<[1], [0], [0], [1], [0, 0, 1, 1], [], []>} : vector<128x32xbf16>, vector<32x64xbf16>, vector<128x64xf32> -> vector<128x64xf32>
    %49 = vector.shape_cast %14 : vector<64xf32> to vector<1x64xf32>
    %50 = vector.broadcast %49 : vector<1x64xf32> to vector<128x64xf32>
    %51 = arith.addf %48, %50 : vector<128x64xf32>
    %cst_20 = arith.constant 5.000000e-01 : f32
    %52 = vector.broadcast %cst_20 : f32 to vector<128x64xf32>
    %53 = arith.mulf %52, %51 : vector<128x64xf32>
    %cst_21 = arith.constant 4.471500e-02 : f32
    %54 = vector.broadcast %cst_21 : f32 to vector<128x64xf32>
    %55 = arith.mulf %54, %51 : vector<128x64xf32>
    %56 = arith.mulf %55, %51 : vector<128x64xf32>
    %57 = arith.mulf %56, %51 : vector<128x64xf32>
    %58 = arith.addf %51, %57 : vector<128x64xf32>
    %cst_22 = arith.constant 0.797884583 : f32
    %59 = vector.broadcast %cst_22 : f32 to vector<128x64xf32>
    %60 = arith.mulf %59, %58 : vector<128x64xf32>
    %61 = math.tanh %60 : vector<128x64xf32>
    %cst_23 = arith.constant 1.000000e+00 : f32
    %62 = vector.broadcast %cst_23 : f32 to vector<128x64xf32>
    %63 = arith.addf %62, %61 : vector<128x64xf32>
    %64 = arith.mulf %53, %63 : vector<128x64xf32>
    %65 = vector.extract_strided_slice %64 {offsets = [0, 0], sizes = [128, 32], strides = [1, 1]} : vector<128x64xf32> to vector<128x32xf32>
    %66 = vector.extract_strided_slice %64 {offsets = [0, 32], sizes = [128, 32], strides = [1, 1]} : vector<128x64xf32> to vector<128x32xf32>
    %cst_24 = arith.constant dense<0.000000e+00> : vector<128xf32>
    %67 = vector.multi_reduction <add>, %65, %cst_24 [1] : vector<128x32xf32> to vector<128xf32>
    %68 = vector.shape_cast %67 : vector<128xf32> to vector<128x1xf32>
    %cst_25 = arith.constant 3.200000e+01 : f32
    %69 = vector.broadcast %cst_25 : f32 to vector<128x1xf32>
    %70 = arith.divf %68, %69 : vector<128x1xf32>
    %71 = vector.broadcast %70 : vector<128x1xf32> to vector<128x32xf32>
    %72 = arith.subf %65, %71 : vector<128x32xf32>
    %73 = arith.mulf %72, %72 : vector<128x32xf32>
    %cst_26 = arith.constant dense<0.000000e+00> : vector<128xf32>
    %74 = vector.multi_reduction <add>, %73, %cst_26 [1] : vector<128x32xf32> to vector<128xf32>
    %75 = vector.shape_cast %74 : vector<128xf32> to vector<128x1xf32>
    %cst_27 = arith.constant 3.200000e+01 : f32
    %76 = vector.broadcast %cst_27 : f32 to vector<128x1xf32>
    %77 = arith.divf %75, %76 : vector<128x1xf32>
    %78 = vector.broadcast %70 : vector<128x1xf32> to vector<128x32xf32>
    %79 = arith.subf %65, %78 : vector<128x32xf32>
    %cst_28 = arith.constant 9.99999974E-6 : f32
    %80 = vector.broadcast %cst_28 : f32 to vector<128x1xf32>
    %81 = arith.addf %77, %80 : vector<128x1xf32>
    %82 = math.rsqrt %81 : vector<128x1xf32>
    %83 = vector.broadcast %82 : vector<128x1xf32> to vector<128x32xf32>
    %84 = arith.mulf %79, %83 : vector<128x32xf32>
    %85 = vector.shape_cast %16 : vector<32xf32> to vector<1x32xf32>
    %86 = vector.broadcast %85 : vector<1x32xf32> to vector<128x32xf32>
    %87 = arith.mulf %84, %86 : vector<128x32xf32>
    %88 = vector.shape_cast %18 : vector<32xf32> to vector<1x32xf32>
    %89 = vector.broadcast %88 : vector<1x32xf32> to vector<128x32xf32>
    %90 = arith.addf %87, %89 : vector<128x32xf32>
    %c0_29 = arith.constant 0 : index
    %c0_30 = arith.constant 0 : index
    %c0_31 = arith.constant 0 : index
    %91 = vector.load %arg4[%c0_29, %c0_30, %c0_31] : memref<2x128x128xbf16, #tpu.memory_space<vmem>>, vector<1x128x128xbf16>
    %92 = vector.shape_cast %91 : vector<1x128x128xbf16> to vector<128x128xbf16>
    %93 = arith.truncf %90 : vector<128x32xf32> to vector<128x32xbf16>
    %cst_32 = arith.constant dense<0.000000e+00> : vector<128x32xf32>
    %94 = tpu.matmul %92, %93, %cst_32 {dimension_numbers = #tpu.dot_dimension_numbers<[1], [0], [0], [1], [0, 0, 1, 1], [], []>} : vector<128x128xbf16>, vector<128x32xbf16>, vector<128x32xf32> -> vector<128x32xf32>
    %c0_33 = arith.constant 0 : index
    %c0_34 = arith.constant 0 : index
    %c0_35 = arith.constant 0 : index
    %95 = vector.load %arg5[%c0_33, %c0_34, %c0_35] : memref<2x128x32xf32, #tpu.memory_space<vmem>>, vector<1x128x32xf32>
    %96 = vector.shape_cast %95 : vector<1x128x32xf32> to vector<128x32xf32>
    %97 = arith.addf %94, %96 : vector<128x32xf32>
    %98 = arith.mulf %66, %97 : vector<128x32xf32>
    %c0_36 = arith.constant 0 : index
    %c0_37 = arith.constant 0 : index
    %c0_38 = arith.constant 0 : index
    %99 = vector.load %arg6[%c0_36, %c0_37, %c0_38] : memref<2x32x32xbf16, #tpu.memory_space<vmem>>, vector<1x32x32xbf16>
    %100 = vector.shape_cast %99 : vector<1x32x32xbf16> to vector<32x32xbf16>
    %101 = arith.truncf %98 : vector<128x32xf32> to vector<128x32xbf16>
    %cst_39 = arith.constant dense<0.000000e+00> : vector<128x32xf32>
    %102 = tpu.matmul %101, %100, %cst_39 {dimension_numbers = #tpu.dot_dimension_numbers<[1], [0], [0], [1], [0, 0, 1, 1], [], []>} : vector<128x32xbf16>, vector<32x32xbf16>, vector<128x32xf32> -> vector<128x32xf32>
    %103 = arith.addf %8, %102 : vector<128x32xf32>
    %104 = vector.shape_cast %20 : vector<32xf32> to vector<1x32xf32>
    %105 = vector.broadcast %104 : vector<1x32xf32> to vector<128x32xf32>
    %106 = arith.addf %103, %105 : vector<128x32xf32>
    %c10 = arith.constant 10 : index
    %c0_40 = arith.constant 0 : index
    %107 = vector.load %arg9[%c10, %c0_40] : memref<16x128xf32, #tpu.memory_space<vmem>>, vector<1x32xf32>
    %108 = vector.shape_cast %107 : vector<1x32xf32> to vector<32xf32>
    %c11 = arith.constant 11 : index
    %c0_41 = arith.constant 0 : index
    %109 = vector.load %arg9[%c11, %c0_41] : memref<16x128xf32, #tpu.memory_space<vmem>>, vector<1x32xf32>
    %110 = vector.shape_cast %109 : vector<1x32xf32> to vector<32xf32>
    %c12 = arith.constant 12 : index
    %c0_42 = arith.constant 0 : index
    %111 = vector.load %arg9[%c12, %c0_42] : memref<16x128xf32, #tpu.memory_space<vmem>>, vector<1x64xf32>
    %112 = vector.shape_cast %111 : vector<1x64xf32> to vector<64xf32>
    %c13 = arith.constant 13 : index
    %c0_43 = arith.constant 0 : index
    %113 = vector.load %arg9[%c13, %c0_43] : memref<16x128xf32, #tpu.memory_space<vmem>>, vector<1x32xf32>
    %114 = vector.shape_cast %113 : vector<1x32xf32> to vector<32xf32>
    %c14 = arith.constant 14 : index
    %c0_44 = arith.constant 0 : index
    %115 = vector.load %arg9[%c14, %c0_44] : memref<16x128xf32, #tpu.memory_space<vmem>>, vector<1x32xf32>
    %116 = vector.shape_cast %115 : vector<1x32xf32> to vector<32xf32>
    %c15 = arith.constant 15 : index
    %c0_45 = arith.constant 0 : index
    %117 = vector.load %arg9[%c15, %c0_45] : memref<16x128xf32, #tpu.memory_space<vmem>>, vector<1x32xf32>
    %118 = vector.shape_cast %117 : vector<1x32xf32> to vector<32xf32>
    %cst_46 = arith.constant dense<0.000000e+00> : vector<128xf32>
    %119 = vector.multi_reduction <add>, %106, %cst_46 [1] : vector<128x32xf32> to vector<128xf32>
    %120 = vector.shape_cast %119 : vector<128xf32> to vector<128x1xf32>
    %cst_47 = arith.constant 3.200000e+01 : f32
    %121 = vector.broadcast %cst_47 : f32 to vector<128x1xf32>
    %122 = arith.divf %120, %121 : vector<128x1xf32>
    %123 = vector.broadcast %122 : vector<128x1xf32> to vector<128x32xf32>
    %124 = arith.subf %106, %123 : vector<128x32xf32>
    %125 = arith.mulf %124, %124 : vector<128x32xf32>
    %cst_48 = arith.constant dense<0.000000e+00> : vector<128xf32>
    %126 = vector.multi_reduction <add>, %125, %cst_48 [1] : vector<128x32xf32> to vector<128xf32>
    %127 = vector.shape_cast %126 : vector<128xf32> to vector<128x1xf32>
    %cst_49 = arith.constant 3.200000e+01 : f32
    %128 = vector.broadcast %cst_49 : f32 to vector<128x1xf32>
    %129 = arith.divf %127, %128 : vector<128x1xf32>
    %130 = vector.broadcast %122 : vector<128x1xf32> to vector<128x32xf32>
    %131 = arith.subf %106, %130 : vector<128x32xf32>
    %cst_50 = arith.constant 9.99999974E-6 : f32
    %132 = vector.broadcast %cst_50 : f32 to vector<128x1xf32>
    %133 = arith.addf %129, %132 : vector<128x1xf32>
    %134 = math.rsqrt %133 : vector<128x1xf32>
    %135 = vector.broadcast %134 : vector<128x1xf32> to vector<128x32xf32>
    %136 = arith.mulf %131, %135 : vector<128x32xf32>
    %137 = vector.shape_cast %108 : vector<32xf32> to vector<1x32xf32>
    %138 = vector.broadcast %137 : vector<1x32xf32> to vector<128x32xf32>
    %139 = arith.mulf %136, %138 : vector<128x32xf32>
    %140 = vector.shape_cast %110 : vector<32xf32> to vector<1x32xf32>
    %141 = vector.broadcast %140 : vector<1x32xf32> to vector<128x32xf32>
    %142 = arith.addf %139, %141 : vector<128x32xf32>
    %c1 = arith.constant 1 : index
    %c0_51 = arith.constant 0 : index
    %c0_52 = arith.constant 0 : index
    %143 = vector.load %arg3[%c1, %c0_51, %c0_52] : memref<2x32x64xbf16, #tpu.memory_space<vmem>>, vector<1x32x64xbf16>
    %144 = vector.shape_cast %143 : vector<1x32x64xbf16> to vector<32x64xbf16>
    %145 = arith.truncf %142 : vector<128x32xf32> to vector<128x32xbf16>
    %cst_53 = arith.constant dense<0.000000e+00> : vector<128x64xf32>
    %146 = tpu.matmul %145, %144, %cst_53 {dimension_numbers = #tpu.dot_dimension_numbers<[1], [0], [0], [1], [0, 0, 1, 1], [], []>} : vector<128x32xbf16>, vector<32x64xbf16>, vector<128x64xf32> -> vector<128x64xf32>
    %147 = vector.shape_cast %112 : vector<64xf32> to vector<1x64xf32>
    %148 = vector.broadcast %147 : vector<1x64xf32> to vector<128x64xf32>
    %149 = arith.addf %146, %148 : vector<128x64xf32>
    %cst_54 = arith.constant 5.000000e-01 : f32
    %150 = vector.broadcast %cst_54 : f32 to vector<128x64xf32>
    %151 = arith.mulf %150, %149 : vector<128x64xf32>
    %cst_55 = arith.constant 4.471500e-02 : f32
    %152 = vector.broadcast %cst_55 : f32 to vector<128x64xf32>
    %153 = arith.mulf %152, %149 : vector<128x64xf32>
    %154 = arith.mulf %153, %149 : vector<128x64xf32>
    %155 = arith.mulf %154, %149 : vector<128x64xf32>
    %156 = arith.addf %149, %155 : vector<128x64xf32>
    %cst_56 = arith.constant 0.797884583 : f32
    %157 = vector.broadcast %cst_56 : f32 to vector<128x64xf32>
    %158 = arith.mulf %157, %156 : vector<128x64xf32>
    %159 = math.tanh %158 : vector<128x64xf32>
    %cst_57 = arith.constant 1.000000e+00 : f32
    %160 = vector.broadcast %cst_57 : f32 to vector<128x64xf32>
    %161 = arith.addf %160, %159 : vector<128x64xf32>
    %162 = arith.mulf %151, %161 : vector<128x64xf32>
    %163 = vector.extract_strided_slice %162 {offsets = [0, 0], sizes = [128, 32], strides = [1, 1]} : vector<128x64xf32> to vector<128x32xf32>
    %164 = vector.extract_strided_slice %162 {offsets = [0, 32], sizes = [128, 32], strides = [1, 1]} : vector<128x64xf32> to vector<128x32xf32>
    %cst_58 = arith.constant dense<0.000000e+00> : vector<128xf32>
    %165 = vector.multi_reduction <add>, %163, %cst_58 [1] : vector<128x32xf32> to vector<128xf32>
    %166 = vector.shape_cast %165 : vector<128xf32> to vector<128x1xf32>
    %cst_59 = arith.constant 3.200000e+01 : f32
    %167 = vector.broadcast %cst_59 : f32 to vector<128x1xf32>
    %168 = arith.divf %166, %167 : vector<128x1xf32>
    %169 = vector.broadcast %168 : vector<128x1xf32> to vector<128x32xf32>
    %170 = arith.subf %163, %169 : vector<128x32xf32>
    %171 = arith.mulf %170, %170 : vector<128x32xf32>
    %cst_60 = arith.constant dense<0.000000e+00> : vector<128xf32>
    %172 = vector.multi_reduction <add>, %171, %cst_60 [1] : vector<128x32xf32> to vector<128xf32>
    %173 = vector.shape_cast %172 : vector<128xf32> to vector<128x1xf32>
    %cst_61 = arith.constant 3.200000e+01 : f32
    %174 = vector.broadcast %cst_61 : f32 to vector<128x1xf32>
    %175 = arith.divf %173, %174 : vector<128x1xf32>
    %176 = vector.broadcast %168 : vector<128x1xf32> to vector<128x32xf32>
    %177 = arith.subf %163, %176 : vector<128x32xf32>
    %cst_62 = arith.constant 9.99999974E-6 : f32
    %178 = vector.broadcast %cst_62 : f32 to vector<128x1xf32>
    %179 = arith.addf %175, %178 : vector<128x1xf32>
    %180 = math.rsqrt %179 : vector<128x1xf32>
    %181 = vector.broadcast %180 : vector<128x1xf32> to vector<128x32xf32>
    %182 = arith.mulf %177, %181 : vector<128x32xf32>
    %183 = vector.shape_cast %114 : vector<32xf32> to vector<1x32xf32>
    %184 = vector.broadcast %183 : vector<1x32xf32> to vector<128x32xf32>
    %185 = arith.mulf %182, %184 : vector<128x32xf32>
    %186 = vector.shape_cast %116 : vector<32xf32> to vector<1x32xf32>
    %187 = vector.broadcast %186 : vector<1x32xf32> to vector<128x32xf32>
    %188 = arith.addf %185, %187 : vector<128x32xf32>
    %c1_63 = arith.constant 1 : index
    %c0_64 = arith.constant 0 : index
    %c0_65 = arith.constant 0 : index
    %189 = vector.load %arg4[%c1_63, %c0_64, %c0_65] : memref<2x128x128xbf16, #tpu.memory_space<vmem>>, vector<1x128x128xbf16>
    %190 = vector.shape_cast %189 : vector<1x128x128xbf16> to vector<128x128xbf16>
    %191 = arith.truncf %188 : vector<128x32xf32> to vector<128x32xbf16>
    %cst_66 = arith.constant dense<0.000000e+00> : vector<128x32xf32>
    %192 = tpu.matmul %190, %191, %cst_66 {dimension_numbers = #tpu.dot_dimension_numbers<[1], [0], [0], [1], [0, 0, 1, 1], [], []>} : vector<128x128xbf16>, vector<128x32xbf16>, vector<128x32xf32> -> vector<128x32xf32>
    %c1_67 = arith.constant 1 : index
    %c0_68 = arith.constant 0 : index
    %c0_69 = arith.constant 0 : index
    %193 = vector.load %arg5[%c1_67, %c0_68, %c0_69] : memref<2x128x32xf32, #tpu.memory_space<vmem>>, vector<1x128x32xf32>
    %194 = vector.shape_cast %193 : vector<1x128x32xf32> to vector<128x32xf32>
    %195 = arith.addf %192, %194 : vector<128x32xf32>
    %196 = arith.mulf %164, %195 : vector<128x32xf32>
    %c1_70 = arith.constant 1 : index
    %c0_71 = arith.constant 0 : index
    %c0_72 = arith.constant 0 : index
    %197 = vector.load %arg6[%c1_70, %c0_71, %c0_72] : memref<2x32x32xbf16, #tpu.memory_space<vmem>>, vector<1x32x32xbf16>
    %198 = vector.shape_cast %197 : vector<1x32x32xbf16> to vector<32x32xbf16>
    %199 = arith.truncf %196 : vector<128x32xf32> to vector<128x32xbf16>
    %cst_73 = arith.constant dense<0.000000e+00> : vector<128x32xf32>
    %200 = tpu.matmul %199, %198, %cst_73 {dimension_numbers = #tpu.dot_dimension_numbers<[1], [0], [0], [1], [0, 0, 1, 1], [], []>} : vector<128x32xbf16>, vector<32x32xbf16>, vector<128x32xf32> -> vector<128x32xf32>
    %201 = arith.addf %106, %200 : vector<128x32xf32>
    %202 = vector.shape_cast %118 : vector<32xf32> to vector<1x32xf32>
    %203 = vector.broadcast %202 : vector<1x32xf32> to vector<128x32xf32>
    %204 = arith.addf %201, %203 : vector<128x32xf32>
    %c1_74 = arith.constant 1 : index
    %c0_75 = arith.constant 0 : index
    %205 = vector.load %arg9[%c1_74, %c0_75] : memref<16x128xf32, #tpu.memory_space<vmem>>, vector<1x32xf32>
    %206 = vector.shape_cast %205 : vector<1x32xf32> to vector<32xf32>
    %c2 = arith.constant 2 : index
    %c0_76 = arith.constant 0 : index
    %207 = vector.load %arg9[%c2, %c0_76] : memref<16x128xf32, #tpu.memory_space<vmem>>, vector<1x32xf32>
    %208 = vector.shape_cast %207 : vector<1x32xf32> to vector<32xf32>
    %cst_77 = arith.constant dense<0.000000e+00> : vector<128xf32>
    %209 = vector.multi_reduction <add>, %204, %cst_77 [1] : vector<128x32xf32> to vector<128xf32>
    %210 = vector.shape_cast %209 : vector<128xf32> to vector<128x1xf32>
    %cst_78 = arith.constant 3.200000e+01 : f32
    %211 = vector.broadcast %cst_78 : f32 to vector<128x1xf32>
    %212 = arith.divf %210, %211 : vector<128x1xf32>
    %213 = vector.broadcast %212 : vector<128x1xf32> to vector<128x32xf32>
    %214 = arith.subf %204, %213 : vector<128x32xf32>
    %215 = arith.mulf %214, %214 : vector<128x32xf32>
    %cst_79 = arith.constant dense<0.000000e+00> : vector<128xf32>
    %216 = vector.multi_reduction <add>, %215, %cst_79 [1] : vector<128x32xf32> to vector<128xf32>
    %217 = vector.shape_cast %216 : vector<128xf32> to vector<128x1xf32>
    %cst_80 = arith.constant 3.200000e+01 : f32
    %218 = vector.broadcast %cst_80 : f32 to vector<128x1xf32>
    %219 = arith.divf %217, %218 : vector<128x1xf32>
    %220 = vector.broadcast %212 : vector<128x1xf32> to vector<128x32xf32>
    %221 = arith.subf %204, %220 : vector<128x32xf32>
    %cst_81 = arith.constant 9.99999974E-6 : f32
    %222 = vector.broadcast %cst_81 : f32 to vector<128x1xf32>
    %223 = arith.addf %219, %222 : vector<128x1xf32>
    %224 = math.rsqrt %223 : vector<128x1xf32>
    %225 = vector.broadcast %224 : vector<128x1xf32> to vector<128x32xf32>
    %226 = arith.mulf %221, %225 : vector<128x32xf32>
    %227 = vector.shape_cast %206 : vector<32xf32> to vector<1x32xf32>
    %228 = vector.broadcast %227 : vector<1x32xf32> to vector<128x32xf32>
    %229 = arith.mulf %226, %228 : vector<128x32xf32>
    %230 = vector.shape_cast %208 : vector<32xf32> to vector<1x32xf32>
    %231 = vector.broadcast %230 : vector<1x32xf32> to vector<128x32xf32>
    %232 = arith.addf %229, %231 : vector<128x32xf32>
    %c0_82 = arith.constant 0 : index
    %c0_83 = arith.constant 0 : index
    %233 = vector.load %arg8[%c0_82, %c0_83] : memref<8x128xf32, #tpu.memory_space<vmem>>, vector<8x128xf32>
    %cst_84 = arith.constant dense<0.000000e+00> : vector<8x32xf32>
    %234 = tpu.matmul %233, %232, %cst_84 {dimension_numbers = #tpu.dot_dimension_numbers<[1], [0], [0], [1], [0, 0, 1, 1], [], []>} : vector<8x128xf32>, vector<128x32xf32>, vector<8x32xf32> -> vector<8x32xf32>
    %c0_85 = arith.constant 0 : index
    %c0_86 = arith.constant 0 : index
    %235 = vector.load %arg7[%c0_85, %c0_86] : memref<32x128xbf16, #tpu.memory_space<vmem>>, vector<32x128xbf16>
    %236 = arith.truncf %234 : vector<8x32xf32> to vector<8x32xbf16>
    %cst_87 = arith.constant dense<0.000000e+00> : vector<8x128xf32>
    %237 = tpu.matmul %236, %235, %cst_87 {dimension_numbers = #tpu.dot_dimension_numbers<[1], [0], [0], [1], [0, 0, 1, 1], [], []>} : vector<8x32xbf16>, vector<32x128xbf16>, vector<8x128xf32> -> vector<8x128xf32>
    %c3 = arith.constant 3 : index
    %c0_88 = arith.constant 0 : index
    %238 = vector.load %arg9[%c3, %c0_88] : memref<16x128xf32, #tpu.memory_space<vmem>>, vector<1x128xf32>
    %239 = vector.shape_cast %238 : vector<1x128xf32> to vector<128xf32>
    %240 = vector.shape_cast %239 : vector<128xf32> to vector<1x128xf32>
    %241 = vector.broadcast %240 : vector<1x128xf32> to vector<8x128xf32>
    %242 = arith.addf %237, %241 : vector<8x128xf32>
    %c0_89 = arith.constant 0 : index
    %c0_90 = arith.constant 0 : index
    %243 = vector.load %arg10[%c0_89, %c0_90] : memref<8x128xf32, #tpu.memory_space<vmem>>, vector<8x128xf32>
    tpu.vector_store %arg10[%c0_89, %c0_90], %242 {strides = array<i32>} : memref<8x128xf32, #tpu.memory_space<vmem>>, vector<8x128xf32>,
    return
  }
  func.func @transform_0(%arg0: i32) -> (i32, i32) {
    %c0_i32 = arith.constant 0 : i32
    %c0_i32_0 = arith.constant 0 : i32
    return %arg0, %c0_i32 : i32, i32
  }
  func.func @transform_1(%arg0: i32) -> (i32, i32) {
    %c0_i32 = arith.constant 0 : i32
    %c0_i32_0 = arith.constant 0 : i32
    %c0_i32_1 = arith.constant 0 : i32
    return %c0_i32, %c0_i32_0 : i32, i32
  }
  func.func @transform_2(%arg0: i32) -> (i32, i32, i32) {
    %c0_i32 = arith.constant 0 : i32
    %c0_i32_0 = arith.constant 0 : i32
    %c0_i32_1 = arith.constant 0 : i32
    %c0_i32_2 = arith.constant 0 : i32
    return %c0_i32, %c0_i32_0, %c0_i32_1 : i32, i32, i32
  }
  func.func @transform_3(%arg0: i32) -> (i32, i32, i32) {
    %c0_i32 = arith.constant 0 : i32
    %c0_i32_0 = arith.constant 0 : i32
    %c0_i32_1 = arith.constant 0 : i32
    %c0_i32_2 = arith.constant 0 : i32
    return %c0_i32, %c0_i32_0, %c0_i32_1 : i32, i32, i32
  }
  func.func @transform_4(%arg0: i32) -> (i32, i32, i32) {
    %c0_i32 = arith.constant 0 : i32
    %c0_i32_0 = arith.constant 0 : i32
    %c0_i32_1 = arith.constant 0 : i32
    %c0_i32_2 = arith.constant 0 : i32
    return %c0_i32, %c0_i32_0, %c0_i32_1 : i32, i32, i32
  }
  func.func @transform_5(%arg0: i32) -> (i32, i32, i32) {
    %c0_i32 = arith.constant 0 : i32
    %c0_i32_0 = arith.constant 0 : i32
    %c0_i32_1 = arith.constant 0 : i32
    %c0_i32_2 = arith.constant 0 : i32
    return %c0_i32, %c0_i32_0, %c0_i32_1 : i32, i32, i32
  }
  func.func @transform_6(%arg0: i32) -> (i32, i32) {
    %c0_i32 = arith.constant 0 : i32
    %c0_i32_0 = arith.constant 0 : i32
    %c0_i32_1 = arith.constant 0 : i32
    return %c0_i32, %c0_i32_0 : i32, i32
  }
  func.func @transform_7(%arg0: i32) -> (i32, i32) {
    %c0_i32 = arith.constant 0 : i32
    %c0_i32_0 = arith.constant 0 : i32
    %c0_i32_1 = arith.constant 0 : i32
    return %c0_i32, %c0_i32_0 : i32, i32
  }
  func.func @transform_8(%arg0: i32) -> (i32, i32) {
    %c0_i32 = arith.constant 0 : i32
    %c0_i32_0 = arith.constant 0 : i32
    %c0_i32_1 = arith.constant 0 : i32
    return %c0_i32, %c0_i32_0 : i32, i32
  }
  func.func @transform_9(%arg0: i32) -> (i32, i32) {
    %c0_i32 = arith.constant 0 : i32
    %c0_i32_0 = arith.constant 0 : i32
    return %arg0, %c0_i32 : i32, i32
  }
}

</mosaic_0001>

<llo_original>
// kernel: _lambda_.1
$region0: #{_lambda_.1}
  #allocation0 [shape = 'u32[]', space=smem, size = 0x4, offset = 0x4, fixed_abs, tag = 'smem constant byte address 0x4 - core index']
  #allocation1 [shape = 'u32[144,128]{1,0:T(1,128)}', space=vmem, size = 0x12000, scoped, tag = 'internal scratch']
  %s0 = inlined_call_operand.vmem [shape: f32[128,48], index: 0, kind: input, shape index: {}]
  %s1 = inlined_call_operand.vmem [shape: bf16[48,32], index: 1, kind: input, shape index: {}]
  %s2 = inlined_call_operand.vmem [shape: bf16[2,32,64], index: 2, kind: input, shape index: {}]
  %s3 = inlined_call_operand.vmem [shape: bf16[2,128,128], index: 3, kind: input, shape index: {}]
  %s4 = inlined_call_operand.vmem [shape: f32[2,128,32], index: 4, kind: input, shape index: {}]
  %s5 = inlined_call_operand.vmem [shape: bf16[2,32,32], index: 5, kind: input, shape index: {}]
  %s6 = inlined_call_operand.vmem [shape: bf16[32,128], index: 6, kind: input, shape index: {}]
  %s7 = inlined_call_operand.vmem [shape: f32[8,128], index: 7, kind: input, shape index: {}]
  %s8 = inlined_call_operand.vmem [shape: f32[16,128], index: 8, kind: input, shape index: {}]
  %s9 = inlined_call_operand.vmem [shape: f32[8,128], index: 9, kind: output, shape index: {}]
  %s10 = sld [smem:[#allocation0]]
  $region46: #{_lambda_.1} parent=0
    _
  %s12 = ssub.s32 1, %s10
  %s13 = scalar_select 0, %s12, %s10
  // Predicated region
  $region2: #{_lambda_.1} parent=0 // pred_check
    _
  $region3: #{_lambda_.1} parent=0 // pred_check_branch
    %15 = sbr.rel (0) target = $region5
  $region4: #{_lambda_.1} parent=0 // pred_region
    _
  $region5: #{_lambda_.1} parent=0 // pred_fallthru
    _
  // Predicated region
  $region6: #{_lambda_.1} parent=0 // pred_check
    _
  $region7: #{_lambda_.1} parent=0 // pred_check_branch
    %17 = sbr.rel (0) target = $region9
  $region8: #{_lambda_.1} parent=0 // pred_region
    _
  $region9: #{_lambda_.1} parent=0 // pred_fallthru
    _
  // Predicated region
  $region10: #{_lambda_.1} parent=0 // pred_check
    _
  $region11: #{_lambda_.1} parent=0 // pred_check_branch
    %19 = sbr.rel (0) target = $region13
  $region12: #{_lambda_.1} parent=0 // pred_region
    _
  $region13: #{_lambda_.1} parent=0 // pred_fallthru
    _
  // Predicated region
  $region14: #{_lambda_.1} parent=0 // pred_check
    _
  $region15: #{_lambda_.1} parent=0 // pred_check_branch
    %21 = sbr.rel (0) target = $region17
  $region16: #{_lambda_.1} parent=0 // pred_region
    _
  $region17: #{_lambda_.1} parent=0 // pred_fallthru
    _
  // Predicated region
  $region18: #{_lambda_.1} parent=0 // pred_check
    _
  $region19: #{_lambda_.1} parent=0 // pred_check_branch
    %23 = sbr.rel (0) target = $region21
  $region20: #{_lambda_.1} parent=0 // pred_region
    _
  $region21: #{_lambda_.1} parent=0 // pred_fallthru
    _
  // Predicated region
  $region22: #{_lambda_.1} parent=0 // pred_check
    _
  $region23: #{_lambda_.1} parent=0 // pred_check_branch
    %25 = sbr.rel (0) target = $region25
  $region24: #{_lambda_.1} parent=0 // pred_region
    _
  $region25: #{_lambda_.1} parent=0 // pred_fallthru
    _
  // Predicated region
  $region26: #{_lambda_.1} parent=0 // pred_check
    _
  $region27: #{_lambda_.1} parent=0 // pred_check_branch
    %27 = sbr.rel (0) target = $region29
  $region28: #{_lambda_.1} parent=0 // pred_region
    _
  $region29: #{_lambda_.1} parent=0 // pred_fallthru
    _
  // Predicated region
  $region30: #{_lambda_.1} parent=0 // pred_check
    _
  $region31: #{_lambda_.1} parent=0 // pred_check_branch
    %29 = sbr.rel (0) target = $region33
  $region32: #{_lambda_.1} parent=0 // pred_region
    _
  $region33: #{_lambda_.1} parent=0 // pred_fallthru
    _
  // Predicated region
  $region34: #{_lambda_.1} parent=0 // pred_check
    _
  $region35: #{_lambda_.1} parent=0 // pred_check_branch
    %31 = sbr.rel (0) target = $region37
  $region36: #{_lambda_.1} parent=0 // pred_region
    _
  $region37: #{_lambda_.1} parent=0 // pred_fallthru
    _
  %v33 = vld [vmem:[%s0] sm:$0xff]
  %v34 = vld [vmem:[%s0 + $0x8] sm:$0xff]
  %v35 = vld [vmem:[%s0 + $0x10] sm:$0xff]
  %v36 = vld [vmem:[%s0 + $0x18] sm:$0xff]
  %v37 = vld [vmem:[%s0 + $0x20] sm:$0xff]
  %v38 = vld [vmem:[%s0 + $0x28] sm:$0xff]
  %v39 = vld [vmem:[%s0 + $0x30] sm:$0xff]
  %v40 = vld [vmem:[%s0 + $0x38] sm:$0xff]
  %v41 = vld [vmem:[%s0 + $0x40] sm:$0xff]
  %v42 = vld [vmem:[%s0 + $0x48] sm:$0xff]
  %v43 = vld [vmem:[%s0 + $0x50] sm:$0xff]
  %v44 = vld [vmem:[%s0 + $0x58] sm:$0xff]
  %v45 = vld [vmem:[%s0 + $0x60] sm:$0xff]
  %v46 = vld [vmem:[%s0 + $0x68] sm:$0xff]
  %v47 = vld [vmem:[%s0 + $0x70] sm:$0xff]
  %v48 = vld [vmem:[%s0 + $0x78] sm:$0xff]
  %v49 = vld [vmem:[%s1] sm:$0xf]
  %v50 = vld [vmem:[%s1 + $0x4] sm:$0xf]
  %v51 = vld [vmem:[%s1 + $0x8] sm:$0xf]
  %v52 = vld [vmem:[%s1 + $0xc] sm:$0xf]
  %v53 = vld [vmem:[%s1 + $0x10] sm:$0xf]
  %v54 = vld [vmem:[%s1 + $0x14] sm:$0xf]
  %v55 = vpack.c.bf16 %v34, %v33
  %v56 = vpack.c.bf16 %v36, %v35
  %v57 = vpack.c.bf16 %v38, %v37
  %v58 = vpack.c.bf16 %v40, %v39
  %v59 = vpack.c.bf16 %v42, %v41
  %v60 = vpack.c.bf16 %v44, %v43
  %v61 = vpack.c.bf16 %v46, %v45
  %v62 = vpack.c.bf16 %v48, %v47
  %v63 = vld [vmem:[%s8] sm:$0x1]
  %v64 = vlaneseq
  %v65 = vshrl.u32 %v64, 7
  %v66 = vsub.s32 0, %v65
  %v67 = vrot.slane %v63, %v66
  %v74 = vunpack.c.l.b16 %v49
  %v75 = vunpack.c.l.b16 %v50
  %v76 = vunpack.c.l.b16 %v51
  %v77 = vunpack.c.l.b16 %v52
  %v78 = vunpack.c.l.b16 %v53
  %v79 = vunpack.c.l.b16 %v54
  %v80 = vpack.c.b16 %v75, %v74
  %v81 = vpack.c.b16 %v77, %v76
  %v82 = vpack.c.b16 %v79, %v78
  %vm86 = vcmask 392192
  %v88 = vsel %vm86, %v55, 0
  %v91 = vsel %vm86, %v56, 0
  %v94 = vsel %vm86, %v57, 0
  %v97 = vsel %vm86, %v58, 0
  %v100 = vsel %vm86, %v59, 0
  %v103 = vsel %vm86, %v60, 0
  %v106 = vsel %vm86, %v61, 0
  %v109 = vsel %vm86, %v62, 0
  %111 = vmatprep.subr.bf16.mxu0 0
  %112 = vmatpush1.bf16.msra.mxu0 %v80
  %113 = vmatprep.subr.bf16.mxu0 0
  %114 = vmatpush1.bf16.msra.mxu0 %v81
  %115 = vmatprep.subr.bf16.mxu0 0
  %116 = vmatpush1.bf16.msra.mxu0 %v82
  %117 = vmatprep.subr.bf16.mxu0 0
  %118 = vmatpush1.bf16.msra.mxu0 0
  %119 = vmatprep.subr.bf16.mxu0 0
  %120 = vmatpush1.bf16.msra.mxu0 0
  %121 = vmatprep.subr.bf16.mxu0 0
  %122 = vmatpush1.bf16.msra.mxu0 0
  %123 = vmatprep.subr.bf16.mxu0 0
  %124 = vmatpush1.bf16.msra.mxu0 0
  %125 = vmatprep.subr.bf16.mxu0 0
  %126 = vmatpush1.bf16.msra.mxu0 0
  %127 = vmatprep.subr.bf16.mxu0 0
  %128 = vmatpush1.bf16.msra.mxu0 0
  %129 = vmatprep.subr.bf16.mxu0 0
  %130 = vmatpush1.bf16.msra.mxu0 0
  %131 = vmatprep.subr.bf16.mxu0 0
  %132 = vmatpush1.bf16.msra.mxu0 0
  %133 = vmatprep.subr.bf16.mxu0 0
  %134 = vmatpush1.bf16.msra.mxu0 0
  %135 = vmatprep.subr.bf16.mxu0 0
  %136 = vmatpush1.bf16.msra.mxu0 0
  %137 = vmatprep.subr.bf16.mxu0 0
  %138 = vmatpush1.bf16.msra.mxu0 0
  %139 = vmatprep.subr.bf16.mxu0 0
  %140 = vmatpush1.bf16.msra.mxu0 0
  %141 = vmatprep.subr.bf16.mxu0 0
  %142 = vmatpush1.bf16.msra.mxu0 0
  %143 = vmatprep.mubr.bf16.mxu0 0
  %144 = vmatmul.mubr.bf16.gmra.mrb[0].mxu0 %v88
  %v145 = vpop.f32.mrb[0].mxu0
  %v146 = vadd.f32 %v67, %v145
  %v147 = vpop.f32.mrb[0].mxu0
  %v148 = vpop.f32.mrb[0].mxu0
  %v149 = vadd.f32 %v67, %v148
  %v150 = vpop.f32.mrb[0].mxu0
  %151 = vmatprep.mubr.bf16.mxu0 0
  %152 = vmatmul.mubr.bf16.gmra.mrb[0].mxu0 %v91
  %v153 = vpop.f32.mrb[0].mxu0
  %v154 = vadd.f32 %v67, %v153
  %v155 = vpop.f32.mrb[0].mxu0
  %v156 = vpop.f32.mrb[0].mxu0
  %v157 = vadd.f32 %v67, %v156
  %v158 = vpop.f32.mrb[0].mxu0
  %159 = vmatprep.mubr.bf16.mxu0 0
  %160 = vmatmul.mubr.bf16.gmra.mrb[0].mxu0 %v94
  %v161 = vpop.f32.mrb[0].mxu0
  %v162 = vadd.f32 %v67, %v161
  %v163 = vpop.f32.mrb[0].mxu0
  %v164 = vpop.f32.mrb[0].mxu0
  %v165 = vadd.f32 %v67, %v164
  %v166 = vpop.f32.mrb[0].mxu0
  %167 = vmatprep.mubr.bf16.mxu0 0
  %168 = vmatmul.mubr.bf16.gmra.mrb[0].mxu0 %v97
  %v169 = vpop.f32.mrb[0].mxu0
  %v170 = vadd.f32 %v67, %v169
  %v171 = vpop.f32.mrb[0].mxu0
  %v172 = vpop.f32.mrb[0].mxu0
  %v173 = vadd.f32 %v67, %v172
  %v174 = vpop.f32.mrb[0].mxu0
  %175 = vmatprep.mubr.bf16.mxu0 0
  %176 = vmatmul.mubr.bf16.gmra.mrb[0].mxu0 %v100
  %v177 = vpop.f32.mrb[0].mxu0
  %v178 = vadd.f32 %v67, %v177
  %v179 = vpop.f32.mrb[0].mxu0
  %v180 = vpop.f32.mrb[0].mxu0
  %v181 = vadd.f32 %v67, %v180
  %v182 = vpop.f32.mrb[0].mxu0
  %183 = vmatprep.mubr.bf16.mxu0 0
  %184 = vmatmul.mubr.bf16.gmra.mrb[0].mxu0 %v103
  %v185 = vpop.f32.mrb[0].mxu0
  %v186 = vadd.f32 %v67, %v185
  %v187 = vpop.f32.mrb[0].mxu0
  %v188 = vpop.f32.mrb[0].mxu0
  %v189 = vadd.f32 %v67, %v188
  %v190 = vpop.f32.mrb[0].mxu0
  %191 = vmatprep.mubr.bf16.mxu0 0
  %192 = vmatmul.mubr.bf16.gmra.mrb[0].mxu0 %v106
  %v193 = vpop.f32.mrb[0].mxu0
  %v194 = vadd.f32 %v67, %v193
  %v195 = vpop.f32.mrb[0].mxu0
  %v196 = vpop.f32.mrb[0].mxu0
  %v197 = vadd.f32 %v67, %v196
  %v198 = vpop.f32.mrb[0].mxu0
  %199 = vmatprep.mubr.bf16.mxu0 0
  %200 = vmatmul.mubr.bf16.gmra.mrb[0].mxu0 %v109
  %v201 = vpop.f32.mrb[0].mxu0
  %v202 = vadd.f32 %v67, %v201
  %v203 = vpop.f32.mrb[0].mxu0
  %v204 = vpop.f32.mrb[0].mxu0
  %v205 = vadd.f32 %v67, %v204
  %v206 = vpop.f32.mrb[0].mxu0
  %207 = vdwg.mxu0
  %v208 = vld [vmem:[%s8 + $0x4] sm:$0x1]
  %v209 = vld [vmem:[%s8 + $0x5] sm:$0x1]
  %v210 = vld [vmem:[%s8 + $0x6] sm:$0x1]
  %v211 = vld [vmem:[%s8 + $0x7] sm:$0x1]
  %v212 = vld [vmem:[%s8 + $0x8] sm:$0x1]
  %v213 = vld [vmem:[%s8 + $0x9] sm:$0x1]
  %vm214 = vcmask 261120
  %v215 = vsel %vm214, %v146, 0.0
  %216 = vadd.xlane.f32.xlu0 %v215
  %v217 = vpop.xlane.xlu0 %216
  %v218 = vsel %vm214, %v149, 0.0
  %219 = vadd.xlane.f32.xlu0 %v218
  %v220 = vpop.xlane.xlu0 %219
  %v221 = vsel %vm214, %v154, 0.0
  %222 = vadd.xlane.f32.xlu0 %v221
  %v223 = vpop.xlane.xlu0 %222
  %v224 = vsel %vm214, %v157, 0.0
  %225 = vadd.xlane.f32.xlu0 %v224
  %v226 = vpop.xlane.xlu0 %225
  %v227 = vsel %vm214, %v162, 0.0
  %228 = vadd.xlane.f32.xlu0 %v227
  %v229 = vpop.xlane.xlu0 %228
  %v230 = vsel %vm214, %v165, 0.0
  %231 = vadd.xlane.f32.xlu0 %v230
  %v232 = vpop.xlane.xlu0 %231
  %v233 = vsel %vm214, %v170, 0.0
  %234 = vadd.xlane.f32.xlu0 %v233
  %v235 = vpop.xlane.xlu0 %234
  %v236 = vsel %vm214, %v173, 0.0
  %237 = vadd.xlane.f32.xlu0 %v236
  %v238 = vpop.xlane.xlu0 %237
  %v239 = vsel %vm214, %v178, 0.0
  %240 = vadd.xlane.f32.xlu0 %v239
  %v241 = vpop.xlane.xlu0 %240
  %v242 = vsel %vm214, %v181, 0.0
  %243 = vadd.xlane.f32.xlu0 %v242
  %v244 = vpop.xlane.xlu0 %243
  %v245 = vsel %vm214, %v186, 0.0
  %246 = vadd.xlane.f32.xlu0 %v245
  %v247 = vpop.xlane.xlu0 %246
  %v248 = vsel %vm214, %v189, 0.0
  %249 = vadd.xlane.f32.xlu0 %v248
  %v250 = vpop.xlane.xlu0 %249
  %v251 = vsel %vm214, %v194, 0.0
  %252 = vadd.xlane.f32.xlu0 %v251
  %v253 = vpop.xlane.xlu0 %252
  %v254 = vsel %vm214, %v197, 0.0
  %255 = vadd.xlane.f32.xlu0 %v254
  %v256 = vpop.xlane.xlu0 %255
  %v257 = vsel %vm214, %v202, 0.0
  %258 = vadd.xlane.f32.xlu0 %v257
  %v259 = vpop.xlane.xlu0 %258
  %v260 = vsel %vm214, %v205, 0.0
  %261 = vadd.xlane.f32.xlu0 %v260
  %v262 = vpop.xlane.xlu0 %261
  %v263 = vrcp.pop 32.0
  %v264 = vmul.f32 %v217, %v263
  %v265 = vmul.f32 %v220, %v263
  %v266 = vmul.f32 %v223, %v263
  %v267 = vmul.f32 %v226, %v263
  %v268 = vmul.f32 %v229, %v263
  %v269 = vmul.f32 %v232, %v263
  %v270 = vmul.f32 %v235, %v263
  %v271 = vmul.f32 %v238, %v263
  %v272 = vmul.f32 %v241, %v263
  %v273 = vmul.f32 %v244, %v263
  %v274 = vmul.f32 %v247, %v263
  %v275 = vmul.f32 %v250, %v263
  %v276 = vmul.f32 %v253, %v263
  %v277 = vmul.f32 %v256, %v263
  %v278 = vmul.f32 %v259, %v263
  %v279 = vmul.f32 %v262, %v263
  %v280 = vsub.f32 %v146, %v264
  %v281 = vsub.f32 %v149, %v265
  %v282 = vsub.f32 %v154, %v266
  %v283 = vsub.f32 %v157, %v267
  %v284 = vsub.f32 %v162, %v268
  %v285 = vsub.f32 %v165, %v269
  %v286 = vsub.f32 %v170, %v270
  %v287 = vsub.f32 %v173, %v271
  %v288 = vsub.f32 %v178, %v272
  %v289 = vsub.f32 %v181, %v273
  %v290 = vsub.f32 %v186, %v274
  %v291 = vsub.f32 %v189, %v275
  %v292 = vsub.f32 %v194, %v276
  %v293 = vsub.f32 %v197, %v277
  %v294 = vsub.f32 %v202, %v278
  %v295 = vsub.f32 %v205, %v279
  %v296 = vmul.f32 %v280, %v280
  %v297 = vmul.f32 %v281, %v281
  %v298 = vmul.f32 %v282, %v282
  %v299 = vmul.f32 %v283, %v283
  %v300 = vmul.f32 %v284, %v284
  %v301 = vmul.f32 %v285, %v285
  %v302 = vmul.f32 %v286, %v286
  %v303 = vmul.f32 %v287, %v287
  %v304 = vmul.f32 %v288, %v288
  %v305 = vmul.f32 %v289, %v289
  %v306 = vmul.f32 %v290, %v290
  %v307 = vmul.f32 %v291, %v291
  %v308 = vmul.f32 %v292, %v292
  %v309 = vmul.f32 %v293, %v293
  %v310 = vmul.f32 %v294, %v294
  %v311 = vmul.f32 %v295, %v295
  %v312 = vsel %vm214, %v296, 0.0
  %313 = vadd.xlane.f32.xlu0 %v312
  %v314 = vpop.xlane.xlu0 %313
  %v315 = vsel %vm214, %v297, 0.0
  %316 = vadd.xlane.f32.xlu0 %v315
  %v317 = vpop.xlane.xlu0 %316
  %v318 = vsel %vm214, %v298, 0.0
  %319 = vadd.xlane.f32.xlu0 %v318
  %v320 = vpop.xlane.xlu0 %319
  %v321 = vsel %vm214, %v299, 0.0
  %322 = vadd.xlane.f32.xlu0 %v321
  %v323 = vpop.xlane.xlu0 %322
  %v324 = vsel %vm214, %v300, 0.0
  %325 = vadd.xlane.f32.xlu0 %v324
  %v326 = vpop.xlane.xlu0 %325
  %v327 = vsel %vm214, %v301, 0.0
  %328 = vadd.xlane.f32.xlu0 %v327
  %v329 = vpop.xlane.xlu0 %328
  %v330 = vsel %vm214, %v302, 0.0
  %331 = vadd.xlane.f32.xlu0 %v330
  %v332 = vpop.xlane.xlu0 %331
  %v333 = vsel %vm214, %v303, 0.0
  %334 = vadd.xlane.f32.xlu0 %v333
  %v335 = vpop.xlane.xlu0 %334
  %v336 = vsel %vm214, %v304, 0.0
  %337 = vadd.xlane.f32.xlu0 %v336
  %v338 = vpop.xlane.xlu0 %337
  %v339 = vsel %vm214, %v305, 0.0
  %340 = vadd.xlane.f32.xlu0 %v339
  %v341 = vpop.xlane.xlu0 %340
  %v342 = vsel %vm214, %v306, 0.0
  %343 = vadd.xlane.f32.xlu0 %v342
  %v344 = vpop.xlane.xlu0 %343
  %v345 = vsel %vm214, %v307, 0.0
  %346 = vadd.xlane.f32.xlu0 %v345
  %v347 = vpop.xlane.xlu0 %346
  %v348 = vsel %vm214, %v308, 0.0
  %349 = vadd.xlane.f32.xlu0 %v348
  %v350 = vpop.xlane.xlu0 %349
  %v351 = vsel %vm214, %v309, 0.0
  %352 = vadd.xlane.f32.xlu0 %v351
  %v353 = vpop.xlane.xlu0 %352
  %v354 = vsel %vm214, %v310, 0.0
  %355 = vadd.xlane.f32.xlu0 %v354
  %v356 = vpop.xlane.xlu0 %355
  %v357 = vsel %vm214, %v311, 0.0
  %358 = vadd.xlane.f32.xlu0 %v357
  %v359 = vpop.xlane.xlu0 %358
  %v360 = vmul.f32 %v314, %v263
  %v361 = vmul.f32 %v317, %v263
  %v362 = vmul.f32 %v320, %v263
  %v363 = vmul.f32 %v323, %v263
  %v364 = vmul.f32 %v326, %v263
  %v365 = vmul.f32 %v329, %v263
  %v366 = vmul.f32 %v332, %v263
  %v367 = vmul.f32 %v335, %v263
  %v368 = vmul.f32 %v338, %v263
  %v369 = vmul.f32 %v341, %v263
  %v370 = vmul.f32 %v344, %v263
  %v371 = vmul.f32 %v347, %v263
  %v372 = vmul.f32 %v350, %v263
  %v373 = vmul.f32 %v353, %v263
  %v374 = vmul.f32 %v356, %v263
  %v375 = vmul.f32 %v359, %v263
  %v376 = vadd.f32 %v360, 1e-05
  %v377 = vadd.f32 %v361, 1e-05
  %v378 = vadd.f32 %v362, 1e-05
  %v379 = vadd.f32 %v363, 1e-05
  %v380 = vadd.f32 %v364, 1e-05
  %v381 = vadd.f32 %v365, 1e-05
  %v382 = vadd.f32 %v366, 1e-05
  %v383 = vadd.f32 %v367, 1e-05
  %v384 = vadd.f32 %v368, 1e-05
  %v385 = vadd.f32 %v369, 1e-05
  %v386 = vadd.f32 %v370, 1e-05
  %v387 = vadd.f32 %v371, 1e-05
  %v388 = vadd.f32 %v372, 1e-05
  %v389 = vadd.f32 %v373, 1e-05
  %v390 = vadd.f32 %v374, 1e-05
  %v391 = vadd.f32 %v375, 1e-05
  %v392 = vrsqrt.pop %v376
  %v393 = vrsqrt.pop %v377
  %v394 = vrsqrt.pop %v378
  %v395 = vrsqrt.pop %v379
  %v396 = vrsqrt.pop %v380
  %v397 = vrsqrt.pop %v381
  %v398 = vrsqrt.pop %v382
  %v399 = vrsqrt.pop %v383
  %v400 = vrsqrt.pop %v384
  %v401 = vrsqrt.pop %v385
  %v402 = vrsqrt.pop %v386
  %v403 = vrsqrt.pop %v387
  %v404 = vrsqrt.pop %v388
  %v405 = vrsqrt.pop %v389
  %v406 = vrsqrt.pop %v390
  %v407 = vrsqrt.pop %v391
  %v408 = vmul.f32 %v280, %v392
  %v409 = vmul.f32 %v281, %v393
  %v410 = vmul.f32 %v282, %v394
  %v411 = vmul.f32 %v283, %v395
  %v412 = vmul.f32 %v284, %v396
  %v413 = vmul.f32 %v285, %v397
  %v414 = vmul.f32 %v286, %v398
  %v415 = vmul.f32 %v287, %v399
  %v416 = vmul.f32 %v288, %v400
  %v417 = vmul.f32 %v289, %v401
  %v418 = vmul.f32 %v290, %v402
  %v419 = vmul.f32 %v291, %v403
  %v420 = vmul.f32 %v292, %v404
  %v421 = vmul.f32 %v293, %v405
  %v422 = vmul.f32 %v294, %v406
  %v423 = vmul.f32 %v295, %v407
  %v424 = vlaneseq
  %v425 = vshrl.u32 %v424, 7
  %v426 = vsub.s32 0, %v425
  %v427 = vrot.slane %v208, %v426
  %v428 = vmul.f32 %v408, %v427
  %v429 = vmul.f32 %v409, %v427
  %v430 = vmul.f32 %v410, %v427
  %v431 = vmul.f32 %v411, %v427
  %v432 = vmul.f32 %v412, %v427
  %v433 = vmul.f32 %v413, %v427
  %v434 = vmul.f32 %v414, %v427
  %v435 = vmul.f32 %v415, %v427
  %v436 = vmul.f32 %v416, %v427
  %v437 = vmul.f32 %v417, %v427
  %v438 = vmul.f32 %v418, %v427
  %v439 = vmul.f32 %v419, %v427
  %v440 = vmul.f32 %v420, %v427
  %v441 = vmul.f32 %v421, %v427
  %v442 = vmul.f32 %v422, %v427
  %v443 = vmul.f32 %v423, %v427
  %v444 = vlaneseq
  %v445 = vshrl.u32 %v444, 7
  %v446 = vsub.s32 0, %v445
  %v447 = vrot.slane %v209, %v446
  %v448 = vadd.f32 %v428, %v447
  %v449 = vadd.f32 %v429, %v447
  %v450 = vadd.f32 %v430, %v447
  %v451 = vadd.f32 %v431, %v447
  %v452 = vadd.f32 %v432, %v447
  %v453 = vadd.f32 %v433, %v447
  %v454 = vadd.f32 %v434, %v447
  %v455 = vadd.f32 %v435, %v447
  %v456 = vadd.f32 %v436, %v447
  %v457 = vadd.f32 %v437, %v447
  %v458 = vadd.f32 %v438, %v447
  %v459 = vadd.f32 %v439, %v447
  %v460 = vadd.f32 %v440, %v447
  %v461 = vadd.f32 %v441, %v447
  %v462 = vadd.f32 %v442, %v447
  %v463 = vadd.f32 %v443, %v447
  %v464 = vld [vmem:[%s2] sm:$0xf]
  %v465 = vld [vmem:[%s2 + $0x4] sm:$0xf]
  %v466 = vld [vmem:[%s2 + $0x8] sm:$0xf]
  %v467 = vld [vmem:[%s2 + $0xc] sm:$0xf]
  %v468 = vpack.c.bf16 %v449, %v448
  %v469 = vpack.c.bf16 %v451, %v450
  %v470 = vpack.c.bf16 %v453, %v452
  %v471 = vpack.c.bf16 %v455, %v454
  %v472 = vpack.c.bf16 %v457, %v456
  %v473 = vpack.c.bf16 %v459, %v458
  %v474 = vpack.c.bf16 %v461, %v460
  %v475 = vpack.c.bf16 %v463, %v462
  %v476 = vlaneseq
  %v477 = vshrl.u32 %v476, 7
  %v478 = vsub.s32 0, %v477
  %v479 = vrot.slane %v210, %v478
  %v484 = vunpack.c.l.b16 %v464
  %v485 = vunpack.c.l.b16 %v465
  %v486 = vunpack.c.l.b16 %v466
  %v487 = vunpack.c.l.b16 %v467
  %v488 = vpack.c.b16 %v485, %v484
  %v489 = vpack.c.b16 %v487, %v486
  %v493 = vsel %vm214, %v468, 0
  %v496 = vsel %vm214, %v469, 0
  %v499 = vsel %vm214, %v470, 0
  %v502 = vsel %vm214, %v471, 0
  %v505 = vsel %vm214, %v472, 0
  %v508 = vsel %vm214, %v473, 0
  %v511 = vsel %vm214, %v474, 0
  %v514 = vsel %vm214, %v475, 0
  %516 = vmatprep.subr.bf16.mxu0 0
  %517 = vmatpush1.bf16.msra.mxu0 %v488
  %518 = vmatprep.subr.bf16.mxu0 0
  %519 = vmatpush1.bf16.msra.mxu0 %v489
  %520 = vmatprep.subr.bf16.mxu0 0
  %521 = vmatpush1.bf16.msra.mxu0 0
  %522 = vmatprep.subr.bf16.mxu0 0
  %523 = vmatpush1.bf16.msra.mxu0 0
  %524 = vmatprep.subr.bf16.mxu0 0
  %525 = vmatpush1.bf16.msra.mxu0 0
  %526 = vmatprep.subr.bf16.mxu0 0
  %527 = vmatpush1.bf16.msra.mxu0 0
  %528 = vmatprep.subr.bf16.mxu0 0
  %529 = vmatpush1.bf16.msra.mxu0 0
  %530 = vmatprep.subr.bf16.mxu0 0
  %531 = vmatpush1.bf16.msra.mxu0 0
  %532 = vmatprep.subr.bf16.mxu0 0
  %533 = vmatpush1.bf16.msra.mxu0 0
  %534 = vmatprep.subr.bf16.mxu0 0
  %535 = vmatpush1.bf16.msra.mxu0 0
  %536 = vmatprep.subr.bf16.mxu0 0
  %537 = vmatpush1.bf16.msra.mxu0 0
  %538 = vmatprep.subr.bf16.mxu0 0
  %539 = vmatpush1.bf16.msra.mxu0 0
  %540 = vmatprep.subr.bf16.mxu0 0
  %541 = vmatpush1.bf16.msra.mxu0 0
  %542 = vmatprep.subr.bf16.mxu0 0
  %543 = vmatpush1.bf16.msra.mxu0 0
  %544 = vmatprep.subr.bf16.mxu0 0
  %545 = vmatpush1.bf16.msra.mxu0 0
  %546 = vmatprep.subr.bf16.mxu0 0
  %547 = vmatpush1.bf16.msra.mxu0 0
  %548 = vmatprep.mubr.bf16.mxu0 0
  %549 = vmatmul.mubr.bf16.gmra.mrb[0].mxu0 %v493
  %v550 = vpop.f32.mrb[0].mxu0
  %v551 = vadd.f32 %v479, %v550
  %v552 = vpop.f32.mrb[0].mxu0
  %v553 = vpop.f32.mrb[0].mxu0
  %v554 = vadd.f32 %v479, %v553
  %v555 = vpop.f32.mrb[0].mxu0
  %556 = vmatprep.mubr.bf16.mxu0 0
  %557 = vmatmul.mubr.bf16.gmra.mrb[0].mxu0 %v496
  %v558 = vpop.f32.mrb[0].mxu0
  %v559 = vadd.f32 %v479, %v558
  %v560 = vpop.f32.mrb[0].mxu0
  %v561 = vpop.f32.mrb[0].mxu0
  %v562 = vadd.f32 %v479, %v561
  %v563 = vpop.f32.mrb[0].mxu0
  %564 = vmatprep.mubr.bf16.mxu0 0
  %565 = vmatmul.mubr.bf16.gmra.mrb[0].mxu0 %v499
  %v566 = vpop.f32.mrb[0].mxu0
  %v567 = vadd.f32 %v479, %v566
  %v568 = vpop.f32.mrb[0].mxu0
  %v569 = vpop.f32.mrb[0].mxu0
  %v570 = vadd.f32 %v479, %v569
  %v571 = vpop.f32.mrb[0].mxu0
  %572 = vmatprep.mubr.bf16.mxu0 0
  %573 = vmatmul.mubr.bf16.gmra.mrb[0].mxu0 %v502
  %v574 = vpop.f32.mrb[0].mxu0
  %v575 = vadd.f32 %v479, %v574
  %v576 = vpop.f32.mrb[0].mxu0
  %v577 = vpop.f32.mrb[0].mxu0
  %v578 = vadd.f32 %v479, %v577
  %v579 = vpop.f32.mrb[0].mxu0
  %580 = vmatprep.mubr.bf16.mxu0 0
  %581 = vmatmul.mubr.bf16.gmra.mrb[0].mxu0 %v505
  %v582 = vpop.f32.mrb[0].mxu0
  %v583 = vadd.f32 %v479, %v582
  %v584 = vpop.f32.mrb[0].mxu0
  %v585 = vpop.f32.mrb[0].mxu0
  %v586 = vadd.f32 %v479, %v585
  %v587 = vpop.f32.mrb[0].mxu0
  %588 = vmatprep.mubr.bf16.mxu0 0
  %589 = vmatmul.mubr.bf16.gmra.mrb[0].mxu0 %v508
  %v590 = vpop.f32.mrb[0].mxu0
  %v591 = vadd.f32 %v479, %v590
  %v592 = vpop.f32.mrb[0].mxu0
  %v593 = vpop.f32.mrb[0].mxu0
  %v594 = vadd.f32 %v479, %v593
  %v595 = vpop.f32.mrb[0].mxu0
  %596 = vmatprep.mubr.bf16.mxu0 0
  %597 = vmatmul.mubr.bf16.gmra.mrb[0].mxu0 %v511
  %v598 = vpop.f32.mrb[0].mxu0
  %v599 = vadd.f32 %v479, %v598
  %v600 = vpop.f32.mrb[0].mxu0
  %v601 = vpop.f32.mrb[0].mxu0
  %v602 = vadd.f32 %v479, %v601
  %v603 = vpop.f32.mrb[0].mxu0
  %604 = vmatprep.mubr.bf16.mxu0 0
  %605 = vmatmul.mubr.bf16.gmra.mrb[0].mxu0 %v514
  %v606 = vpop.f32.mrb[0].mxu0
  %v607 = vadd.f32 %v479, %v606
  %v608 = vpop.f32.mrb[0].mxu0
  %v609 = vpop.f32.mrb[0].mxu0
  %v610 = vadd.f32 %v479, %v609
  %v611 = vpop.f32.mrb[0].mxu0
  %612 = vdwg.mxu0
  %v613 = vmul.f32 %v551, 0.5
  %v614 = vmul.f32 %v554, 0.5
  %v615 = vmul.f32 %v559, 0.5
  %v616 = vmul.f32 %v562, 0.5
  %v617 = vmul.f32 %v567, 0.5
  %v618 = vmul.f32 %v570, 0.5
  %v619 = vmul.f32 %v575, 0.5
  %v620 = vmul.f32 %v578, 0.5
  %v621 = vmul.f32 %v583, 0.5
  %v622 = vmul.f32 %v586, 0.5
  %v623 = vmul.f32 %v591, 0.5
  %v624 = vmul.f32 %v594, 0.5
  %v625 = vmul.f32 %v599, 0.5
  %v626 = vmul.f32 %v602, 0.5
  %v627 = vmul.f32 %v607, 0.5
  %v628 = vmul.f32 %v610, 0.5
  %v629 = vmul.f32 %v551, 0.044715
  %v630 = vmul.f32 %v554, 0.044715
  %v631 = vmul.f32 %v559, 0.044715
  %v632 = vmul.f32 %v562, 0.044715
  %v633 = vmul.f32 %v567, 0.044715
  %v634 = vmul.f32 %v570, 0.044715
  %v635 = vmul.f32 %v575, 0.044715
  %v636 = vmul.f32 %v578, 0.044715
  %v637 = vmul.f32 %v583, 0.044715
  %v638 = vmul.f32 %v586, 0.044715
  %v639 = vmul.f32 %v591, 0.044715
  %v640 = vmul.f32 %v594, 0.044715
  %v641 = vmul.f32 %v599, 0.044715
  %v642 = vmul.f32 %v602, 0.044715
  %v643 = vmul.f32 %v607, 0.044715
  %v644 = vmul.f32 %v610, 0.044715
  %v645 = vmul.f32 %v629, %v551
  %v646 = vmul.f32 %v630, %v554
  %v647 = vmul.f32 %v631, %v559
  %v648 = vmul.f32 %v632, %v562
  %v649 = vmul.f32 %v633, %v567
  %v650 = vmul.f32 %v634, %v570
  %v651 = vmul.f32 %v635, %v575
  %v652 = vmul.f32 %v636, %v578
  %v653 = vmul.f32 %v637, %v583
  %v654 = vmul.f32 %v638, %v586
  %v655 = vmul.f32 %v639, %v591
  %v656 = vmul.f32 %v640, %v594
  %v657 = vmul.f32 %v641, %v599
  %v658 = vmul.f32 %v642, %v602
  %v659 = vmul.f32 %v643, %v607
  %v660 = vmul.f32 %v644, %v610
  %v661 = vmul.f32 %v645, %v551
  %v662 = vmul.f32 %v646, %v554
  %v663 = vmul.f32 %v647, %v559
  %v664 = vmul.f32 %v648, %v562
  %v665 = vmul.f32 %v649, %v567
  %v666 = vmul.f32 %v650, %v570
  %v667 = vmul.f32 %v651, %v575
  %v668 = vmul.f32 %v652, %v578
  %v669 = vmul.f32 %v653, %v583
  %v670 = vmul.f32 %v654, %v586
  %v671 = vmul.f32 %v655, %v591
  %v672 = vmul.f32 %v656, %v594
  %v673 = vmul.f32 %v657, %v599
  %v674 = vmul.f32 %v658, %v602
  %v675 = vmul.f32 %v659, %v607
  %v676 = vmul.f32 %v660, %v610
  %v677 = vadd.f32 %v551, %v661
  %v678 = vadd.f32 %v554, %v662
  %v679 = vadd.f32 %v559, %v663
  %v680 = vadd.f32 %v562, %v664
  %v681 = vadd.f32 %v567, %v665
  %v682 = vadd.f32 %v570, %v666
  %v683 = vadd.f32 %v575, %v667
  %v684 = vadd.f32 %v578, %v668
  %v685 = vadd.f32 %v583, %v669
  %v686 = vadd.f32 %v586, %v670
  %v687 = vadd.f32 %v591, %v671
  %v688 = vadd.f32 %v594, %v672
  %v689 = vadd.f32 %v599, %v673
  %v690 = vadd.f32 %v602, %v674
  %v691 = vadd.f32 %v607, %v675
  %v692 = vadd.f32 %v610, %v676
  %v693 = vmul.f32 %v677, 0.7978846
  %v694 = vmul.f32 %v678, 0.7978846
  %v695 = vmul.f32 %v679, 0.7978846
  %v696 = vmul.f32 %v680, 0.7978846
  %v697 = vmul.f32 %v681, 0.7978846
  %v698 = vmul.f32 %v682, 0.7978846
  %v699 = vmul.f32 %v683, 0.7978846
  %v700 = vmul.f32 %v684, 0.7978846
  %v701 = vmul.f32 %v685, 0.7978846
  %v702 = vmul.f32 %v686, 0.7978846
  %v703 = vmul.f32 %v687, 0.7978846
  %v704 = vmul.f32 %v688, 0.7978846
  %v705 = vmul.f32 %v689, 0.7978846
  %v706 = vmul.f32 %v690, 0.7978846
  %v707 = vmul.f32 %v691, 0.7978846
  %v708 = vmul.f32 %v692, 0.7978846
  %v709 = vtanh.pop %v693
  %v710 = vtanh.pop %v694
  %v711 = vtanh.pop %v695
  %v712 = vtanh.pop %v696
  %v713 = vtanh.pop %v697
  %v714 = vtanh.pop %v698
  %v715 = vtanh.pop %v699
  %v716 = vtanh.pop %v700
  %v717 = vtanh.pop %v701
  %v718 = vtanh.pop %v702
  %v719 = vtanh.pop %v703
  %v720 = vtanh.pop %v704
  %v721 = vtanh.pop %v705
  %v722 = vtanh.pop %v706
  %v723 = vtanh.pop %v707
  %v724 = vtanh.pop %v708
  %v725 = vadd.f32 %v709, 1.0
  %v726 = vadd.f32 %v710, 1.0
  %v727 = vadd.f32 %v711, 1.0
  %v728 = vadd.f32 %v712, 1.0
  %v729 = vadd.f32 %v713, 1.0
  %v730 = vadd.f32 %v714, 1.0
  %v731 = vadd.f32 %v715, 1.0
  %v732 = vadd.f32 %v716, 1.0
  %v733 = vadd.f32 %v717, 1.0
  %v734 = vadd.f32 %v718, 1.0
  %v735 = vadd.f32 %v719, 1.0
  %v736 = vadd.f32 %v720, 1.0
  %v737 = vadd.f32 %v721, 1.0
  %v738 = vadd.f32 %v722, 1.0
  %v739 = vadd.f32 %v723, 1.0
  %v740 = vadd.f32 %v724, 1.0
  %v741 = vmul.f32 %v613, %v725
  %v742 = vmul.f32 %v614, %v726
  %v743 = vmul.f32 %v615, %v727
  %v744 = vmul.f32 %v616, %v728
  %v745 = vmul.f32 %v617, %v729
  %v746 = vmul.f32 %v618, %v730
  %v747 = vmul.f32 %v619, %v731
  %v748 = vmul.f32 %v620, %v732
  %v749 = vmul.f32 %v621, %v733
  %v750 = vmul.f32 %v622, %v734
  %v751 = vmul.f32 %v623, %v735
  %v752 = vmul.f32 %v624, %v736
  %v753 = vmul.f32 %v625, %v737
  %v754 = vmul.f32 %v626, %v738
  %v755 = vmul.f32 %v627, %v739
  %v756 = vmul.f32 %v628, %v740
  %v757 = vsel %vm214, %v741, 0.0
  %758 = vadd.xlane.f32.xlu0 %v757
  %v759 = vpop.xlane.xlu0 %758
  %v760 = vsel %vm214, %v742, 0.0
  %761 = vadd.xlane.f32.xlu0 %v760
  %v762 = vpop.xlane.xlu0 %761
  %v763 = vsel %vm214, %v743, 0.0
  %764 = vadd.xlane.f32.xlu0 %v763
  %v765 = vpop.xlane.xlu0 %764
  %v766 = vsel %vm214, %v744, 0.0
  %767 = vadd.xlane.f32.xlu0 %v766
  %v768 = vpop.xlane.xlu0 %767
  %v769 = vsel %vm214, %v745, 0.0
  %770 = vadd.xlane.f32.xlu0 %v769
  %v771 = vpop.xlane.xlu0 %770
  %v772 = vsel %vm214, %v746, 0.0
  %773 = vadd.xlane.f32.xlu0 %v772
  %v774 = vpop.xlane.xlu0 %773
  %v775 = vsel %vm214, %v747, 0.0
  %776 = vadd.xlane.f32.xlu0 %v775
  %v777 = vpop.xlane.xlu0 %776
  %v778 = vsel %vm214, %v748, 0.0
  %779 = vadd.xlane.f32.xlu0 %v778
  %v780 = vpop.xlane.xlu0 %779
  %v781 = vsel %vm214, %v749, 0.0
  %782 = vadd.xlane.f32.xlu0 %v781
  %v783 = vpop.xlane.xlu0 %782
  %v784 = vsel %vm214, %v750, 0.0
  %785 = vadd.xlane.f32.xlu0 %v784
  %v786 = vpop.xlane.xlu0 %785
  %v787 = vsel %vm214, %v751, 0.0
  %788 = vadd.xlane.f32.xlu0 %v787
  %v789 = vpop.xlane.xlu0 %788
  %v790 = vsel %vm214, %v752, 0.0
  %791 = vadd.xlane.f32.xlu0 %v790
  %v792 = vpop.xlane.xlu0 %791
  %v793 = vsel %vm214, %v753, 0.0
  %794 = vadd.xlane.f32.xlu0 %v793
  %v795 = vpop.xlane.xlu0 %794
  %v796 = vsel %vm214, %v754, 0.0
  %797 = vadd.xlane.f32.xlu0 %v796
  %v798 = vpop.xlane.xlu0 %797
  %v799 = vsel %vm214, %v755, 0.0
  %800 = vadd.xlane.f32.xlu0 %v799
  %v801 = vpop.xlane.xlu0 %800
  %v802 = vsel %vm214, %v756, 0.0
  %803 = vadd.xlane.f32.xlu0 %v802
  %v804 = vpop.xlane.xlu0 %803
  %v805 = vmul.f32 %v759, %v263
  %v806 = vmul.f32 %v762, %v263
  %v807 = vmul.f32 %v765, %v263
  %v808 = vmul.f32 %v768, %v263
  %v809 = vmul.f32 %v771, %v263
  %v810 = vmul.f32 %v774, %v263
  %v811 = vmul.f32 %v777, %v263
  %v812 = vmul.f32 %v780, %v263
  %v813 = vmul.f32 %v783, %v263
  %v814 = vmul.f32 %v786, %v263
  %v815 = vmul.f32 %v789, %v263
  %v816 = vmul.f32 %v792, %v263
  %v817 = vmul.f32 %v795, %v263
  %v818 = vmul.f32 %v798, %v263
  %v819 = vmul.f32 %v801, %v263
  %v820 = vmul.f32 %v804, %v263
  %v821 = vsub.f32 %v741, %v805
  %v822 = vsub.f32 %v742, %v806
  %v823 = vsub.f32 %v743, %v807
  %v824 = vsub.f32 %v744, %v808
  %v825 = vsub.f32 %v745, %v809
  %v826 = vsub.f32 %v746, %v810
  %v827 = vsub.f32 %v747, %v811
  %v828 = vsub.f32 %v748, %v812
  %v829 = vsub.f32 %v749, %v813
  %v830 = vsub.f32 %v750, %v814
  %v831 = vsub.f32 %v751, %v815
  %v832 = vsub.f32 %v752, %v816
  %v833 = vsub.f32 %v753, %v817
  %v834 = vsub.f32 %v754, %v818
  %v835 = vsub.f32 %v755, %v819
  %v836 = vsub.f32 %v756, %v820
  %v837 = vmul.f32 %v821, %v821
  %v838 = vmul.f32 %v822, %v822
  %v839 = vmul.f32 %v823, %v823
  %v840 = vmul.f32 %v824, %v824
  %v841 = vmul.f32 %v825, %v825
  %v842 = vmul.f32 %v826, %v826
  %v843 = vmul.f32 %v827, %v827
  %v844 = vmul.f32 %v828, %v828
  %v845 = vmul.f32 %v829, %v829
  %v846 = vmul.f32 %v830, %v830
  %v847 = vmul.f32 %v831, %v831
  %v848 = vmul.f32 %v832, %v832
  %v849 = vmul.f32 %v833, %v833
  %v850 = vmul.f32 %v834, %v834
  %v851 = vmul.f32 %v835, %v835
  %v852 = vmul.f32 %v836, %v836
  %v853 = vsel %vm214, %v837, 0.0
  %854 = vadd.xlane.f32.xlu0 %v853
  %v855 = vpop.xlane.xlu0 %854
  %v856 = vsel %vm214, %v838, 0.0
  %857 = vadd.xlane.f32.xlu0 %v856
  %v858 = vpop.xlane.xlu0 %857
  %v859 = vsel %vm214, %v839, 0.0
  %860 = vadd.xlane.f32.xlu0 %v859
  %v861 = vpop.xlane.xlu0 %860
  %v862 = vsel %vm214, %v840, 0.0
  %863 = vadd.xlane.f32.xlu0 %v862
  %v864 = vpop.xlane.xlu0 %863
  %v865 = vsel %vm214, %v841, 0.0
  %866 = vadd.xlane.f32.xlu0 %v865
  %v867 = vpop.xlane.xlu0 %866
  %v868 = vsel %vm214, %v842, 0.0
  %869 = vadd.xlane.f32.xlu0 %v868
  %v870 = vpop.xlane.xlu0 %869
  %v871 = vsel %vm214, %v843, 0.0
  %872 = vadd.xlane.f32.xlu0 %v871
  %v873 = vpop.xlane.xlu0 %872
  %v874 = vsel %vm214, %v844, 0.0
  %875 = vadd.xlane.f32.xlu0 %v874
  %v876 = vpop.xlane.xlu0 %875
  %v877 = vsel %vm214, %v845, 0.0
  %878 = vadd.xlane.f32.xlu0 %v877
  %v879 = vpop.xlane.xlu0 %878
  %v880 = vsel %vm214, %v846, 0.0
  %881 = vadd.xlane.f32.xlu0 %v880
  %v882 = vpop.xlane.xlu0 %881
  %v883 = vsel %vm214, %v847, 0.0
  %884 = vadd.xlane.f32.xlu0 %v883
  %v885 = vpop.xlane.xlu0 %884
  %v886 = vsel %vm214, %v848, 0.0
  %887 = vadd.xlane.f32.xlu0 %v886
  %v888 = vpop.xlane.xlu0 %887
  %v889 = vsel %vm214, %v849, 0.0
  %890 = vadd.xlane.f32.xlu0 %v889
  %v891 = vpop.xlane.xlu0 %890
  %v892 = vsel %vm214, %v850, 0.0
  %893 = vadd.xlane.f32.xlu0 %v892
  %v894 = vpop.xlane.xlu0 %893
  %v895 = vsel %vm214, %v851, 0.0
  %896 = vadd.xlane.f32.xlu0 %v895
  %v897 = vpop.xlane.xlu0 %896
  %v898 = vsel %vm214, %v852, 0.0
  %899 = vadd.xlane.f32.xlu0 %v898
  %v900 = vpop.xlane.xlu0 %899
  %v901 = vmul.f32 %v855, %v263
  %v902 = vmul.f32 %v858, %v263
  %v903 = vmul.f32 %v861, %v263
  %v904 = vmul.f32 %v864, %v263
  %v905 = vmul.f32 %v867, %v263
  %v906 = vmul.f32 %v870, %v263
  %v907 = vmul.f32 %v873, %v263
  %v908 = vmul.f32 %v876, %v263
  %v909 = vmul.f32 %v879, %v263
  %v910 = vmul.f32 %v882, %v263
  %v911 = vmul.f32 %v885, %v263
  %v912 = vmul.f32 %v888, %v263
  %v913 = vmul.f32 %v891, %v263
  %v914 = vmul.f32 %v894, %v263
  %v915 = vmul.f32 %v897, %v263
  %v916 = vmul.f32 %v900, %v263
  %v917 = vadd.f32 %v901, 1e-05
  %v918 = vadd.f32 %v902, 1e-05
  %v919 = vadd.f32 %v903, 1e-05
  %v920 = vadd.f32 %v904, 1e-05
  %v921 = vadd.f32 %v905, 1e-05
  %v922 = vadd.f32 %v906, 1e-05
  %v923 = vadd.f32 %v907, 1e-05
  %v924 = vadd.f32 %v908, 1e-05
  %v925 = vadd.f32 %v909, 1e-05
  %v926 = vadd.f32 %v910, 1e-05
  %v927 = vadd.f32 %v911, 1e-05
  %v928 = vadd.f32 %v912, 1e-05
  %v929 = vadd.f32 %v913, 1e-05
  %v930 = vadd.f32 %v914, 1e-05
  %v931 = vadd.f32 %v915, 1e-05
  %v932 = vadd.f32 %v916, 1e-05
  %v933 = vrsqrt.pop %v917
  %v934 = vrsqrt.pop %v918
  %v935 = vrsqrt.pop %v919
  %v936 = vrsqrt.pop %v920
  %v937 = vrsqrt.pop %v921
  %v938 = vrsqrt.pop %v922
  %v939 = vrsqrt.pop %v923
  %v940 = vrsqrt.pop %v924
  %v941 = vrsqrt.pop %v925
  %v942 = vrsqrt.pop %v926
  %v943 = vrsqrt.pop %v927
  %v944 = vrsqrt.pop %v928
  %v945 = vrsqrt.pop %v929
  %v946 = vrsqrt.pop %v930
  %v947 = vrsqrt.pop %v931
  %v948 = vrsqrt.pop %v932
  %v949 = vmul.f32 %v821, %v933
  %v950 = vmul.f32 %v822, %v934
  %v951 = vmul.f32 %v823, %v935
  %v952 = vmul.f32 %v824, %v936
  %v953 = vmul.f32 %v825, %v937
  %v954 = vmul.f32 %v826, %v938
  %v955 = vmul.f32 %v827, %v939
  %v956 = vmul.f32 %v828, %v940
  %v957 = vmul.f32 %v829, %v941
  %v958 = vmul.f32 %v830, %v942
  %v959 = vmul.f32 %v831, %v943
  %v960 = vmul.f32 %v832, %v944
  %v961 = vmul.f32 %v833, %v945
  %v962 = vmul.f32 %v834, %v946
  %v963 = vmul.f32 %v835, %v947
  %v964 = vmul.f32 %v836, %v948
  %v965 = vlaneseq
  %v966 = vshrl.u32 %v965, 7
  %v967 = vsub.s32 0, %v966
  %v968 = vrot.slane %v211, %v967
  %v969 = vmul.f32 %v949, %v968
  %v970 = vmul.f32 %v950, %v968
  %v971 = vmul.f32 %v951, %v968
  %v972 = vmul.f32 %v952, %v968
  %v973 = vmul.f32 %v953, %v968
  %v974 = vmul.f32 %v954, %v968
  %v975 = vmul.f32 %v955, %v968
  %v976 = vmul.f32 %v956, %v968
  %v977 = vmul.f32 %v957, %v968
  %v978 = vmul.f32 %v958, %v968
  %v979 = vmul.f32 %v959, %v968
  %v980 = vmul.f32 %v960, %v968
  %v981 = vmul.f32 %v961, %v968
  %v982 = vmul.f32 %v962, %v968
  %v983 = vmul.f32 %v963, %v968
  %v984 = vmul.f32 %v964, %v968
  %v985 = vlaneseq
  %v986 = vshrl.u32 %v985, 7
  %v987 = vsub.s32 0, %v986
  %v988 = vrot.slane %v212, %v987
  %v989 = vadd.f32 %v969, %v988
  %v990 = vadd.f32 %v970, %v988
  %v991 = vadd.f32 %v971, %v988
  %v992 = vadd.f32 %v972, %v988
  %v993 = vadd.f32 %v973, %v988
  %v994 = vadd.f32 %v974, %v988
  %v995 = vadd.f32 %v975, %v988
  %v996 = vadd.f32 %v976, %v988
  %v997 = vadd.f32 %v977, %v988
  %v998 = vadd.f32 %v978, %v988
  %v999 = vadd.f32 %v979, %v988
  %v1000 = vadd.f32 %v980, %v988
  %v1001 = vadd.f32 %v981, %v988
  %v1002 = vadd.f32 %v982, %v988
  %v1003 = vadd.f32 %v983, %v988
  %v1004 = vadd.f32 %v984, %v988
  %v1005 = vld [vmem:[%s3] sm:$0xf]
  %v1006 = vld [vmem:[%s3 + $0x4] sm:$0xf]
  %v1007 = vld [vmem:[%s3 + $0x8] sm:$0xf]
  %v1008 = vld [vmem:[%s3 + $0xc] sm:$0xf]
  %v1009 = vld [vmem:[%s3 + $0x10] sm:$0xf]
  %v1010 = vld [vmem:[%s3 + $0x14] sm:$0xf]
  %v1011 = vld [vmem:[%s3 + $0x18] sm:$0xf]
  %v1012 = vld [vmem:[%s3 + $0x1c] sm:$0xf]
  %v1013 = vld [vmem:[%s3 + $0x20] sm:$0xf]
  %v1014 = vld [vmem:[%s3 + $0x24] sm:$0xf]
  %v1015 = vld [vmem:[%s3 + $0x28] sm:$0xf]
  %v1016 = vld [vmem:[%s3 + $0x2c] sm:$0xf]
  %v1017 = vld [vmem:[%s3 + $0x30] sm:$0xf]
  %v1018 = vld [vmem:[%s3 + $0x34] sm:$0xf]
  %v1019 = vld [vmem:[%s3 + $0x38] sm:$0xf]
  %v1020 = vld [vmem:[%s3 + $0x3c] sm:$0xf]
  %v1021 = vpack.c.bf16 %v990, %v989
  %v1022 = vpack.c.bf16 %v992, %v991
  %v1023 = vpack.c.bf16 %v994, %v993
  %v1024 = vpack.c.bf16 %v996, %v995
  %v1025 = vpack.c.bf16 %v998, %v997
  %v1026 = vpack.c.bf16 %v1000, %v999
  %v1027 = vpack.c.bf16 %v1002, %v1001
  %v1028 = vpack.c.bf16 %v1004, %v1003
  %v1029 = vld [vmem:[%s4] sm:$0xff]
  %v1030 = vld [vmem:[%s4 + $0x8] sm:$0xff]
  %v1031 = vld [vmem:[%s4 + $0x10] sm:$0xff]
  %v1032 = vld [vmem:[%s4 + $0x18] sm:$0xff]
  %v1033 = vld [vmem:[%s4 + $0x20] sm:$0xff]
  %v1034 = vld [vmem:[%s4 + $0x28] sm:$0xff]
  %v1035 = vld [vmem:[%s4 + $0x30] sm:$0xff]
  %v1036 = vld [vmem:[%s4 + $0x38] sm:$0xff]
  %v1037 = vld [vmem:[%s4 + $0x40] sm:$0xff]
  %v1038 = vld [vmem:[%s4 + $0x48] sm:$0xff]
  %v1039 = vld [vmem:[%s4 + $0x50] sm:$0xff]
  %v1040 = vld [vmem:[%s4 + $0x58] sm:$0xff]
  %v1041 = vld [vmem:[%s4 + $0x60] sm:$0xff]
  %v1042 = vld [vmem:[%s4 + $0x68] sm:$0xff]
  %v1043 = vld [vmem:[%s4 + $0x70] sm:$0xff]
  %v1044 = vld [vmem:[%s4 + $0x78] sm:$0xff]
  %v1061 = vunpack.c.l.b16 %v1005
  %v1062 = vunpack.c.l.b16 %v1006
  %v1063 = vunpack.c.l.b16 %v1007
  %v1064 = vunpack.c.l.b16 %v1008
  %v1065 = vunpack.c.l.b16 %v1009
  %v1066 = vunpack.c.l.b16 %v1010
  %v1067 = vunpack.c.l.b16 %v1011
  %v1068 = vunpack.c.l.b16 %v1012
  %v1069 = vunpack.c.l.b16 %v1013
  %v1070 = vunpack.c.l.b16 %v1014
  %v1071 = vunpack.c.l.b16 %v1015
  %v1072 = vunpack.c.l.b16 %v1016
  %v1073 = vunpack.c.l.b16 %v1017
  %v1074 = vunpack.c.l.b16 %v1018
  %v1075 = vunpack.c.l.b16 %v1019
  %v1076 = vunpack.c.l.b16 %v1020
  %v1077 = vpack.c.b16 %v1062, %v1061
  %v1078 = vpack.c.b16 %v1064, %v1063
  %v1079 = vpack.c.b16 %v1066, %v1065
  %v1080 = vpack.c.b16 %v1068, %v1067
  %v1081 = vpack.c.b16 %v1070, %v1069
  %v1082 = vpack.c.b16 %v1072, %v1071
  %v1083 = vpack.c.b16 %v1074, %v1073
  %v1084 = vpack.c.b16 %v1076, %v1075
  %1093 = vmatprep.subr.bf16.mxu0 0
  %1094 = vmatpush1.bf16.msra.mxu0 %v1021
  %1095 = vmatprep.subr.bf16.mxu0 0
  %1096 = vmatpush1.bf16.msra.mxu0 %v1022
  %1097 = vmatprep.subr.bf16.mxu0 0
  %1098 = vmatpush1.bf16.msra.mxu0 %v1023
  %1099 = vmatprep.subr.bf16.mxu0 0
  %1100 = vmatpush1.bf16.msra.mxu0 %v1024
  %1101 = vmatprep.subr.bf16.mxu0 0
  %1102 = vmatpush1.bf16.msra.mxu0 %v1025
  %1103 = vmatprep.subr.bf16.mxu0 0
  %1104 = vmatpush1.bf16.msra.mxu0 %v1026
  %1105 = vmatprep.subr.bf16.mxu0 0
  %1106 = vmatpush1.bf16.msra.mxu0 %v1027
  %1107 = vmatprep.subr.bf16.mxu0 0
  %1108 = vmatpush1.bf16.msra.mxu0 %v1028
  %1109 = vmatprep.subr.bf16.mxu0 0
  %1110 = vmatpush1.bf16.msra.mxu0 0
  %1111 = vmatprep.subr.bf16.mxu0 0
  %1112 = vmatpush1.bf16.msra.mxu0 0
  %1113 = vmatprep.subr.bf16.mxu0 0
  %1114 = vmatpush1.bf16.msra.mxu0 0
  %1115 = vmatprep.subr.bf16.mxu0 0
  %1116 = vmatpush1.bf16.msra.mxu0 0
  %1117 = vmatprep.subr.bf16.mxu0 0
  %1118 = vmatpush1.bf16.msra.mxu0 0
  %1119 = vmatprep.subr.bf16.mxu0 0
  %1120 = vmatpush1.bf16.msra.mxu0 0
  %1121 = vmatprep.subr.bf16.mxu0 0
  %1122 = vmatpush1.bf16.msra.mxu0 0
  %1123 = vmatprep.subr.bf16.mxu0 0
  %1124 = vmatpush1.bf16.msra.mxu0 0
  %1125 = vmatprep.mubr.bf16.mxu0 0
  %1126 = vmatmul.mubr.bf16.gmra.mrb[0].mxu0 %v1077
  %v1127 = vpop.f32.mrb[0].mxu0
  %v1128 = vadd.f32 %v1029, %v1127
  %v1129 = vpop.f32.mrb[0].mxu0
  %v1130 = vpop.f32.mrb[0].mxu0
  %v1131 = vadd.f32 %v1030, %v1130
  %v1132 = vpop.f32.mrb[0].mxu0
  %1133 = vmatprep.mubr.bf16.mxu0 0
  %1134 = vmatmul.mubr.bf16.gmra.mrb[0].mxu0 %v1078
  %v1135 = vpop.f32.mrb[0].mxu0
  %v1136 = vadd.f32 %v1031, %v1135
  %v1137 = vpop.f32.mrb[0].mxu0
  %v1138 = vpop.f32.mrb[0].mxu0
  %v1139 = vadd.f32 %v1032, %v1138
  %v1140 = vpop.f32.mrb[0].mxu0
  %1141 = vmatprep.mubr.bf16.mxu0 0
  %1142 = vmatmul.mubr.bf16.gmra.mrb[0].mxu0 %v1079
  %v1143 = vpop.f32.mrb[0].mxu0
  %v1144 = vadd.f32 %v1033, %v1143
  %v1145 = vpop.f32.mrb[0].mxu0
  %v1146 = vpop.f32.mrb[0].mxu0
  %v1147 = vadd.f32 %v1034, %v1146
  %v1148 = vpop.f32.mrb[0].mxu0
  %1149 = vmatprep.mubr.bf16.mxu0 0
  %1150 = vmatmul.mubr.bf16.gmra.mrb[0].mxu0 %v1080
  %v1151 = vpop.f32.mrb[0].mxu0
  %v1152 = vadd.f32 %v1035, %v1151
  %v1153 = vpop.f32.mrb[0].mxu0
  %v1154 = vpop.f32.mrb[0].mxu0
  %v1155 = vadd.f32 %v1036, %v1154
  %v1156 = vpop.f32.mrb[0].mxu0
  %1157 = vmatprep.mubr.bf16.mxu0 0
  %1158 = vmatmul.mubr.bf16.gmra.mrb[0].mxu0 %v1081
  %v1159 = vpop.f32.mrb[0].mxu0
  %v1160 = vadd.f32 %v1037, %v1159
  %v1161 = vpop.f32.mrb[0].mxu0
  %v1162 = vpop.f32.mrb[0].mxu0
  %v1163 = vadd.f32 %v1038, %v1162
  %v1164 = vpop.f32.mrb[0].mxu0
  %1165 = vmatprep.mubr.bf16.mxu0 0
  %1166 = vmatmul.mubr.bf16.gmra.mrb[0].mxu0 %v1082
  %v1167 = vpop.f32.mrb[0].mxu0
  %v1168 = vadd.f32 %v1039, %v1167
  %v1169 = vpop.f32.mrb[0].mxu0
  %v1170 = vpop.f32.mrb[0].mxu0
  %v1171 = vadd.f32 %v1040, %v1170
  %v1172 = vpop.f32.mrb[0].mxu0
  %1173 = vmatprep.mubr.bf16.mxu0 0
  %1174 = vmatmul.mubr.bf16.gmra.mrb[0].mxu0 %v1083
  %v1175 = vpop.f32.mrb[0].mxu0
  %v1176 = vadd.f32 %v1041, %v1175
  %v1177 = vpop.f32.mrb[0].mxu0
  %v1178 = vpop.f32.mrb[0].mxu0
  %v1179 = vadd.f32 %v1042, %v1178
  %v1180 = vpop.f32.mrb[0].mxu0
  %1181 = vmatprep.mubr.bf16.mxu0 0
  %1182 = vmatmul.mubr.bf16.gmra.mrb[0].mxu0 %v1084
  %v1183 = vpop.f32.mrb[0].mxu0
  %v1184 = vadd.f32 %v1043, %v1183
  %v1185 = vpop.f32.mrb[0].mxu0
  %v1186 = vpop.f32.mrb[0].mxu0
  %v1187 = vadd.f32 %v1044, %v1186
  %v1188 = vpop.f32.mrb[0].mxu0
  %1189 = vdwg.mxu0
  %1206 = vrot.lane.b32.xlu0 %v1128, 32
  %v1207 = vpop.permute.xlu0 %1206
  %1208 = vrot.lane.b32.xlu0 %v1131, 32
  %v1209 = vpop.permute.xlu0 %1208
  %1210 = vrot.lane.b32.xlu0 %v1136, 32
  %v1211 = vpop.permute.xlu0 %1210
  %1212 = vrot.lane.b32.xlu0 %v1139, 32
  %v1213 = vpop.permute.xlu0 %1212
  %1214 = vrot.lane.b32.xlu0 %v1144, 32
  %v1215 = vpop.permute.xlu0 %1214
  %1216 = vrot.lane.b32.xlu0 %v1147, 32
  %v1217 = vpop.permute.xlu0 %1216
  %1218 = vrot.lane.b32.xlu0 %v1152, 32
  %v1219 = vpop.permute.xlu0 %1218
  %1220 = vrot.lane.b32.xlu0 %v1155, 32
  %v1221 = vpop.permute.xlu0 %1220
  %1222 = vrot.lane.b32.xlu0 %v1160, 32
  %v1223 = vpop.permute.xlu0 %1222
  %1224 = vrot.lane.b32.xlu0 %v1163, 32
  %v1225 = vpop.permute.xlu0 %1224
  %1226 = vrot.lane.b32.xlu0 %v1168, 32
  %v1227 = vpop.permute.xlu0 %1226
  %1228 = vrot.lane.b32.xlu0 %v1171, 32
  %v1229 = vpop.permute.xlu0 %1228
  %1230 = vrot.lane.b32.xlu0 %v1176, 32
  %v1231 = vpop.permute.xlu0 %1230
  %1232 = vrot.lane.b32.xlu0 %v1179, 32
  %v1233 = vpop.permute.xlu0 %1232
  %1234 = vrot.lane.b32.xlu0 %v1184, 32
  %v1235 = vpop.permute.xlu0 %1234
  %1236 = vrot.lane.b32.xlu0 %v1187, 32
  %v1237 = vpop.permute.xlu0 %1236
  %v1254 = vmul.f32 %v741, %v1207
  %v1255 = vmul.f32 %v742, %v1209
  %v1256 = vmul.f32 %v743, %v1211
  %v1257 = vmul.f32 %v744, %v1213
  %v1258 = vmul.f32 %v745, %v1215
  %v1259 = vmul.f32 %v746, %v1217
  %v1260 = vmul.f32 %v747, %v1219
  %v1261 = vmul.f32 %v748, %v1221
  %v1262 = vmul.f32 %v749, %v1223
  %v1263 = vmul.f32 %v750, %v1225
  %v1264 = vmul.f32 %v751, %v1227
  %v1265 = vmul.f32 %v752, %v1229
  %v1266 = vmul.f32 %v753, %v1231
  %v1267 = vmul.f32 %v754, %v1233
  %v1268 = vmul.f32 %v755, %v1235
  %v1269 = vmul.f32 %v756, %v1237
  %v1270 = vld [vmem:[%s5] sm:$0xf]
  %v1271 = vld [vmem:[%s5 + $0x4] sm:$0xf]
  %v1272 = vld [vmem:[%s5 + $0x8] sm:$0xf]
  %v1273 = vld [vmem:[%s5 + $0xc] sm:$0xf]
  %v1274 = vpack.c.bf16 %v1255, %v1254
  %v1275 = vpack.c.bf16 %v1257, %v1256
  %v1276 = vpack.c.bf16 %v1259, %v1258
  %v1277 = vpack.c.bf16 %v1261, %v1260
  %v1278 = vpack.c.bf16 %v1263, %v1262
  %v1279 = vpack.c.bf16 %v1265, %v1264
  %v1280 = vpack.c.bf16 %v1267, %v1266
  %v1281 = vpack.c.bf16 %v1269, %v1268
  %1290 = vrot.lane.b32.xlu0 %v1274, 96
  %v1291 = vpop.permute.xlu0 %1290
  %1292 = vrot.lane.b32.xlu0 %v1275, 96
  %v1293 = vpop.permute.xlu0 %1292
  %1294 = vrot.lane.b32.xlu0 %v1276, 96
  %v1295 = vpop.permute.xlu0 %1294
  %1296 = vrot.lane.b32.xlu0 %v1277, 96
  %v1297 = vpop.permute.xlu0 %1296
  %1298 = vrot.lane.b32.xlu0 %v1278, 96
  %v1299 = vpop.permute.xlu0 %1298
  %1300 = vrot.lane.b32.xlu0 %v1279, 96
  %v1301 = vpop.permute.xlu0 %1300
  %1302 = vrot.lane.b32.xlu0 %v1280, 96
  %v1303 = vpop.permute.xlu0 %1302
  %1304 = vrot.lane.b32.xlu0 %v1281, 96
  %v1305 = vpop.permute.xlu0 %1304
  %v1310 = vunpack.c.l.b16 %v1270
  %v1311 = vunpack.c.l.b16 %v1271
  %v1312 = vunpack.c.l.b16 %v1272
  %v1313 = vunpack.c.l.b16 %v1273
  %v1314 = vpack.c.b16 %v1311, %v1310
  %v1315 = vpack.c.b16 %v1313, %v1312
  %v1319 = vsel %vm214, %v1291, 0
  %v1322 = vsel %vm214, %v1293, 0
  %v1325 = vsel %vm214, %v1295, 0
  %v1328 = vsel %vm214, %v1297, 0
  %v1331 = vsel %vm214, %v1299, 0
  %v1334 = vsel %vm214, %v1301, 0
  %v1337 = vsel %vm214, %v1303, 0
  %v1340 = vsel %vm214, %v1305, 0
  %1342 = vmatprep.subr.bf16.mxu0 0
  %1343 = vmatpush1.bf16.msra.mxu0 %v1314
  %1344 = vmatprep.subr.bf16.mxu0 0
  %1345 = vmatpush1.bf16.msra.mxu0 %v1315
  %1346 = vmatprep.subr.bf16.mxu0 0
  %1347 = vmatpush1.bf16.msra.mxu0 0
  %1348 = vmatprep.subr.bf16.mxu0 0
  %1349 = vmatpush1.bf16.msra.mxu0 0
  %1350 = vmatprep.subr.bf16.mxu0 0
  %1351 = vmatpush1.bf16.msra.mxu0 0
  %1352 = vmatprep.subr.bf16.mxu0 0
  %1353 = vmatpush1.bf16.msra.mxu0 0
  %1354 = vmatprep.subr.bf16.mxu0 0
  %1355 = vmatpush1.bf16.msra.mxu0 0
  %1356 = vmatprep.subr.bf16.mxu0 0
  %1357 = vmatpush1.bf16.msra.mxu0 0
  %1358 = vmatprep.subr.bf16.mxu0 0
  %1359 = vmatpush1.bf16.msra.mxu0 0
  %1360 = vmatprep.subr.bf16.mxu0 0
  %1361 = vmatpush1.bf16.msra.mxu0 0
  %1362 = vmatprep.subr.bf16.mxu0 0
  %1363 = vmatpush1.bf16.msra.mxu0 0
  %1364 = vmatprep.subr.bf16.mxu0 0
  %1365 = vmatpush1.bf16.msra.mxu0 0
  %1366 = vmatprep.subr.bf16.mxu0 0
  %1367 = vmatpush1.bf16.msra.mxu0 0
  %1368 = vmatprep.subr.bf16.mxu0 0
  %1369 = vmatpush1.bf16.msra.mxu0 0
  %1370 = vmatprep.subr.bf16.mxu0 0
  %1371 = vmatpush1.bf16.msra.mxu0 0
  %1372 = vmatprep.subr.bf16.mxu0 0
  %1373 = vmatpush1.bf16.msra.mxu0 0
  %1374 = vmatprep.mubr.bf16.mxu0 0
  %1375 = vmatmul.mubr.bf16.gmra.mrb[0].mxu0 %v1319
  %v1376 = vpop.f32.mrb[0].mxu0
  %v1377 = vadd.f32 0.0, %v1376
  %v1378 = vpop.f32.mrb[0].mxu0
  %v1379 = vpop.f32.mrb[0].mxu0
  %v1380 = vadd.f32 0.0, %v1379
  %v1381 = vpop.f32.mrb[0].mxu0
  %1382 = vmatprep.mubr.bf16.mxu0 0
  %1383 = vmatmul.mubr.bf16.gmra.mrb[0].mxu0 %v1322
  %v1384 = vpop.f32.mrb[0].mxu0
  %v1385 = vadd.f32 0.0, %v1384
  %v1386 = vpop.f32.mrb[0].mxu0
  %v1387 = vpop.f32.mrb[0].mxu0
  %v1388 = vadd.f32 0.0, %v1387
  %v1389 = vpop.f32.mrb[0].mxu0
  %1390 = vmatprep.mubr.bf16.mxu0 0
  %1391 = vmatmul.mubr.bf16.gmra.mrb[0].mxu0 %v1325
  %v1392 = vpop.f32.mrb[0].mxu0
  %v1393 = vadd.f32 0.0, %v1392
  %v1394 = vpop.f32.mrb[0].mxu0
  %v1395 = vpop.f32.mrb[0].mxu0
  %v1396 = vadd.f32 0.0, %v1395
  %v1397 = vpop.f32.mrb[0].mxu0
  %1398 = vmatprep.mubr.bf16.mxu0 0
  %1399 = vmatmul.mubr.bf16.gmra.mrb[0].mxu0 %v1328
  %v1400 = vpop.f32.mrb[0].mxu0
  %v1401 = vadd.f32 0.0, %v1400
  %v1402 = vpop.f32.mrb[0].mxu0
  %v1403 = vpop.f32.mrb[0].mxu0
  %v1404 = vadd.f32 0.0, %v1403
  %v1405 = vpop.f32.mrb[0].mxu0
  %1406 = vmatprep.mubr.bf16.mxu0 0
  %1407 = vmatmul.mubr.bf16.gmra.mrb[0].mxu0 %v1331
  %v1408 = vpop.f32.mrb[0].mxu0
  %v1409 = vadd.f32 0.0, %v1408
  %v1410 = vpop.f32.mrb[0].mxu0
  %v1411 = vpop.f32.mrb[0].mxu0
  %v1412 = vadd.f32 0.0, %v1411
  %v1413 = vpop.f32.mrb[0].mxu0
  %1414 = vmatprep.mubr.bf16.mxu0 0
  %1415 = vmatmul.mubr.bf16.gmra.mrb[0].mxu0 %v1334
  %v1416 = vpop.f32.mrb[0].mxu0
  %v1417 = vadd.f32 0.0, %v1416
  %v1418 = vpop.f32.mrb[0].mxu0
  %v1419 = vpop.f32.mrb[0].mxu0
  %v1420 = vadd.f32 0.0, %v1419
  %v1421 = vpop.f32.mrb[0].mxu0
  %1422 = vmatprep.mubr.bf16.mxu0 0
  %1423 = vmatmul.mubr.bf16.gmra.mrb[0].mxu0 %v1337
  %v1424 = vpop.f32.mrb[0].mxu0
  %v1425 = vadd.f32 0.0, %v1424
  %v1426 = vpop.f32.mrb[0].mxu0
  %v1427 = vpop.f32.mrb[0].mxu0
  %v1428 = vadd.f32 0.0, %v1427
  %v1429 = vpop.f32.mrb[0].mxu0
  %1430 = vmatprep.mubr.bf16.mxu0 0
  %1431 = vmatmul.mubr.bf16.gmra.mrb[0].mxu0 %v1340
  %v1432 = vpop.f32.mrb[0].mxu0
  %v1433 = vadd.f32 0.0, %v1432
  %v1434 = vpop.f32.mrb[0].mxu0
  %v1435 = vpop.f32.mrb[0].mxu0
  %v1436 = vadd.f32 0.0, %v1435
  %v1437 = vpop.f32.mrb[0].mxu0
  %1438 = vdwg.mxu0
  %v1439 = vadd.f32 %v146, %v1377
  %v1440 = vadd.f32 %v149, %v1380
  %v1441 = vadd.f32 %v154, %v1385
  %v1442 = vadd.f32 %v157, %v1388
  %v1443 = vadd.f32 %v162, %v1393
  %v1444 = vadd.f32 %v165, %v1396
  %v1445 = vadd.f32 %v170, %v1401
  %v1446 = vadd.f32 %v173, %v1404
  %v1447 = vadd.f32 %v178, %v1409
  %v1448 = vadd.f32 %v181, %v1412
  %v1449 = vadd.f32 %v186, %v1417
  %v1450 = vadd.f32 %v189, %v1420
  %v1451 = vadd.f32 %v194, %v1425
  %v1452 = vadd.f32 %v197, %v1428
  %v1453 = vadd.f32 %v202, %v1433
  %v1454 = vadd.f32 %v205, %v1436
  %v1455 = vlaneseq
  %v1456 = vshrl.u32 %v1455, 7
  %v1457 = vsub.s32 0, %v1456
  %v1458 = vrot.slane %v213, %v1457
  %v1459 = vadd.f32 %v1439, %v1458
  %v1460 = vadd.f32 %v1440, %v1458
  %v1461 = vadd.f32 %v1441, %v1458
  %v1462 = vadd.f32 %v1442, %v1458
  %v1463 = vadd.f32 %v1443, %v1458
  %v1464 = vadd.f32 %v1444, %v1458
  %v1465 = vadd.f32 %v1445, %v1458
  %v1466 = vadd.f32 %v1446, %v1458
  %v1467 = vadd.f32 %v1447, %v1458
  %v1468 = vadd.f32 %v1448, %v1458
  %v1469 = vadd.f32 %v1449, %v1458
  %v1470 = vadd.f32 %v1450, %v1458
  %v1471 = vadd.f32 %v1451, %v1458
  %v1472 = vadd.f32 %v1452, %v1458
  %v1473 = vadd.f32 %v1453, %v1458
  %v1474 = vadd.f32 %v1454, %v1458
  %v1475 = vld [vmem:[%s8 + $0xa] sm:$0x1]
  %v1476 = vld [vmem:[%s8 + $0xb] sm:$0x1]
  %v1477 = vld [vmem:[%s8 + $0xc] sm:$0x1]
  %v1478 = vld [vmem:[%s8 + $0xd] sm:$0x1]
  %v1479 = vld [vmem:[%s8 + $0xe] sm:$0x1]
  %v1480 = vld [vmem:[%s8 + $0xf] sm:$0x1]
  %v1481 = vsel %vm214, %v1459, 0.0
  %1482 = vadd.xlane.f32.xlu0 %v1481
  %v1483 = vpop.xlane.xlu0 %1482
  %v1484 = vsel %vm214, %v1460, 0.0
  %1485 = vadd.xlane.f32.xlu0 %v1484
  %v1486 = vpop.xlane.xlu0 %1485
  %v1487 = vsel %vm214, %v1461, 0.0
  %1488 = vadd.xlane.f32.xlu0 %v1487
  %v1489 = vpop.xlane.xlu0 %1488
  %v1490 = vsel %vm214, %v1462, 0.0
  %1491 = vadd.xlane.f32.xlu0 %v1490
  %v1492 = vpop.xlane.xlu0 %1491
  %v1493 = vsel %vm214, %v1463, 0.0
  %1494 = vadd.xlane.f32.xlu0 %v1493
  %v1495 = vpop.xlane.xlu0 %1494
  %v1496 = vsel %vm214, %v1464, 0.0
  %1497 = vadd.xlane.f32.xlu0 %v1496
  %v1498 = vpop.xlane.xlu0 %1497
  %v1499 = vsel %vm214, %v1465, 0.0
  %1500 = vadd.xlane.f32.xlu0 %v1499
  %v1501 = vpop.xlane.xlu0 %1500
  %v1502 = vsel %vm214, %v1466, 0.0
  %1503 = vadd.xlane.f32.xlu0 %v1502
  %v1504 = vpop.xlane.xlu0 %1503
  %v1505 = vsel %vm214, %v1467, 0.0
  %1506 = vadd.xlane.f32.xlu0 %v1505
  %v1507 = vpop.xlane.xlu0 %1506
  %v1508 = vsel %vm214, %v1468, 0.0
  %1509 = vadd.xlane.f32.xlu0 %v1508
  %v1510 = vpop.xlane.xlu0 %1509
  %v1511 = vsel %vm214, %v1469, 0.0
  %1512 = vadd.xlane.f32.xlu0 %v1511
  %v1513 = vpop.xlane.xlu0 %1512
  %v1514 = vsel %vm214, %v1470, 0.0
  %1515 = vadd.xlane.f32.xlu0 %v1514
  %v1516 = vpop.xlane.xlu0 %1515
  %v1517 = vsel %vm214, %v1471, 0.0
  %1518 = vadd.xlane.f32.xlu0 %v1517
  %v1519 = vpop.xlane.xlu0 %1518
  %v1520 = vsel %vm214, %v1472, 0.0
  %1521 = vadd.xlane.f32.xlu0 %v1520
  %v1522 = vpop.xlane.xlu0 %1521
  %v1523 = vsel %vm214, %v1473, 0.0
  %1524 = vadd.xlane.f32.xlu0 %v1523
  %v1525 = vpop.xlane.xlu0 %1524
  %v1526 = vsel %vm214, %v1474, 0.0
  %1527 = vadd.xlane.f32.xlu0 %v1526
  %v1528 = vpop.xlane.xlu0 %1527
  %v1529 = vmul.f32 %v1483, %v263
  %v1530 = vmul.f32 %v1486, %v263
  %v1531 = vmul.f32 %v1489, %v263
  %v1532 = vmul.f32 %v1492, %v263
  %v1533 = vmul.f32 %v1495, %v263
  %v1534 = vmul.f32 %v1498, %v263
  %v1535 = vmul.f32 %v1501, %v263
  %v1536 = vmul.f32 %v1504, %v263
  %v1537 = vmul.f32 %v1507, %v263
  %v1538 = vmul.f32 %v1510, %v263
  %v1539 = vmul.f32 %v1513, %v263
  %v1540 = vmul.f32 %v1516, %v263
  %v1541 = vmul.f32 %v1519, %v263
  %v1542 = vmul.f32 %v1522, %v263
  %v1543 = vmul.f32 %v1525, %v263
  %v1544 = vmul.f32 %v1528, %v263
  %v1545 = vsub.f32 %v1459, %v1529
  %v1546 = vsub.f32 %v1460, %v1530
  %v1547 = vsub.f32 %v1461, %v1531
  %v1548 = vsub.f32 %v1462, %v1532
  %v1549 = vsub.f32 %v1463, %v1533
  %v1550 = vsub.f32 %v1464, %v1534
  %v1551 = vsub.f32 %v1465, %v1535
  %v1552 = vsub.f32 %v1466, %v1536
  %v1553 = vsub.f32 %v1467, %v1537
  %v1554 = vsub.f32 %v1468, %v1538
  %v1555 = vsub.f32 %v1469, %v1539
  %v1556 = vsub.f32 %v1470, %v1540
  %v1557 = vsub.f32 %v1471, %v1541
  %v1558 = vsub.f32 %v1472, %v1542
  %v1559 = vsub.f32 %v1473, %v1543
  %v1560 = vsub.f32 %v1474, %v1544
  %v1561 = vmul.f32 %v1545, %v1545
  %v1562 = vmul.f32 %v1546, %v1546
  %v1563 = vmul.f32 %v1547, %v1547
  %v1564 = vmul.f32 %v1548, %v1548
  %v1565 = vmul.f32 %v1549, %v1549
  %v1566 = vmul.f32 %v1550, %v1550
  %v1567 = vmul.f32 %v1551, %v1551
  %v1568 = vmul.f32 %v1552, %v1552
  %v1569 = vmul.f32 %v1553, %v1553
  %v1570 = vmul.f32 %v1554, %v1554
  %v1571 = vmul.f32 %v1555, %v1555
  %v1572 = vmul.f32 %v1556, %v1556
  %v1573 = vmul.f32 %v1557, %v1557
  %v1574 = vmul.f32 %v1558, %v1558
  %v1575 = vmul.f32 %v1559, %v1559
  %v1576 = vmul.f32 %v1560, %v1560
  %v1577 = vsel %vm214, %v1561, 0.0
  %1578 = vadd.xlane.f32.xlu0 %v1577
  %v1579 = vpop.xlane.xlu0 %1578
  %v1580 = vsel %vm214, %v1562, 0.0
  %1581 = vadd.xlane.f32.xlu0 %v1580
  %v1582 = vpop.xlane.xlu0 %1581
  %v1583 = vsel %vm214, %v1563, 0.0
  %1584 = vadd.xlane.f32.xlu0 %v1583
  %v1585 = vpop.xlane.xlu0 %1584
  %v1586 = vsel %vm214, %v1564, 0.0
  %1587 = vadd.xlane.f32.xlu0 %v1586
  %v1588 = vpop.xlane.xlu0 %1587
  %v1589 = vsel %vm214, %v1565, 0.0
  %1590 = vadd.xlane.f32.xlu0 %v1589
  %v1591 = vpop.xlane.xlu0 %1590
  %v1592 = vsel %vm214, %v1566, 0.0
  %1593 = vadd.xlane.f32.xlu0 %v1592
  %v1594 = vpop.xlane.xlu0 %1593
  %v1595 = vsel %vm214, %v1567, 0.0
  %1596 = vadd.xlane.f32.xlu0 %v1595
  %v1597 = vpop.xlane.xlu0 %1596
  %v1598 = vsel %vm214, %v1568, 0.0
  %1599 = vadd.xlane.f32.xlu0 %v1598
  %v1600 = vpop.xlane.xlu0 %1599
  %v1601 = vsel %vm214, %v1569, 0.0
  %1602 = vadd.xlane.f32.xlu0 %v1601
  %v1603 = vpop.xlane.xlu0 %1602
  %v1604 = vsel %vm214, %v1570, 0.0
  %1605 = vadd.xlane.f32.xlu0 %v1604
  %v1606 = vpop.xlane.xlu0 %1605
  %v1607 = vsel %vm214, %v1571, 0.0
  %1608 = vadd.xlane.f32.xlu0 %v1607
  %v1609 = vpop.xlane.xlu0 %1608
  %v1610 = vsel %vm214, %v1572, 0.0
  %1611 = vadd.xlane.f32.xlu0 %v1610
  %v1612 = vpop.xlane.xlu0 %1611
  %v1613 = vsel %vm214, %v1573, 0.0
  %1614 = vadd.xlane.f32.xlu0 %v1613
  %v1615 = vpop.xlane.xlu0 %1614
  %v1616 = vsel %vm214, %v1574, 0.0
  %1617 = vadd.xlane.f32.xlu0 %v1616
  %v1618 = vpop.xlane.xlu0 %1617
  %v1619 = vsel %vm214, %v1575, 0.0
  %1620 = vadd.xlane.f32.xlu0 %v1619
  %v1621 = vpop.xlane.xlu0 %1620
  %v1622 = vsel %vm214, %v1576, 0.0
  %1623 = vadd.xlane.f32.xlu0 %v1622
  %v1624 = vpop.xlane.xlu0 %1623
  %v1625 = vmul.f32 %v1579, %v263
  %v1626 = vmul.f32 %v1582, %v263
  %v1627 = vmul.f32 %v1585, %v263
  %v1628 = vmul.f32 %v1588, %v263
  %v1629 = vmul.f32 %v1591, %v263
  %v1630 = vmul.f32 %v1594, %v263
  %v1631 = vmul.f32 %v1597, %v263
  %v1632 = vmul.f32 %v1600, %v263
  %v1633 = vmul.f32 %v1603, %v263
  %v1634 = vmul.f32 %v1606, %v263
  %v1635 = vmul.f32 %v1609, %v263
  %v1636 = vmul.f32 %v1612, %v263
  %v1637 = vmul.f32 %v1615, %v263
  %v1638 = vmul.f32 %v1618, %v263
  %v1639 = vmul.f32 %v1621, %v263
  %v1640 = vmul.f32 %v1624, %v263
  %v1641 = vadd.f32 %v1625, 1e-05
  %v1642 = vadd.f32 %v1626, 1e-05
  %v1643 = vadd.f32 %v1627, 1e-05
  %v1644 = vadd.f32 %v1628, 1e-05
  %v1645 = vadd.f32 %v1629, 1e-05
  %v1646 = vadd.f32 %v1630, 1e-05
  %v1647 = vadd.f32 %v1631, 1e-05
  %v1648 = vadd.f32 %v1632, 1e-05
  %v1649 = vadd.f32 %v1633, 1e-05
  %v1650 = vadd.f32 %v1634, 1e-05
  %v1651 = vadd.f32 %v1635, 1e-05
  %v1652 = vadd.f32 %v1636, 1e-05
  %v1653 = vadd.f32 %v1637, 1e-05
  %v1654 = vadd.f32 %v1638, 1e-05
  %v1655 = vadd.f32 %v1639, 1e-05
  %v1656 = vadd.f32 %v1640, 1e-05
  %v1657 = vrsqrt.pop %v1641
  %v1658 = vrsqrt.pop %v1642
  %v1659 = vrsqrt.pop %v1643
  %v1660 = vrsqrt.pop %v1644
  %v1661 = vrsqrt.pop %v1645
  %v1662 = vrsqrt.pop %v1646
  %v1663 = vrsqrt.pop %v1647
  %v1664 = vrsqrt.pop %v1648
  %v1665 = vrsqrt.pop %v1649
  %v1666 = vrsqrt.pop %v1650
  %v1667 = vrsqrt.pop %v1651
  %v1668 = vrsqrt.pop %v1652
  %v1669 = vrsqrt.pop %v1653
  %v1670 = vrsqrt.pop %v1654
  %v1671 = vrsqrt.pop %v1655
  %v1672 = vrsqrt.pop %v1656
  %v1673 = vmul.f32 %v1545, %v1657
  %v1674 = vmul.f32 %v1546, %v1658
  %v1675 = vmul.f32 %v1547, %v1659
  %v1676 = vmul.f32 %v1548, %v1660
  %v1677 = vmul.f32 %v1549, %v1661
  %v1678 = vmul.f32 %v1550, %v1662
  %v1679 = vmul.f32 %v1551, %v1663
  %v1680 = vmul.f32 %v1552, %v1664
  %v1681 = vmul.f32 %v1553, %v1665
  %v1682 = vmul.f32 %v1554, %v1666
  %v1683 = vmul.f32 %v1555, %v1667
  %v1684 = vmul.f32 %v1556, %v1668
  %v1685 = vmul.f32 %v1557, %v1669
  %v1686 = vmul.f32 %v1558, %v1670
  %v1687 = vmul.f32 %v1559, %v1671
  %v1688 = vmul.f32 %v1560, %v1672
  %v1689 = vlaneseq
  %v1690 = vshrl.u32 %v1689, 7
  %v1691 = vsub.s32 0, %v1690
  %v1692 = vrot.slane %v1475, %v1691
  %v1693 = vmul.f32 %v1673, %v1692
  %v1694 = vmul.f32 %v1674, %v1692
  %v1695 = vmul.f32 %v1675, %v1692
  %v1696 = vmul.f32 %v1676, %v1692
  %v1697 = vmul.f32 %v1677, %v1692
  %v1698 = vmul.f32 %v1678, %v1692
  %v1699 = vmul.f32 %v1679, %v1692
  %v1700 = vmul.f32 %v1680, %v1692
  %v1701 = vmul.f32 %v1681, %v1692
  %v1702 = vmul.f32 %v1682, %v1692
  %v1703 = vmul.f32 %v1683, %v1692
  %v1704 = vmul.f32 %v1684, %v1692
  %v1705 = vmul.f32 %v1685, %v1692
  %v1706 = vmul.f32 %v1686, %v1692
  %v1707 = vmul.f32 %v1687, %v1692
  %v1708 = vmul.f32 %v1688, %v1692
  %v1709 = vlaneseq
  %v1710 = vshrl.u32 %v1709, 7
  %v1711 = vsub.s32 0, %v1710
  %v1712 = vrot.slane %v1476, %v1711
  %v1713 = vadd.f32 %v1693, %v1712
  %v1714 = vadd.f32 %v1694, %v1712
  %v1715 = vadd.f32 %v1695, %v1712
  %v1716 = vadd.f32 %v1696, %v1712
  %v1717 = vadd.f32 %v1697, %v1712
  %v1718 = vadd.f32 %v1698, %v1712
  %v1719 = vadd.f32 %v1699, %v1712
  %v1720 = vadd.f32 %v1700, %v1712
  %v1721 = vadd.f32 %v1701, %v1712
  %v1722 = vadd.f32 %v1702, %v1712
  %v1723 = vadd.f32 %v1703, %v1712
  %v1724 = vadd.f32 %v1704, %v1712
  %v1725 = vadd.f32 %v1705, %v1712
  %v1726 = vadd.f32 %v1706, %v1712
  %v1727 = vadd.f32 %v1707, %v1712
  %v1728 = vadd.f32 %v1708, %v1712
  %s1729 = scalar_lea.vmem %s2, 16
  %v1730 = vld [vmem:[%s1729] sm:$0xf]
  %v1731 = vld [vmem:[%s1729 + $0x4] sm:$0xf]
  %v1732 = vld [vmem:[%s1729 + $0x8] sm:$0xf]
  %v1733 = vld [vmem:[%s1729 + $0xc] sm:$0xf]
  %v1734 = vpack.c.bf16 %v1714, %v1713
  %v1735 = vpack.c.bf16 %v1716, %v1715
  %v1736 = vpack.c.bf16 %v1718, %v1717
  %v1737 = vpack.c.bf16 %v1720, %v1719
  %v1738 = vpack.c.bf16 %v1722, %v1721
  %v1739 = vpack.c.bf16 %v1724, %v1723
  %v1740 = vpack.c.bf16 %v1726, %v1725
  %v1741 = vpack.c.bf16 %v1728, %v1727
  %v1742 = vlaneseq
  %v1743 = vshrl.u32 %v1742, 7
  %v1744 = vsub.s32 0, %v1743
  %v1745 = vrot.slane %v1477, %v1744
  %v1750 = vunpack.c.l.b16 %v1730
  %v1751 = vunpack.c.l.b16 %v1731
  %v1752 = vunpack.c.l.b16 %v1732
  %v1753 = vunpack.c.l.b16 %v1733
  %v1754 = vpack.c.b16 %v1751, %v1750
  %v1755 = vpack.c.b16 %v1753, %v1752
  %v1759 = vsel %vm214, %v1734, 0
  %v1762 = vsel %vm214, %v1735, 0
  %v1765 = vsel %vm214, %v1736, 0
  %v1768 = vsel %vm214, %v1737, 0
  %v1771 = vsel %vm214, %v1738, 0
  %v1774 = vsel %vm214, %v1739, 0
  %v1777 = vsel %vm214, %v1740, 0
  %v1780 = vsel %vm214, %v1741, 0
  %1782 = vmatprep.subr.bf16.mxu0 0
  %1783 = vmatpush1.bf16.msra.mxu0 %v1754
  %1784 = vmatprep.subr.bf16.mxu0 0
  %1785 = vmatpush1.bf16.msra.mxu0 %v1755
  %1786 = vmatprep.subr.bf16.mxu0 0
  %1787 = vmatpush1.bf16.msra.mxu0 0
  %1788 = vmatprep.subr.bf16.mxu0 0
  %1789 = vmatpush1.bf16.msra.mxu0 0
  %1790 = vmatprep.subr.bf16.mxu0 0
  %1791 = vmatpush1.bf16.msra.mxu0 0
  %1792 = vmatprep.subr.bf16.mxu0 0
  %1793 = vmatpush1.bf16.msra.mxu0 0
  %1794 = vmatprep.subr.bf16.mxu0 0
  %1795 = vmatpush1.bf16.msra.mxu0 0
  %1796 = vmatprep.subr.bf16.mxu0 0
  %1797 = vmatpush1.bf16.msra.mxu0 0
  %1798 = vmatprep.subr.bf16.mxu0 0
  %1799 = vmatpush1.bf16.msra.mxu0 0
  %1800 = vmatprep.subr.bf16.mxu0 0
  %1801 = vmatpush1.bf16.msra.mxu0 0
  %1802 = vmatprep.subr.bf16.mxu0 0
  %1803 = vmatpush1.bf16.msra.mxu0 0
  %1804 = vmatprep.subr.bf16.mxu0 0
  %1805 = vmatpush1.bf16.msra.mxu0 0
  %1806 = vmatprep.subr.bf16.mxu0 0
  %1807 = vmatpush1.bf16.msra.mxu0 0
  %1808 = vmatprep.subr.bf16.mxu0 0
  %1809 = vmatpush1.bf16.msra.mxu0 0
  %1810 = vmatprep.subr.bf16.mxu0 0
  %1811 = vmatpush1.bf16.msra.mxu0 0
  %1812 = vmatprep.subr.bf16.mxu0 0
  %1813 = vmatpush1.bf16.msra.mxu0 0
  %1814 = vmatprep.mubr.bf16.mxu0 0
  %1815 = vmatmul.mubr.bf16.gmra.mrb[0].mxu0 %v1759
  %v1816 = vpop.f32.mrb[0].mxu0
  %v1817 = vadd.f32 %v1745, %v1816
  %v1818 = vpop.f32.mrb[0].mxu0
  %v1819 = vpop.f32.mrb[0].mxu0
  %v1820 = vadd.f32 %v1745, %v1819
  %v1821 = vpop.f32.mrb[0].mxu0
  %1822 = vmatprep.mubr.bf16.mxu0 0
  %1823 = vmatmul.mubr.bf16.gmra.mrb[0].mxu0 %v1762
  %v1824 = vpop.f32.mrb[0].mxu0
  %v1825 = vadd.f32 %v1745, %v1824
  %v1826 = vpop.f32.mrb[0].mxu0
  %v1827 = vpop.f32.mrb[0].mxu0
  %v1828 = vadd.f32 %v1745, %v1827
  %v1829 = vpop.f32.mrb[0].mxu0
  %1830 = vmatprep.mubr.bf16.mxu0 0
  %1831 = vmatmul.mubr.bf16.gmra.mrb[0].mxu0 %v1765
  %v1832 = vpop.f32.mrb[0].mxu0
  %v1833 = vadd.f32 %v1745, %v1832
  %v1834 = vpop.f32.mrb[0].mxu0
  %v1835 = vpop.f32.mrb[0].mxu0
  %v1836 = vadd.f32 %v1745, %v1835
  %v1837 = vpop.f32.mrb[0].mxu0
  %1838 = vmatprep.mubr.bf16.mxu0 0
  %1839 = vmatmul.mubr.bf16.gmra.mrb[0].mxu0 %v1768
  %v1840 = vpop.f32.mrb[0].mxu0
  %v1841 = vadd.f32 %v1745, %v1840
  %v1842 = vpop.f32.mrb[0].mxu0
  %v1843 = vpop.f32.mrb[0].mxu0
  %v1844 = vadd.f32 %v1745, %v1843
  %v1845 = vpop.f32.mrb[0].mxu0
  %1846 = vmatprep.mubr.bf16.mxu0 0
  %1847 = vmatmul.mubr.bf16.gmra.mrb[0].mxu0 %v1771
  %v1848 = vpop.f32.mrb[0].mxu0
  %v1849 = vadd.f32 %v1745, %v1848
  %v1850 = vpop.f32.mrb[0].mxu0
  %v1851 = vpop.f32.mrb[0].mxu0
  %v1852 = vadd.f32 %v1745, %v1851
  %v1853 = vpop.f32.mrb[0].mxu0
  %1854 = vmatprep.mubr.bf16.mxu0 0
  %1855 = vmatmul.mubr.bf16.gmra.mrb[0].mxu0 %v1774
  %v1856 = vpop.f32.mrb[0].mxu0
  %v1857 = vadd.f32 %v1745, %v1856
  %v1858 = vpop.f32.mrb[0].mxu0
  %v1859 = vpop.f32.mrb[0].mxu0
  %v1860 = vadd.f32 %v1745, %v1859
  %v1861 = vpop.f32.mrb[0].mxu0
  %1862 = vmatprep.mubr.bf16.mxu0 0
  %1863 = vmatmul.mubr.bf16.gmra.mrb[0].mxu0 %v1777
  %v1864 = vpop.f32.mrb[0].mxu0
  %v1865 = vadd.f32 %v1745, %v1864
  %v1866 = vpop.f32.mrb[0].mxu0
  %v1867 = vpop.f32.mrb[0].mxu0
  %v1868 = vadd.f32 %v1745, %v1867
  %v1869 = vpop.f32.mrb[0].mxu0
  %1870 = vmatprep.mubr.bf16.mxu0 0
  %1871 = vmatmul.mubr.bf16.gmra.mrb[0].mxu0 %v1780
  %v1872 = vpop.f32.mrb[0].mxu0
  %v1873 = vadd.f32 %v1745, %v1872
  %v1874 = vpop.f32.mrb[0].mxu0
  %v1875 = vpop.f32.mrb[0].mxu0
  %v1876 = vadd.f32 %v1745, %v1875
  %v1877 = vpop.f32.mrb[0].mxu0
  %1878 = vdwg.mxu0
  %v1879 = vmul.f32 %v1817, 0.5
  %v1880 = vmul.f32 %v1820, 0.5
  %v1881 = vmul.f32 %v1825, 0.5
  %v1882 = vmul.f32 %v1828, 0.5
  %v1883 = vmul.f32 %v1833, 0.5
  %v1884 = vmul.f32 %v1836, 0.5
  %v1885 = vmul.f32 %v1841, 0.5
  %v1886 = vmul.f32 %v1844, 0.5
  %v1887 = vmul.f32 %v1849, 0.5
  %v1888 = vmul.f32 %v1852, 0.5
  %v1889 = vmul.f32 %v1857, 0.5
  %v1890 = vmul.f32 %v1860, 0.5
  %v1891 = vmul.f32 %v1865, 0.5
  %v1892 = vmul.f32 %v1868, 0.5
  %v1893 = vmul.f32 %v1873, 0.5
  %v1894 = vmul.f32 %v1876, 0.5
  %v1895 = vmul.f32 %v1817, 0.044715
  %v1896 = vmul.f32 %v1820, 0.044715
  %v1897 = vmul.f32 %v1825, 0.044715
  %v1898 = vmul.f32 %v1828, 0.044715
  %v1899 = vmul.f32 %v1833, 0.044715
  %v1900 = vmul.f32 %v1836, 0.044715
  %v1901 = vmul.f32 %v1841, 0.044715
  %v1902 = vmul.f32 %v1844, 0.044715
  %v1903 = vmul.f32 %v1849, 0.044715
  %v1904 = vmul.f32 %v1852, 0.044715
  %v1905 = vmul.f32 %v1857, 0.044715
  %v1906 = vmul.f32 %v1860, 0.044715
  %v1907 = vmul.f32 %v1865, 0.044715
  %v1908 = vmul.f32 %v1868, 0.044715
  %v1909 = vmul.f32 %v1873, 0.044715
  %v1910 = vmul.f32 %v1876, 0.044715
  %v1911 = vmul.f32 %v1895, %v1817
  %v1912 = vmul.f32 %v1896, %v1820
  %v1913 = vmul.f32 %v1897, %v1825
  %v1914 = vmul.f32 %v1898, %v1828
  %v1915 = vmul.f32 %v1899, %v1833
  %v1916 = vmul.f32 %v1900, %v1836
  %v1917 = vmul.f32 %v1901, %v1841
  %v1918 = vmul.f32 %v1902, %v1844
  %v1919 = vmul.f32 %v1903, %v1849
  %v1920 = vmul.f32 %v1904, %v1852
  %v1921 = vmul.f32 %v1905, %v1857
  %v1922 = vmul.f32 %v1906, %v1860
  %v1923 = vmul.f32 %v1907, %v1865
  %v1924 = vmul.f32 %v1908, %v1868
  %v1925 = vmul.f32 %v1909, %v1873
  %v1926 = vmul.f32 %v1910, %v1876
  %v1927 = vmul.f32 %v1911, %v1817
  %v1928 = vmul.f32 %v1912, %v1820
  %v1929 = vmul.f32 %v1913, %v1825
  %v1930 = vmul.f32 %v1914, %v1828
  %v1931 = vmul.f32 %v1915, %v1833
  %v1932 = vmul.f32 %v1916, %v1836
  %v1933 = vmul.f32 %v1917, %v1841
  %v1934 = vmul.f32 %v1918, %v1844
  %v1935 = vmul.f32 %v1919, %v1849
  %v1936 = vmul.f32 %v1920, %v1852
  %v1937 = vmul.f32 %v1921, %v1857
  %v1938 = vmul.f32 %v1922, %v1860
  %v1939 = vmul.f32 %v1923, %v1865
  %v1940 = vmul.f32 %v1924, %v1868
  %v1941 = vmul.f32 %v1925, %v1873
  %v1942 = vmul.f32 %v1926, %v1876
  %v1943 = vadd.f32 %v1817, %v1927
  %v1944 = vadd.f32 %v1820, %v1928
  %v1945 = vadd.f32 %v1825, %v1929
  %v1946 = vadd.f32 %v1828, %v1930
  %v1947 = vadd.f32 %v1833, %v1931
  %v1948 = vadd.f32 %v1836, %v1932
  %v1949 = vadd.f32 %v1841, %v1933
  %v1950 = vadd.f32 %v1844, %v1934
  %v1951 = vadd.f32 %v1849, %v1935
  %v1952 = vadd.f32 %v1852, %v1936
  %v1953 = vadd.f32 %v1857, %v1937
  %v1954 = vadd.f32 %v1860, %v1938
  %v1955 = vadd.f32 %v1865, %v1939
  %v1956 = vadd.f32 %v1868, %v1940
  %v1957 = vadd.f32 %v1873, %v1941
  %v1958 = vadd.f32 %v1876, %v1942
  %v1959 = vmul.f32 %v1943, 0.7978846
  %v1960 = vmul.f32 %v1944, 0.7978846
  %v1961 = vmul.f32 %v1945, 0.7978846
  %v1962 = vmul.f32 %v1946, 0.7978846
  %v1963 = vmul.f32 %v1947, 0.7978846
  %v1964 = vmul.f32 %v1948, 0.7978846
  %v1965 = vmul.f32 %v1949, 0.7978846
  %v1966 = vmul.f32 %v1950, 0.7978846
  %v1967 = vmul.f32 %v1951, 0.7978846
  %v1968 = vmul.f32 %v1952, 0.7978846
  %v1969 = vmul.f32 %v1953, 0.7978846
  %v1970 = vmul.f32 %v1954, 0.7978846
  %v1971 = vmul.f32 %v1955, 0.7978846
  %v1972 = vmul.f32 %v1956, 0.7978846
  %v1973 = vmul.f32 %v1957, 0.7978846
  %v1974 = vmul.f32 %v1958, 0.7978846
  %v1975 = vtanh.pop %v1959
  %v1976 = vtanh.pop %v1960
  %v1977 = vtanh.pop %v1961
  %v1978 = vtanh.pop %v1962
  %v1979 = vtanh.pop %v1963
  %v1980 = vtanh.pop %v1964
  %v1981 = vtanh.pop %v1965
  %v1982 = vtanh.pop %v1966
  %v1983 = vtanh.pop %v1967
  %v1984 = vtanh.pop %v1968
  %v1985 = vtanh.pop %v1969
  %v1986 = vtanh.pop %v1970
  %v1987 = vtanh.pop %v1971
  %v1988 = vtanh.pop %v1972
  %v1989 = vtanh.pop %v1973
  %v1990 = vtanh.pop %v1974
  %v1991 = vadd.f32 %v1975, 1.0
  %v1992 = vadd.f32 %v1976, 1.0
  %v1993 = vadd.f32 %v1977, 1.0
  %v1994 = vadd.f32 %v1978, 1.0
  %v1995 = vadd.f32 %v1979, 1.0
  %v1996 = vadd.f32 %v1980, 1.0
  %v1997 = vadd.f32 %v1981, 1.0
  %v1998 = vadd.f32 %v1982, 1.0
  %v1999 = vadd.f32 %v1983, 1.0
  %v2000 = vadd.f32 %v1984, 1.0
  %v2001 = vadd.f32 %v1985, 1.0
  %v2002 = vadd.f32 %v1986, 1.0
  %v2003 = vadd.f32 %v1987, 1.0
  %v2004 = vadd.f32 %v1988, 1.0
  %v2005 = vadd.f32 %v1989, 1.0
  %v2006 = vadd.f32 %v1990, 1.0
  %v2007 = vmul.f32 %v1879, %v1991
  %v2008 = vmul.f32 %v1880, %v1992
  %v2009 = vmul.f32 %v1881, %v1993
  %v2010 = vmul.f32 %v1882, %v1994
  %v2011 = vmul.f32 %v1883, %v1995
  %v2012 = vmul.f32 %v1884, %v1996
  %v2013 = vmul.f32 %v1885, %v1997
  %v2014 = vmul.f32 %v1886, %v1998
  %v2015 = vmul.f32 %v1887, %v1999
  %v2016 = vmul.f32 %v1888, %v2000
  %v2017 = vmul.f32 %v1889, %v2001
  %v2018 = vmul.f32 %v1890, %v2002
  %v2019 = vmul.f32 %v1891, %v2003
  %v2020 = vmul.f32 %v1892, %v2004
  %v2021 = vmul.f32 %v1893, %v2005
  %v2022 = vmul.f32 %v1894, %v2006
  %v2023 = vsel %vm214, %v2007, 0.0
  %2024 = vadd.xlane.f32.xlu0 %v2023
  %v2025 = vpop.xlane.xlu0 %2024
  %v2026 = vsel %vm214, %v2008, 0.0
  %2027 = vadd.xlane.f32.xlu0 %v2026
  %v2028 = vpop.xlane.xlu0 %2027
  %v2029 = vsel %vm214, %v2009, 0.0
  %2030 = vadd.xlane.f32.xlu0 %v2029
  %v2031 = vpop.xlane.xlu0 %2030
  %v2032 = vsel %vm214, %v2010, 0.0
  %2033 = vadd.xlane.f32.xlu0 %v2032
  %v2034 = vpop.xlane.xlu0 %2033
  %v2035 = vsel %vm214, %v2011, 0.0
  %2036 = vadd.xlane.f32.xlu0 %v2035
  %v2037 = vpop.xlane.xlu0 %2036
  %v2038 = vsel %vm214, %v2012, 0.0
  %2039 = vadd.xlane.f32.xlu0 %v2038
  %v2040 = vpop.xlane.xlu0 %2039
  %v2041 = vsel %vm214, %v2013, 0.0
  %2042 = vadd.xlane.f32.xlu0 %v2041
  %v2043 = vpop.xlane.xlu0 %2042
  %v2044 = vsel %vm214, %v2014, 0.0
  %2045 = vadd.xlane.f32.xlu0 %v2044
  %v2046 = vpop.xlane.xlu0 %2045
  %v2047 = vsel %vm214, %v2015, 0.0
  %2048 = vadd.xlane.f32.xlu0 %v2047
  %v2049 = vpop.xlane.xlu0 %2048
  %v2050 = vsel %vm214, %v2016, 0.0
  %2051 = vadd.xlane.f32.xlu0 %v2050
  %v2052 = vpop.xlane.xlu0 %2051
  %v2053 = vsel %vm214, %v2017, 0.0
  %2054 = vadd.xlane.f32.xlu0 %v2053
  %v2055 = vpop.xlane.xlu0 %2054
  %v2056 = vsel %vm214, %v2018, 0.0
  %2057 = vadd.xlane.f32.xlu0 %v2056
  %v2058 = vpop.xlane.xlu0 %2057
  %v2059 = vsel %vm214, %v2019, 0.0
  %2060 = vadd.xlane.f32.xlu0 %v2059
  %v2061 = vpop.xlane.xlu0 %2060
  %v2062 = vsel %vm214, %v2020, 0.0
  %2063 = vadd.xlane.f32.xlu0 %v2062
  %v2064 = vpop.xlane.xlu0 %2063
  %v2065 = vsel %vm214, %v2021, 0.0
  %2066 = vadd.xlane.f32.xlu0 %v2065
  %v2067 = vpop.xlane.xlu0 %2066
  %v2068 = vsel %vm214, %v2022, 0.0
  %2069 = vadd.xlane.f32.xlu0 %v2068
  %v2070 = vpop.xlane.xlu0 %2069
  %v2071 = vmul.f32 %v2025, %v263
  %v2072 = vmul.f32 %v2028, %v263
  %v2073 = vmul.f32 %v2031, %v263
  %v2074 = vmul.f32 %v2034, %v263
  %v2075 = vmul.f32 %v2037, %v263
  %v2076 = vmul.f32 %v2040, %v263
  %v2077 = vmul.f32 %v2043, %v263
  %v2078 = vmul.f32 %v2046, %v263
  %v2079 = vmul.f32 %v2049, %v263
  %v2080 = vmul.f32 %v2052, %v263
  %v2081 = vmul.f32 %v2055, %v263
  %v2082 = vmul.f32 %v2058, %v263
  %v2083 = vmul.f32 %v2061, %v263
  %v2084 = vmul.f32 %v2064, %v263
  %v2085 = vmul.f32 %v2067, %v263
  %v2086 = vmul.f32 %v2070, %v263
  %v2087 = vsub.f32 %v2007, %v2071
  %v2088 = vsub.f32 %v2008, %v2072
  %v2089 = vsub.f32 %v2009, %v2073
  %v2090 = vsub.f32 %v2010, %v2074
  %v2091 = vsub.f32 %v2011, %v2075
  %v2092 = vsub.f32 %v2012, %v2076
  %v2093 = vsub.f32 %v2013, %v2077
  %v2094 = vsub.f32 %v2014, %v2078
  %v2095 = vsub.f32 %v2015, %v2079
  %v2096 = vsub.f32 %v2016, %v2080
  %v2097 = vsub.f32 %v2017, %v2081
  %v2098 = vsub.f32 %v2018, %v2082
  %v2099 = vsub.f32 %v2019, %v2083
  %v2100 = vsub.f32 %v2020, %v2084
  %v2101 = vsub.f32 %v2021, %v2085
  %v2102 = vsub.f32 %v2022, %v2086
  %v2103 = vmul.f32 %v2087, %v2087
  %v2104 = vmul.f32 %v2088, %v2088
  %v2105 = vmul.f32 %v2089, %v2089
  %v2106 = vmul.f32 %v2090, %v2090
  %v2107 = vmul.f32 %v2091, %v2091
  %v2108 = vmul.f32 %v2092, %v2092
  %v2109 = vmul.f32 %v2093, %v2093
  %v2110 = vmul.f32 %v2094, %v2094
  %v2111 = vmul.f32 %v2095, %v2095
  %v2112 = vmul.f32 %v2096, %v2096
  %v2113 = vmul.f32 %v2097, %v2097
  %v2114 = vmul.f32 %v2098, %v2098
  %v2115 = vmul.f32 %v2099, %v2099
  %v2116 = vmul.f32 %v2100, %v2100
  %v2117 = vmul.f32 %v2101, %v2101
  %v2118 = vmul.f32 %v2102, %v2102
  %v2119 = vsel %vm214, %v2103, 0.0
  %2120 = vadd.xlane.f32.xlu0 %v2119
  %v2121 = vpop.xlane.xlu0 %2120
  %v2122 = vsel %vm214, %v2104, 0.0
  %2123 = vadd.xlane.f32.xlu0 %v2122
  %v2124 = vpop.xlane.xlu0 %2123
  %v2125 = vsel %vm214, %v2105, 0.0
  %2126 = vadd.xlane.f32.xlu0 %v2125
  %v2127 = vpop.xlane.xlu0 %2126
  %v2128 = vsel %vm214, %v2106, 0.0
  %2129 = vadd.xlane.f32.xlu0 %v2128
  %v2130 = vpop.xlane.xlu0 %2129
  %v2131 = vsel %vm214, %v2107, 0.0
  %2132 = vadd.xlane.f32.xlu0 %v2131
  %v2133 = vpop.xlane.xlu0 %2132
  %v2134 = vsel %vm214, %v2108, 0.0
  %2135 = vadd.xlane.f32.xlu0 %v2134
  %v2136 = vpop.xlane.xlu0 %2135
  %v2137 = vsel %vm214, %v2109, 0.0
  %2138 = vadd.xlane.f32.xlu0 %v2137
  %v2139 = vpop.xlane.xlu0 %2138
  %v2140 = vsel %vm214, %v2110, 0.0
  %2141 = vadd.xlane.f32.xlu0 %v2140
  %v2142 = vpop.xlane.xlu0 %2141
  %v2143 = vsel %vm214, %v2111, 0.0
  %2144 = vadd.xlane.f32.xlu0 %v2143
  %v2145 = vpop.xlane.xlu0 %2144
  %v2146 = vsel %vm214, %v2112, 0.0
  %2147 = vadd.xlane.f32.xlu0 %v2146
  %v2148 = vpop.xlane.xlu0 %2147
  %v2149 = vsel %vm214, %v2113, 0.0
  %2150 = vadd.xlane.f32.xlu0 %v2149
  %v2151 = vpop.xlane.xlu0 %2150
  %v2152 = vsel %vm214, %v2114, 0.0
  %2153 = vadd.xlane.f32.xlu0 %v2152
  %v2154 = vpop.xlane.xlu0 %2153
  %v2155 = vsel %vm214, %v2115, 0.0
  %2156 = vadd.xlane.f32.xlu0 %v2155
  %v2157 = vpop.xlane.xlu0 %2156
  %v2158 = vsel %vm214, %v2116, 0.0
  %2159 = vadd.xlane.f32.xlu0 %v2158
  %v2160 = vpop.xlane.xlu0 %2159
  %v2161 = vsel %vm214, %v2117, 0.0
  %2162 = vadd.xlane.f32.xlu0 %v2161
  %v2163 = vpop.xlane.xlu0 %2162
  %v2164 = vsel %vm214, %v2118, 0.0
  %2165 = vadd.xlane.f32.xlu0 %v2164
  %v2166 = vpop.xlane.xlu0 %2165
  %v2167 = vmul.f32 %v2121, %v263
  %v2168 = vmul.f32 %v2124, %v263
  %v2169 = vmul.f32 %v2127, %v263
  %v2170 = vmul.f32 %v2130, %v263
  %v2171 = vmul.f32 %v2133, %v263
  %v2172 = vmul.f32 %v2136, %v263
  %v2173 = vmul.f32 %v2139, %v263
  %v2174 = vmul.f32 %v2142, %v263
  %v2175 = vmul.f32 %v2145, %v263
  %v2176 = vmul.f32 %v2148, %v263
  %v2177 = vmul.f32 %v2151, %v263
  %v2178 = vmul.f32 %v2154, %v263
  %v2179 = vmul.f32 %v2157, %v263
  %v2180 = vmul.f32 %v2160, %v263
  %v2181 = vmul.f32 %v2163, %v263
  %v2182 = vmul.f32 %v2166, %v263
  %v2183 = vadd.f32 %v2167, 1e-05
  %v2184 = vadd.f32 %v2168, 1e-05
  %v2185 = vadd.f32 %v2169, 1e-05
  %v2186 = vadd.f32 %v2170, 1e-05
  %v2187 = vadd.f32 %v2171, 1e-05
  %v2188 = vadd.f32 %v2172, 1e-05
  %v2189 = vadd.f32 %v2173, 1e-05
  %v2190 = vadd.f32 %v2174, 1e-05
  %v2191 = vadd.f32 %v2175, 1e-05
  %v2192 = vadd.f32 %v2176, 1e-05
  %v2193 = vadd.f32 %v2177, 1e-05
  %v2194 = vadd.f32 %v2178, 1e-05
  %v2195 = vadd.f32 %v2179, 1e-05
  %v2196 = vadd.f32 %v2180, 1e-05
  %v2197 = vadd.f32 %v2181, 1e-05
  %v2198 = vadd.f32 %v2182, 1e-05
  %v2199 = vrsqrt.pop %v2183
  %v2200 = vrsqrt.pop %v2184
  %v2201 = vrsqrt.pop %v2185
  %v2202 = vrsqrt.pop %v2186
  %v2203 = vrsqrt.pop %v2187
  %v2204 = vrsqrt.pop %v2188
  %v2205 = vrsqrt.pop %v2189
  %v2206 = vrsqrt.pop %v2190
  %v2207 = vrsqrt.pop %v2191
  %v2208 = vrsqrt.pop %v2192
  %v2209 = vrsqrt.pop %v2193
  %v2210 = vrsqrt.pop %v2194
  %v2211 = vrsqrt.pop %v2195
  %v2212 = vrsqrt.pop %v2196
  %v2213 = vrsqrt.pop %v2197
  %v2214 = vrsqrt.pop %v2198
  %v2215 = vmul.f32 %v2087, %v2199
  %v2216 = vmul.f32 %v2088, %v2200
  %v2217 = vmul.f32 %v2089, %v2201
  %v2218 = vmul.f32 %v2090, %v2202
  %v2219 = vmul.f32 %v2091, %v2203
  %v2220 = vmul.f32 %v2092, %v2204
  %v2221 = vmul.f32 %v2093, %v2205
  %v2222 = vmul.f32 %v2094, %v2206
  %v2223 = vmul.f32 %v2095, %v2207
  %v2224 = vmul.f32 %v2096, %v2208
  %v2225 = vmul.f32 %v2097, %v2209
  %v2226 = vmul.f32 %v2098, %v2210
  %v2227 = vmul.f32 %v2099, %v2211
  %v2228 = vmul.f32 %v2100, %v2212
  %v2229 = vmul.f32 %v2101, %v2213
  %v2230 = vmul.f32 %v2102, %v2214
  %v2231 = vlaneseq
  %v2232 = vshrl.u32 %v2231, 7
  %v2233 = vsub.s32 0, %v2232
  %v2234 = vrot.slane %v1478, %v2233
  %v2235 = vmul.f32 %v2215, %v2234
  %v2236 = vmul.f32 %v2216, %v2234
  %v2237 = vmul.f32 %v2217, %v2234
  %v2238 = vmul.f32 %v2218, %v2234
  %v2239 = vmul.f32 %v2219, %v2234
  %v2240 = vmul.f32 %v2220, %v2234
  %v2241 = vmul.f32 %v2221, %v2234
  %v2242 = vmul.f32 %v2222, %v2234
  %v2243 = vmul.f32 %v2223, %v2234
  %v2244 = vmul.f32 %v2224, %v2234
  %v2245 = vmul.f32 %v2225, %v2234
  %v2246 = vmul.f32 %v2226, %v2234
  %v2247 = vmul.f32 %v2227, %v2234
  %v2248 = vmul.f32 %v2228, %v2234
  %v2249 = vmul.f32 %v2229, %v2234
  %v2250 = vmul.f32 %v2230, %v2234
  %v2251 = vlaneseq
  %v2252 = vshrl.u32 %v2251, 7
  %v2253 = vsub.s32 0, %v2252
  %v2254 = vrot.slane %v1479, %v2253
  %v2255 = vadd.f32 %v2235, %v2254
  %v2256 = vadd.f32 %v2236, %v2254
  %v2257 = vadd.f32 %v2237, %v2254
  %v2258 = vadd.f32 %v2238, %v2254
  %v2259 = vadd.f32 %v2239, %v2254
  %v2260 = vadd.f32 %v2240, %v2254
  %v2261 = vadd.f32 %v2241, %v2254
  %v2262 = vadd.f32 %v2242, %v2254
  %v2263 = vadd.f32 %v2243, %v2254
  %v2264 = vadd.f32 %v2244, %v2254
  %v2265 = vadd.f32 %v2245, %v2254
  %v2266 = vadd.f32 %v2246, %v2254
  %v2267 = vadd.f32 %v2247, %v2254
  %v2268 = vadd.f32 %v2248, %v2254
  %v2269 = vadd.f32 %v2249, %v2254
  %v2270 = vadd.f32 %v2250, %v2254
  %s2271 = scalar_lea.vmem %s3, 64
  %v2272 = vld [vmem:[%s2271] sm:$0xf]
  %v2273 = vld [vmem:[%s2271 + $0x4] sm:$0xf]
  %v2274 = vld [vmem:[%s2271 + $0x8] sm:$0xf]
  %v2275 = vld [vmem:[%s2271 + $0xc] sm:$0xf]
  %v2276 = vld [vmem:[%s2271 + $0x10] sm:$0xf]
  %v2277 = vld [vmem:[%s2271 + $0x14] sm:$0xf]
  %v2278 = vld [vmem:[%s2271 + $0x18] sm:$0xf]
  %v2279 = vld [vmem:[%s2271 + $0x1c] sm:$0xf]
  %v2280 = vld [vmem:[%s2271 + $0x20] sm:$0xf]
  %v2281 = vld [vmem:[%s2271 + $0x24] sm:$0xf]
  %v2282 = vld [vmem:[%s2271 + $0x28] sm:$0xf]
  %v2283 = vld [vmem:[%s2271 + $0x2c] sm:$0xf]
  %v2284 = vld [vmem:[%s2271 + $0x30] sm:$0xf]
  %v2285 = vld [vmem:[%s2271 + $0x34] sm:$0xf]
  %v2286 = vld [vmem:[%s2271 + $0x38] sm:$0xf]
  %v2287 = vld [vmem:[%s2271 + $0x3c] sm:$0xf]
  %v2288 = vpack.c.bf16 %v2256, %v2255
  %v2289 = vpack.c.bf16 %v2258, %v2257
  %v2290 = vpack.c.bf16 %v2260, %v2259
  %v2291 = vpack.c.bf16 %v2262, %v2261
  %v2292 = vpack.c.bf16 %v2264, %v2263
  %v2293 = vpack.c.bf16 %v2266, %v2265
  %v2294 = vpack.c.bf16 %v2268, %v2267
  %v2295 = vpack.c.bf16 %v2270, %v2269
  %s2296 = scalar_lea.vmem %s4, 128
  %v2297 = vld [vmem:[%s2296] sm:$0xff]
  %v2298 = vld [vmem:[%s2296 + $0x8] sm:$0xff]
  %v2299 = vld [vmem:[%s2296 + $0x10] sm:$0xff]
  %v2300 = vld [vmem:[%s2296 + $0x18] sm:$0xff]
  %v2301 = vld [vmem:[%s2296 + $0x20] sm:$0xff]
  %v2302 = vld [vmem:[%s2296 + $0x28] sm:$0xff]
  %v2303 = vld [vmem:[%s2296 + $0x30] sm:$0xff]
  %v2304 = vld [vmem:[%s2296 + $0x38] sm:$0xff]
  %v2305 = vld [vmem:[%s2296 + $0x40] sm:$0xff]
  %v2306 = vld [vmem:[%s2296 + $0x48] sm:$0xff]
  %v2307 = vld [vmem:[%s2296 + $0x50] sm:$0xff]
  %v2308 = vld [vmem:[%s2296 + $0x58] sm:$0xff]
  %v2309 = vld [vmem:[%s2296 + $0x60] sm:$0xff]
  %v2310 = vld [vmem:[%s2296 + $0x68] sm:$0xff]
  %v2311 = vld [vmem:[%s2296 + $0x70] sm:$0xff]
  %v2312 = vld [vmem:[%s2296 + $0x78] sm:$0xff]
  %v2329 = vunpack.c.l.b16 %v2272
  %v2330 = vunpack.c.l.b16 %v2273
  %v2331 = vunpack.c.l.b16 %v2274
  %v2332 = vunpack.c.l.b16 %v2275
  %v2333 = vunpack.c.l.b16 %v2276
  %v2334 = vunpack.c.l.b16 %v2277
  %v2335 = vunpack.c.l.b16 %v2278
  %v2336 = vunpack.c.l.b16 %v2279
  %v2337 = vunpack.c.l.b16 %v2280
  %v2338 = vunpack.c.l.b16 %v2281
  %v2339 = vunpack.c.l.b16 %v2282
  %v2340 = vunpack.c.l.b16 %v2283
  %v2341 = vunpack.c.l.b16 %v2284
  %v2342 = vunpack.c.l.b16 %v2285
  %v2343 = vunpack.c.l.b16 %v2286
  %v2344 = vunpack.c.l.b16 %v2287
  %v2345 = vpack.c.b16 %v2330, %v2329
  %v2346 = vpack.c.b16 %v2332, %v2331
  %v2347 = vpack.c.b16 %v2334, %v2333
  %v2348 = vpack.c.b16 %v2336, %v2335
  %v2349 = vpack.c.b16 %v2338, %v2337
  %v2350 = vpack.c.b16 %v2340, %v2339
  %v2351 = vpack.c.b16 %v2342, %v2341
  %v2352 = vpack.c.b16 %v2344, %v2343
  %2361 = vmatprep.subr.bf16.mxu0 0
  %2362 = vmatpush1.bf16.msra.mxu0 %v2288
  %2363 = vmatprep.subr.bf16.mxu0 0
  %2364 = vmatpush1.bf16.msra.mxu0 %v2289
  %2365 = vmatprep.subr.bf16.mxu0 0
  %2366 = vmatpush1.bf16.msra.mxu0 %v2290
  %2367 = vmatprep.subr.bf16.mxu0 0
  %2368 = vmatpush1.bf16.msra.mxu0 %v2291
  %2369 = vmatprep.subr.bf16.mxu0 0
  %2370 = vmatpush1.bf16.msra.mxu0 %v2292
  %2371 = vmatprep.subr.bf16.mxu0 0
  %2372 = vmatpush1.bf16.msra.mxu0 %v2293
  %2373 = vmatprep.subr.bf16.mxu0 0
  %2374 = vmatpush1.bf16.msra.mxu0 %v2294
  %2375 = vmatprep.subr.bf16.mxu0 0
  %2376 = vmatpush1.bf16.msra.mxu0 %v2295
  %2377 = vmatprep.subr.bf16.mxu0 0
  %2378 = vmatpush1.bf16.msra.mxu0 0
  %2379 = vmatprep.subr.bf16.mxu0 0
  %2380 = vmatpush1.bf16.msra.mxu0 0
  %2381 = vmatprep.subr.bf16.mxu0 0
  %2382 = vmatpush1.bf16.msra.mxu0 0
  %2383 = vmatprep.subr.bf16.mxu0 0
  %2384 = vmatpush1.bf16.msra.mxu0 0
  %2385 = vmatprep.subr.bf16.mxu0 0
  %2386 = vmatpush1.bf16.msra.mxu0 0
  %2387 = vmatprep.subr.bf16.mxu0 0
  %2388 = vmatpush1.bf16.msra.mxu0 0
  %2389 = vmatprep.subr.bf16.mxu0 0
  %2390 = vmatpush1.bf16.msra.mxu0 0
  %2391 = vmatprep.subr.bf16.mxu0 0
  %2392 = vmatpush1.bf16.msra.mxu0 0
  %2393 = vmatprep.mubr.bf16.mxu0 0
  %2394 = vmatmul.mubr.bf16.gmra.mrb[0].mxu0 %v2345
  %v2395 = vpop.f32.mrb[0].mxu0
  %v2396 = vadd.f32 %v2297, %v2395
  %v2397 = vpop.f32.mrb[0].mxu0
  %v2398 = vpop.f32.mrb[0].mxu0
  %v2399 = vadd.f32 %v2298, %v2398
  %v2400 = vpop.f32.mrb[0].mxu0
  %2401 = vmatprep.mubr.bf16.mxu0 0
  %2402 = vmatmul.mubr.bf16.gmra.mrb[0].mxu0 %v2346
  %v2403 = vpop.f32.mrb[0].mxu0
  %v2404 = vadd.f32 %v2299, %v2403
  %v2405 = vpop.f32.mrb[0].mxu0
  %v2406 = vpop.f32.mrb[0].mxu0
  %v2407 = vadd.f32 %v2300, %v2406
  %v2408 = vpop.f32.mrb[0].mxu0
  %2409 = vmatprep.mubr.bf16.mxu0 0
  %2410 = vmatmul.mubr.bf16.gmra.mrb[0].mxu0 %v2347
  %v2411 = vpop.f32.mrb[0].mxu0
  %v2412 = vadd.f32 %v2301, %v2411
  %v2413 = vpop.f32.mrb[0].mxu0
  %v2414 = vpop.f32.mrb[0].mxu0
  %v2415 = vadd.f32 %v2302, %v2414
  %v2416 = vpop.f32.mrb[0].mxu0
  %2417 = vmatprep.mubr.bf16.mxu0 0
  %2418 = vmatmul.mubr.bf16.gmra.mrb[0].mxu0 %v2348
  %v2419 = vpop.f32.mrb[0].mxu0
  %v2420 = vadd.f32 %v2303, %v2419
  %v2421 = vpop.f32.mrb[0].mxu0
  %v2422 = vpop.f32.mrb[0].mxu0
  %v2423 = vadd.f32 %v2304, %v2422
  %v2424 = vpop.f32.mrb[0].mxu0
  %2425 = vmatprep.mubr.bf16.mxu0 0
  %2426 = vmatmul.mubr.bf16.gmra.mrb[0].mxu0 %v2349
  %v2427 = vpop.f32.mrb[0].mxu0
  %v2428 = vadd.f32 %v2305, %v2427
  %v2429 = vpop.f32.mrb[0].mxu0
  %v2430 = vpop.f32.mrb[0].mxu0
  %v2431 = vadd.f32 %v2306, %v2430
  %v2432 = vpop.f32.mrb[0].mxu0
  %2433 = vmatprep.mubr.bf16.mxu0 0
  %2434 = vmatmul.mubr.bf16.gmra.mrb[0].mxu0 %v2350
  %v2435 = vpop.f32.mrb[0].mxu0
  %v2436 = vadd.f32 %v2307, %v2435
  %v2437 = vpop.f32.mrb[0].mxu0
  %v2438 = vpop.f32.mrb[0].mxu0
  %v2439 = vadd.f32 %v2308, %v2438
  %v2440 = vpop.f32.mrb[0].mxu0
  %2441 = vmatprep.mubr.bf16.mxu0 0
  %2442 = vmatmul.mubr.bf16.gmra.mrb[0].mxu0 %v2351
  %v2443 = vpop.f32.mrb[0].mxu0
  %v2444 = vadd.f32 %v2309, %v2443
  %v2445 = vpop.f32.mrb[0].mxu0
  %v2446 = vpop.f32.mrb[0].mxu0
  %v2447 = vadd.f32 %v2310, %v2446
  %v2448 = vpop.f32.mrb[0].mxu0
  %2449 = vmatprep.mubr.bf16.mxu0 0
  %2450 = vmatmul.mubr.bf16.gmra.mrb[0].mxu0 %v2352
  %v2451 = vpop.f32.mrb[0].mxu0
  %v2452 = vadd.f32 %v2311, %v2451
  %v2453 = vpop.f32.mrb[0].mxu0
  %v2454 = vpop.f32.mrb[0].mxu0
  %v2455 = vadd.f32 %v2312, %v2454
  %v2456 = vpop.f32.mrb[0].mxu0
  %2457 = vdwg.mxu0
  %2474 = vrot.lane.b32.xlu0 %v2396, 32
  %v2475 = vpop.permute.xlu0 %2474
  %2476 = vrot.lane.b32.xlu0 %v2399, 32
  %v2477 = vpop.permute.xlu0 %2476
  %2478 = vrot.lane.b32.xlu0 %v2404, 32
  %v2479 = vpop.permute.xlu0 %2478
  %2480 = vrot.lane.b32.xlu0 %v2407, 32
  %v2481 = vpop.permute.xlu0 %2480
  %2482 = vrot.lane.b32.xlu0 %v2412, 32
  %v2483 = vpop.permute.xlu0 %2482
  %2484 = vrot.lane.b32.xlu0 %v2415, 32
  %v2485 = vpop.permute.xlu0 %2484
  %2486 = vrot.lane.b32.xlu0 %v2420, 32
  %v2487 = vpop.permute.xlu0 %2486
  %2488 = vrot.lane.b32.xlu0 %v2423, 32
  %v2489 = vpop.permute.xlu0 %2488
  %2490 = vrot.lane.b32.xlu0 %v2428, 32
  %v2491 = vpop.permute.xlu0 %2490
  %2492 = vrot.lane.b32.xlu0 %v2431, 32
  %v2493 = vpop.permute.xlu0 %2492
  %2494 = vrot.lane.b32.xlu0 %v2436, 32
  %v2495 = vpop.permute.xlu0 %2494
  %2496 = vrot.lane.b32.xlu0 %v2439, 32
  %v2497 = vpop.permute.xlu0 %2496
  %2498 = vrot.lane.b32.xlu0 %v2444, 32
  %v2499 = vpop.permute.xlu0 %2498
  %2500 = vrot.lane.b32.xlu0 %v2447, 32
  %v2501 = vpop.permute.xlu0 %2500
  %2502 = vrot.lane.b32.xlu0 %v2452, 32
  %v2503 = vpop.permute.xlu0 %2502
  %2504 = vrot.lane.b32.xlu0 %v2455, 32
  %v2505 = vpop.permute.xlu0 %2504
  %v2522 = vmul.f32 %v2007, %v2475
  %v2523 = vmul.f32 %v2008, %v2477
  %v2524 = vmul.f32 %v2009, %v2479
  %v2525 = vmul.f32 %v2010, %v2481
  %v2526 = vmul.f32 %v2011, %v2483
  %v2527 = vmul.f32 %v2012, %v2485
  %v2528 = vmul.f32 %v2013, %v2487
  %v2529 = vmul.f32 %v2014, %v2489
  %v2530 = vmul.f32 %v2015, %v2491
  %v2531 = vmul.f32 %v2016, %v2493
  %v2532 = vmul.f32 %v2017, %v2495
  %v2533 = vmul.f32 %v2018, %v2497
  %v2534 = vmul.f32 %v2019, %v2499
  %v2535 = vmul.f32 %v2020, %v2501
  %v2536 = vmul.f32 %v2021, %v2503
  %v2537 = vmul.f32 %v2022, %v2505
  %s2538 = scalar_lea.vmem %s5, 16
  %v2539 = vld [vmem:[%s2538] sm:$0xf]
  %v2540 = vld [vmem:[%s2538 + $0x4] sm:$0xf]
  %v2541 = vld [vmem:[%s2538 + $0x8] sm:$0xf]
  %v2542 = vld [vmem:[%s2538 + $0xc] sm:$0xf]
  %v2543 = vpack.c.bf16 %v2523, %v2522
  %v2544 = vpack.c.bf16 %v2525, %v2524
  %v2545 = vpack.c.bf16 %v2527, %v2526
  %v2546 = vpack.c.bf16 %v2529, %v2528
  %v2547 = vpack.c.bf16 %v2531, %v2530
  %v2548 = vpack.c.bf16 %v2533, %v2532
  %v2549 = vpack.c.bf16 %v2535, %v2534
  %v2550 = vpack.c.bf16 %v2537, %v2536
  %2559 = vrot.lane.b32.xlu0 %v2543, 96
  %v2560 = vpop.permute.xlu0 %2559
  %2561 = vrot.lane.b32.xlu0 %v2544, 96
  %v2562 = vpop.permute.xlu0 %2561
  %2563 = vrot.lane.b32.xlu0 %v2545, 96
  %v2564 = vpop.permute.xlu0 %2563
  %2565 = vrot.lane.b32.xlu0 %v2546, 96
  %v2566 = vpop.permute.xlu0 %2565
  %2567 = vrot.lane.b32.xlu0 %v2547, 96
  %v2568 = vpop.permute.xlu0 %2567
  %2569 = vrot.lane.b32.xlu0 %v2548, 96
  %v2570 = vpop.permute.xlu0 %2569
  %2571 = vrot.lane.b32.xlu0 %v2549, 96
  %v2572 = vpop.permute.xlu0 %2571
  %2573 = vrot.lane.b32.xlu0 %v2550, 96
  %v2574 = vpop.permute.xlu0 %2573
  %v2579 = vunpack.c.l.b16 %v2539
  %v2580 = vunpack.c.l.b16 %v2540
  %v2581 = vunpack.c.l.b16 %v2541
  %v2582 = vunpack.c.l.b16 %v2542
  %v2583 = vpack.c.b16 %v2580, %v2579
  %v2584 = vpack.c.b16 %v2582, %v2581
  %v2588 = vsel %vm214, %v2560, 0
  %v2591 = vsel %vm214, %v2562, 0
  %v2594 = vsel %vm214, %v2564, 0
  %v2597 = vsel %vm214, %v2566, 0
  %v2600 = vsel %vm214, %v2568, 0
  %v2603 = vsel %vm214, %v2570, 0
  %v2606 = vsel %vm214, %v2572, 0
  %v2609 = vsel %vm214, %v2574, 0
  %2611 = vmatprep.subr.bf16.mxu0 0
  %2612 = vmatpush1.bf16.msra.mxu0 %v2583
  %2613 = vmatprep.subr.bf16.mxu0 0
  %2614 = vmatpush1.bf16.msra.mxu0 %v2584
  %2615 = vmatprep.subr.bf16.mxu0 0
  %2616 = vmatpush1.bf16.msra.mxu0 0
  %2617 = vmatprep.subr.bf16.mxu0 0
  %2618 = vmatpush1.bf16.msra.mxu0 0
  %2619 = vmatprep.subr.bf16.mxu0 0
  %2620 = vmatpush1.bf16.msra.mxu0 0
  %2621 = vmatprep.subr.bf16.mxu0 0
  %2622 = vmatpush1.bf16.msra.mxu0 0
  %2623 = vmatprep.subr.bf16.mxu0 0
  %2624 = vmatpush1.bf16.msra.mxu0 0
  %2625 = vmatprep.subr.bf16.mxu0 0
  %2626 = vmatpush1.bf16.msra.mxu0 0
  %2627 = vmatprep.subr.bf16.mxu0 0
  %2628 = vmatpush1.bf16.msra.mxu0 0
  %2629 = vmatprep.subr.bf16.mxu0 0
  %2630 = vmatpush1.bf16.msra.mxu0 0
  %2631 = vmatprep.subr.bf16.mxu0 0
  %2632 = vmatpush1.bf16.msra.mxu0 0
  %2633 = vmatprep.subr.bf16.mxu0 0
  %2634 = vmatpush1.bf16.msra.mxu0 0
  %2635 = vmatprep.subr.bf16.mxu0 0
  %2636 = vmatpush1.bf16.msra.mxu0 0
  %2637 = vmatprep.subr.bf16.mxu0 0
  %2638 = vmatpush1.bf16.msra.mxu0 0
  %2639 = vmatprep.subr.bf16.mxu0 0
  %2640 = vmatpush1.bf16.msra.mxu0 0
  %2641 = vmatprep.subr.bf16.mxu0 0
  %2642 = vmatpush1.bf16.msra.mxu0 0
  %2643 = vmatprep.mubr.bf16.mxu0 0
  %2644 = vmatmul.mubr.bf16.gmra.mrb[0].mxu0 %v2588
  %v2645 = vpop.f32.mrb[0].mxu0
  %v2646 = vadd.f32 0.0, %v2645
  %v2647 = vpop.f32.mrb[0].mxu0
  %v2648 = vpop.f32.mrb[0].mxu0
  %v2649 = vadd.f32 0.0, %v2648
  %v2650 = vpop.f32.mrb[0].mxu0
  %2651 = vmatprep.mubr.bf16.mxu0 0
  %2652 = vmatmul.mubr.bf16.gmra.mrb[0].mxu0 %v2591
  %v2653 = vpop.f32.mrb[0].mxu0
  %v2654 = vadd.f32 0.0, %v2653
  %v2655 = vpop.f32.mrb[0].mxu0
  %v2656 = vpop.f32.mrb[0].mxu0
  %v2657 = vadd.f32 0.0, %v2656
  %v2658 = vpop.f32.mrb[0].mxu0
  %2659 = vmatprep.mubr.bf16.mxu0 0
  %2660 = vmatmul.mubr.bf16.gmra.mrb[0].mxu0 %v2594
  %v2661 = vpop.f32.mrb[0].mxu0
  %v2662 = vadd.f32 0.0, %v2661
  %v2663 = vpop.f32.mrb[0].mxu0
  %v2664 = vpop.f32.mrb[0].mxu0
  %v2665 = vadd.f32 0.0, %v2664
  %v2666 = vpop.f32.mrb[0].mxu0
  %2667 = vmatprep.mubr.bf16.mxu0 0
  %2668 = vmatmul.mubr.bf16.gmra.mrb[0].mxu0 %v2597
  %v2669 = vpop.f32.mrb[0].mxu0
  %v2670 = vadd.f32 0.0, %v2669
  %v2671 = vpop.f32.mrb[0].mxu0
  %v2672 = vpop.f32.mrb[0].mxu0
  %v2673 = vadd.f32 0.0, %v2672
  %v2674 = vpop.f32.mrb[0].mxu0
  %2675 = vmatprep.mubr.bf16.mxu0 0
  %2676 = vmatmul.mubr.bf16.gmra.mrb[0].mxu0 %v2600
  %v2677 = vpop.f32.mrb[0].mxu0
  %v2678 = vadd.f32 0.0, %v2677
  %v2679 = vpop.f32.mrb[0].mxu0
  %v2680 = vpop.f32.mrb[0].mxu0
  %v2681 = vadd.f32 0.0, %v2680
  %v2682 = vpop.f32.mrb[0].mxu0
  %2683 = vmatprep.mubr.bf16.mxu0 0
  %2684 = vmatmul.mubr.bf16.gmra.mrb[0].mxu0 %v2603
  %v2685 = vpop.f32.mrb[0].mxu0
  %v2686 = vadd.f32 0.0, %v2685
  %v2687 = vpop.f32.mrb[0].mxu0
  %v2688 = vpop.f32.mrb[0].mxu0
  %v2689 = vadd.f32 0.0, %v2688
  %v2690 = vpop.f32.mrb[0].mxu0
  %2691 = vmatprep.mubr.bf16.mxu0 0
  %2692 = vmatmul.mubr.bf16.gmra.mrb[0].mxu0 %v2606
  %v2693 = vpop.f32.mrb[0].mxu0
  %v2694 = vadd.f32 0.0, %v2693
  %v2695 = vpop.f32.mrb[0].mxu0
  %v2696 = vpop.f32.mrb[0].mxu0
  %v2697 = vadd.f32 0.0, %v2696
  %v2698 = vpop.f32.mrb[0].mxu0
  %2699 = vmatprep.mubr.bf16.mxu0 0
  %2700 = vmatmul.mubr.bf16.gmra.mrb[0].mxu0 %v2609
  %v2701 = vpop.f32.mrb[0].mxu0
  %v2702 = vadd.f32 0.0, %v2701
  %v2703 = vpop.f32.mrb[0].mxu0
  %v2704 = vpop.f32.mrb[0].mxu0
  %v2705 = vadd.f32 0.0, %v2704
  %v2706 = vpop.f32.mrb[0].mxu0
  %2707 = vdwg.mxu0
  %v2708 = vadd.f32 %v1459, %v2646
  %v2709 = vadd.f32 %v1460, %v2649
  %v2710 = vadd.f32 %v1461, %v2654
  %v2711 = vadd.f32 %v1462, %v2657
  %v2712 = vadd.f32 %v1463, %v2662
  %v2713 = vadd.f32 %v1464, %v2665
  %v2714 = vadd.f32 %v1465, %v2670
  %v2715 = vadd.f32 %v1466, %v2673
  %v2716 = vadd.f32 %v1467, %v2678
  %v2717 = vadd.f32 %v1468, %v2681
  %v2718 = vadd.f32 %v1469, %v2686
  %v2719 = vadd.f32 %v1470, %v2689
  %v2720 = vadd.f32 %v1471, %v2694
  %v2721 = vadd.f32 %v1472, %v2697
  %v2722 = vadd.f32 %v1473, %v2702
  %v2723 = vadd.f32 %v1474, %v2705
  %v2724 = vlaneseq
  %v2725 = vshrl.u32 %v2724, 7
  %v2726 = vsub.s32 0, %v2725
  %v2727 = vrot.slane %v1480, %v2726
  %v2728 = vadd.f32 %v2708, %v2727
  %v2729 = vadd.f32 %v2709, %v2727
  %v2730 = vadd.f32 %v2710, %v2727
  %v2731 = vadd.f32 %v2711, %v2727
  %v2732 = vadd.f32 %v2712, %v2727
  %v2733 = vadd.f32 %v2713, %v2727
  %v2734 = vadd.f32 %v2714, %v2727
  %v2735 = vadd.f32 %v2715, %v2727
  %v2736 = vadd.f32 %v2716, %v2727
  %v2737 = vadd.f32 %v2717, %v2727
  %v2738 = vadd.f32 %v2718, %v2727
  %v2739 = vadd.f32 %v2719, %v2727
  %v2740 = vadd.f32 %v2720, %v2727
  %v2741 = vadd.f32 %v2721, %v2727
  %v2742 = vadd.f32 %v2722, %v2727
  %v2743 = vadd.f32 %v2723, %v2727
  %v2744 = vld [vmem:[%s8 + $0x1] sm:$0x1]
  %v2745 = vld [vmem:[%s8 + $0x2] sm:$0x1]
  %v2746 = vsel %vm214, %v2728, 0.0
  %2747 = vadd.xlane.f32.xlu0 %v2746
  %v2748 = vpop.xlane.xlu0 %2747
  %v2749 = vsel %vm214, %v2729, 0.0
  %2750 = vadd.xlane.f32.xlu0 %v2749
  %v2751 = vpop.xlane.xlu0 %2750
  %v2752 = vsel %vm214, %v2730, 0.0
  %2753 = vadd.xlane.f32.xlu0 %v2752
  %v2754 = vpop.xlane.xlu0 %2753
  %v2755 = vsel %vm214, %v2731, 0.0
  %2756 = vadd.xlane.f32.xlu0 %v2755
  %v2757 = vpop.xlane.xlu0 %2756
  %v2758 = vsel %vm214, %v2732, 0.0
  %2759 = vadd.xlane.f32.xlu0 %v2758
  %v2760 = vpop.xlane.xlu0 %2759
  %v2761 = vsel %vm214, %v2733, 0.0
  %2762 = vadd.xlane.f32.xlu0 %v2761
  %v2763 = vpop.xlane.xlu0 %2762
  %v2764 = vsel %vm214, %v2734, 0.0
  %2765 = vadd.xlane.f32.xlu0 %v2764
  %v2766 = vpop.xlane.xlu0 %2765
  %v2767 = vsel %vm214, %v2735, 0.0
  %2768 = vadd.xlane.f32.xlu0 %v2767
  %v2769 = vpop.xlane.xlu0 %2768
  %v2770 = vsel %vm214, %v2736, 0.0
  %2771 = vadd.xlane.f32.xlu0 %v2770
  %v2772 = vpop.xlane.xlu0 %2771
  %v2773 = vsel %vm214, %v2737, 0.0
  %2774 = vadd.xlane.f32.xlu0 %v2773
  %v2775 = vpop.xlane.xlu0 %2774
  %v2776 = vsel %vm214, %v2738, 0.0
  %2777 = vadd.xlane.f32.xlu0 %v2776
  %v2778 = vpop.xlane.xlu0 %2777
  %v2779 = vsel %vm214, %v2739, 0.0
  %2780 = vadd.xlane.f32.xlu0 %v2779
  %v2781 = vpop.xlane.xlu0 %2780
  %v2782 = vsel %vm214, %v2740, 0.0
  %2783 = vadd.xlane.f32.xlu0 %v2782
  %v2784 = vpop.xlane.xlu0 %2783
  %v2785 = vsel %vm214, %v2741, 0.0
  %2786 = vadd.xlane.f32.xlu0 %v2785
  %v2787 = vpop.xlane.xlu0 %2786
  %v2788 = vsel %vm214, %v2742, 0.0
  %2789 = vadd.xlane.f32.xlu0 %v2788
  %v2790 = vpop.xlane.xlu0 %2789
  %v2791 = vsel %vm214, %v2743, 0.0
  %2792 = vadd.xlane.f32.xlu0 %v2791
  %v2793 = vpop.xlane.xlu0 %2792
  %v2794 = vmul.f32 %v2748, %v263
  %v2795 = vmul.f32 %v2751, %v263
  %v2796 = vmul.f32 %v2754, %v263
  %v2797 = vmul.f32 %v2757, %v263
  %v2798 = vmul.f32 %v2760, %v263
  %v2799 = vmul.f32 %v2763, %v263
  %v2800 = vmul.f32 %v2766, %v263
  %v2801 = vmul.f32 %v2769, %v263
  %v2802 = vmul.f32 %v2772, %v263
  %v2803 = vmul.f32 %v2775, %v263
  %v2804 = vmul.f32 %v2778, %v263
  %v2805 = vmul.f32 %v2781, %v263
  %v2806 = vmul.f32 %v2784, %v263
  %v2807 = vmul.f32 %v2787, %v263
  %v2808 = vmul.f32 %v2790, %v263
  %v2809 = vmul.f32 %v2793, %v263
  %v2810 = vsub.f32 %v2728, %v2794
  %v2811 = vsub.f32 %v2729, %v2795
  %v2812 = vsub.f32 %v2730, %v2796
  %v2813 = vsub.f32 %v2731, %v2797
  %v2814 = vsub.f32 %v2732, %v2798
  %v2815 = vsub.f32 %v2733, %v2799
  %v2816 = vsub.f32 %v2734, %v2800
  %v2817 = vsub.f32 %v2735, %v2801
  %v2818 = vsub.f32 %v2736, %v2802
  %v2819 = vsub.f32 %v2737, %v2803
  %v2820 = vsub.f32 %v2738, %v2804
  %v2821 = vsub.f32 %v2739, %v2805
  %v2822 = vsub.f32 %v2740, %v2806
  %v2823 = vsub.f32 %v2741, %v2807
  %v2824 = vsub.f32 %v2742, %v2808
  %v2825 = vsub.f32 %v2743, %v2809
  %v2826 = vmul.f32 %v2810, %v2810
  %v2827 = vmul.f32 %v2811, %v2811
  %v2828 = vmul.f32 %v2812, %v2812
  %v2829 = vmul.f32 %v2813, %v2813
  %v2830 = vmul.f32 %v2814, %v2814
  %v2831 = vmul.f32 %v2815, %v2815
  %v2832 = vmul.f32 %v2816, %v2816
  %v2833 = vmul.f32 %v2817, %v2817
  %v2834 = vmul.f32 %v2818, %v2818
  %v2835 = vmul.f32 %v2819, %v2819
  %v2836 = vmul.f32 %v2820, %v2820
  %v2837 = vmul.f32 %v2821, %v2821
  %v2838 = vmul.f32 %v2822, %v2822
  %v2839 = vmul.f32 %v2823, %v2823
  %v2840 = vmul.f32 %v2824, %v2824
  %v2841 = vmul.f32 %v2825, %v2825
  %v2842 = vsel %vm214, %v2826, 0.0
  %2843 = vadd.xlane.f32.xlu0 %v2842
  %v2844 = vpop.xlane.xlu0 %2843
  %v2845 = vsel %vm214, %v2827, 0.0
  %2846 = vadd.xlane.f32.xlu0 %v2845
  %v2847 = vpop.xlane.xlu0 %2846
  %v2848 = vsel %vm214, %v2828, 0.0
  %2849 = vadd.xlane.f32.xlu0 %v2848
  %v2850 = vpop.xlane.xlu0 %2849
  %v2851 = vsel %vm214, %v2829, 0.0
  %2852 = vadd.xlane.f32.xlu0 %v2851
  %v2853 = vpop.xlane.xlu0 %2852
  %v2854 = vsel %vm214, %v2830, 0.0
  %2855 = vadd.xlane.f32.xlu0 %v2854
  %v2856 = vpop.xlane.xlu0 %2855
  %v2857 = vsel %vm214, %v2831, 0.0
  %2858 = vadd.xlane.f32.xlu0 %v2857
  %v2859 = vpop.xlane.xlu0 %2858
  %v2860 = vsel %vm214, %v2832, 0.0
  %2861 = vadd.xlane.f32.xlu0 %v2860
  %v2862 = vpop.xlane.xlu0 %2861
  %v2863 = vsel %vm214, %v2833, 0.0
  %2864 = vadd.xlane.f32.xlu0 %v2863
  %v2865 = vpop.xlane.xlu0 %2864
  %v2866 = vsel %vm214, %v2834, 0.0
  %2867 = vadd.xlane.f32.xlu0 %v2866
  %v2868 = vpop.xlane.xlu0 %2867
  %v2869 = vsel %vm214, %v2835, 0.0
  %2870 = vadd.xlane.f32.xlu0 %v2869
  %v2871 = vpop.xlane.xlu0 %2870
  %v2872 = vsel %vm214, %v2836, 0.0
  %2873 = vadd.xlane.f32.xlu0 %v2872
  %v2874 = vpop.xlane.xlu0 %2873
  %v2875 = vsel %vm214, %v2837, 0.0
  %2876 = vadd.xlane.f32.xlu0 %v2875
  %v2877 = vpop.xlane.xlu0 %2876
  %v2878 = vsel %vm214, %v2838, 0.0
  %2879 = vadd.xlane.f32.xlu0 %v2878
  %v2880 = vpop.xlane.xlu0 %2879
  %v2881 = vsel %vm214, %v2839, 0.0
  %2882 = vadd.xlane.f32.xlu0 %v2881
  %v2883 = vpop.xlane.xlu0 %2882
  %v2884 = vsel %vm214, %v2840, 0.0
  %2885 = vadd.xlane.f32.xlu0 %v2884
  %v2886 = vpop.xlane.xlu0 %2885
  %v2887 = vsel %vm214, %v2841, 0.0
  %2888 = vadd.xlane.f32.xlu0 %v2887
  %v2889 = vpop.xlane.xlu0 %2888
  %v2890 = vmul.f32 %v2844, %v263
  %v2891 = vmul.f32 %v2847, %v263
  %v2892 = vmul.f32 %v2850, %v263
  %v2893 = vmul.f32 %v2853, %v263
  %v2894 = vmul.f32 %v2856, %v263
  %v2895 = vmul.f32 %v2859, %v263
  %v2896 = vmul.f32 %v2862, %v263
  %v2897 = vmul.f32 %v2865, %v263
  %v2898 = vmul.f32 %v2868, %v263
  %v2899 = vmul.f32 %v2871, %v263
  %v2900 = vmul.f32 %v2874, %v263
  %v2901 = vmul.f32 %v2877, %v263
  %v2902 = vmul.f32 %v2880, %v263
  %v2903 = vmul.f32 %v2883, %v263
  %v2904 = vmul.f32 %v2886, %v263
  %v2905 = vmul.f32 %v2889, %v263
  %v2906 = vadd.f32 %v2890, 1e-05
  %v2907 = vadd.f32 %v2891, 1e-05
  %v2908 = vadd.f32 %v2892, 1e-05
  %v2909 = vadd.f32 %v2893, 1e-05
  %v2910 = vadd.f32 %v2894, 1e-05
  %v2911 = vadd.f32 %v2895, 1e-05
  %v2912 = vadd.f32 %v2896, 1e-05
  %v2913 = vadd.f32 %v2897, 1e-05
  %v2914 = vadd.f32 %v2898, 1e-05
  %v2915 = vadd.f32 %v2899, 1e-05
  %v2916 = vadd.f32 %v2900, 1e-05
  %v2917 = vadd.f32 %v2901, 1e-05
  %v2918 = vadd.f32 %v2902, 1e-05
  %v2919 = vadd.f32 %v2903, 1e-05
  %v2920 = vadd.f32 %v2904, 1e-05
  %v2921 = vadd.f32 %v2905, 1e-05
  %v2922 = vrsqrt.pop %v2906
  %v2923 = vrsqrt.pop %v2907
  %v2924 = vrsqrt.pop %v2908
  %v2925 = vrsqrt.pop %v2909
  %v2926 = vrsqrt.pop %v2910
  %v2927 = vrsqrt.pop %v2911
  %v2928 = vrsqrt.pop %v2912
  %v2929 = vrsqrt.pop %v2913
  %v2930 = vrsqrt.pop %v2914
  %v2931 = vrsqrt.pop %v2915
  %v2932 = vrsqrt.pop %v2916
  %v2933 = vrsqrt.pop %v2917
  %v2934 = vrsqrt.pop %v2918
  %v2935 = vrsqrt.pop %v2919
  %v2936 = vrsqrt.pop %v2920
  %v2937 = vrsqrt.pop %v2921
  %v2938 = vmul.f32 %v2810, %v2922
  %v2939 = vmul.f32 %v2811, %v2923
  %v2940 = vmul.f32 %v2812, %v2924
  %v2941 = vmul.f32 %v2813, %v2925
  %v2942 = vmul.f32 %v2814, %v2926
  %v2943 = vmul.f32 %v2815, %v2927
  %v2944 = vmul.f32 %v2816, %v2928
  %v2945 = vmul.f32 %v2817, %v2929
  %v2946 = vmul.f32 %v2818, %v2930
  %v2947 = vmul.f32 %v2819, %v2931
  %v2948 = vmul.f32 %v2820, %v2932
  %v2949 = vmul.f32 %v2821, %v2933
  %v2950 = vmul.f32 %v2822, %v2934
  %v2951 = vmul.f32 %v2823, %v2935
  %v2952 = vmul.f32 %v2824, %v2936
  %v2953 = vmul.f32 %v2825, %v2937
  %v2954 = vlaneseq
  %v2955 = vshrl.u32 %v2954, 7
  %v2956 = vsub.s32 0, %v2955
  %v2957 = vrot.slane %v2744, %v2956
  %v2958 = vmul.f32 %v2938, %v2957
  %v2959 = vmul.f32 %v2939, %v2957
  %v2960 = vmul.f32 %v2940, %v2957
  %v2961 = vmul.f32 %v2941, %v2957
  %v2962 = vmul.f32 %v2942, %v2957
  %v2963 = vmul.f32 %v2943, %v2957
  %v2964 = vmul.f32 %v2944, %v2957
  %v2965 = vmul.f32 %v2945, %v2957
  %v2966 = vmul.f32 %v2946, %v2957
  %v2967 = vmul.f32 %v2947, %v2957
  %v2968 = vmul.f32 %v2948, %v2957
  %v2969 = vmul.f32 %v2949, %v2957
  %v2970 = vmul.f32 %v2950, %v2957
  %v2971 = vmul.f32 %v2951, %v2957
  %v2972 = vmul.f32 %v2952, %v2957
  %v2973 = vmul.f32 %v2953, %v2957
  %v2974 = vlaneseq
  %v2975 = vshrl.u32 %v2974, 7
  %v2976 = vsub.s32 0, %v2975
  %v2977 = vrot.slane %v2745, %v2976
  %v2978 = vadd.f32 %v2958, %v2977
  %v2979 = vadd.f32 %v2959, %v2977
  %v2980 = vadd.f32 %v2960, %v2977
  %v2981 = vadd.f32 %v2961, %v2977
  %v2982 = vadd.f32 %v2962, %v2977
  %v2983 = vadd.f32 %v2963, %v2977
  %v2984 = vadd.f32 %v2964, %v2977
  %v2985 = vadd.f32 %v2965, %v2977
  %v2986 = vadd.f32 %v2966, %v2977
  %v2987 = vadd.f32 %v2967, %v2977
  %v2988 = vadd.f32 %v2968, %v2977
  %v2989 = vadd.f32 %v2969, %v2977
  %v2990 = vadd.f32 %v2970, %v2977
  %v2991 = vadd.f32 %v2971, %v2977
  %v2992 = vadd.f32 %v2972, %v2977
  %v2993 = vadd.f32 %v2973, %v2977
  %v2994 = vld [vmem:[%s7] sm:$0xff]
  %2995 = vmatprep.subr.mxu0 0.0
  %2996 = vmatpush1.msra.mxu0 %v2978
  %2997 = vmatprep.subr.mxu0 0.0
  %2998 = vmatpush1.msra.mxu0 %v2979
  %2999 = vmatprep.subr.mxu0 0.0
  %3000 = vmatpush1.msra.mxu0 %v2980
  %3001 = vmatprep.subr.mxu0 0.0
  %3002 = vmatpush1.msra.mxu0 %v2981
  %3003 = vmatprep.subr.mxu0 0.0
  %3004 = vmatpush1.msra.mxu0 %v2982
  %3005 = vmatprep.subr.mxu0 0.0
  %3006 = vmatpush1.msra.mxu0 %v2983
  %3007 = vmatprep.subr.mxu0 0.0
  %3008 = vmatpush1.msra.mxu0 %v2984
  %3009 = vmatprep.subr.mxu0 0.0
  %3010 = vmatpush1.msra.mxu0 %v2985
  %3011 = vmatprep.subr.mxu0 0.0
  %3012 = vmatpush1.msra.mxu0 %v2986
  %3013 = vmatprep.subr.mxu0 0.0
  %3014 = vmatpush1.msra.mxu0 %v2987
  %3015 = vmatprep.subr.mxu0 0.0
  %3016 = vmatpush1.msra.mxu0 %v2988
  %3017 = vmatprep.subr.mxu0 0.0
  %3018 = vmatpush1.msra.mxu0 %v2989
  %3019 = vmatprep.subr.mxu0 0.0
  %3020 = vmatpush1.msra.mxu0 %v2990
  %3021 = vmatprep.subr.mxu0 0.0
  %3022 = vmatpush1.msra.mxu0 %v2991
  %3023 = vmatprep.subr.mxu0 0.0
  %3024 = vmatpush1.msra.mxu0 %v2992
  %3025 = vmatprep.subr.mxu0 0.0
  %3026 = vmatpush1.msra.mxu0 %v2993
  %3027 = vmatprep.subr.mxu0 0.0
  %3028 = vmatpush1.msra.mxu0 0.0
  %3029 = vmatprep.subr.mxu0 0.0
  %3030 = vmatpush1.msra.mxu0 0.0
  %3031 = vmatprep.subr.mxu0 0.0
  %3032 = vmatpush1.msra.mxu0 0.0
  %3033 = vmatprep.subr.mxu0 0.0
  %3034 = vmatpush1.msra.mxu0 0.0
  %3035 = vmatprep.subr.mxu0 0.0
  %3036 = vmatpush1.msra.mxu0 0.0
  %3037 = vmatprep.subr.mxu0 0.0
  %3038 = vmatpush1.msra.mxu0 0.0
  %3039 = vmatprep.subr.mxu0 0.0
  %3040 = vmatpush1.msra.mxu0 0.0
  %3041 = vmatprep.subr.mxu0 0.0
  %3042 = vmatpush1.msra.mxu0 0.0
  %3043 = vmatprep.subr.mxu0 0.0
  %3044 = vmatpush1.msra.mxu0 0.0
  %3045 = vmatprep.subr.mxu0 0.0
  %3046 = vmatpush1.msra.mxu0 0.0
  %3047 = vmatprep.subr.mxu0 0.0
  %3048 = vmatpush1.msra.mxu0 0.0
  %3049 = vmatprep.subr.mxu0 0.0
  %3050 = vmatpush1.msra.mxu0 0.0
  %3051 = vmatprep.subr.mxu0 0.0
  %3052 = vmatpush1.msra.mxu0 0.0
  %3053 = vmatprep.subr.mxu0 0.0
  %3054 = vmatpush1.msra.mxu0 0.0
  %3055 = vmatprep.subr.mxu0 0.0
  %3056 = vmatpush1.msra.mxu0 0.0
  %3057 = vmatprep.subr.mxu0 0.0
  %3058 = vmatpush1.msra.mxu0 0.0
  %3059 = vmatprep.mubr.f32.mxu0 0.0
  %3060 = vmatmul.mubr.f32.gmra.mrb[0].mxu0 %v2994
  %v3061 = vpop.f32.mrb[0].mxu0
  %v3062 = vadd.f32 0.0, %v3061
  %v3063 = vpop.f32.mrb[0].mxu0
  %3064 = vdwg.mxu0
  %v3065 = vld [vmem:[%s6] sm:$0xf]
  %v3066 = vld [vmem:[%s6 + $0x4] sm:$0xf]
  %v3067 = vld [vmem:[%s6 + $0x8] sm:$0xf]
  %v3068 = vld [vmem:[%s6 + $0xc] sm:$0xf]
  %v3069 = vpack.c.bf16 %v3062, %v3062
  %v3070 = vld [vmem:[%s8 + $0x3] sm:$0x1]
  %v3071 = vlaneseq
  %v3072 = vshrl.u32 %v3071, 7
  %v3073 = vsub.s32 0, %v3072
  %v3074 = vrot.slane %v3070, %v3073
  %v3079 = vunpack.c.l.b16 %v3065
  %v3080 = vunpack.c.l.b16 %v3066
  %v3081 = vunpack.c.l.b16 %v3067
  %v3082 = vunpack.c.l.b16 %v3068
  %v3083 = vpack.c.b16 %v3080, %v3079
  %v3084 = vpack.c.b16 %v3082, %v3081
  %v3088 = vsel %vm214, %v3069, 0
  %3090 = vmatprep.subr.bf16.mxu0 0
  %3091 = vmatpush1.bf16.msra.mxu0 %v3083
  %3092 = vmatprep.subr.bf16.mxu0 0
  %3093 = vmatpush1.bf16.msra.mxu0 %v3084
  %3094 = vmatprep.subr.bf16.mxu0 0
  %3095 = vmatpush1.bf16.msra.mxu0 0
  %3096 = vmatprep.subr.bf16.mxu0 0
  %3097 = vmatpush1.bf16.msra.mxu0 0
  %3098 = vmatprep.subr.bf16.mxu0 0
  %3099 = vmatpush1.bf16.msra.mxu0 0
  %3100 = vmatprep.subr.bf16.mxu0 0
  %3101 = vmatpush1.bf16.msra.mxu0 0
  %3102 = vmatprep.subr.bf16.mxu0 0
  %3103 = vmatpush1.bf16.msra.mxu0 0
  %3104 = vmatprep.subr.bf16.mxu0 0
  %3105 = vmatpush1.bf16.msra.mxu0 0
  %3106 = vmatprep.subr.bf16.mxu0 0
  %3107 = vmatpush1.bf16.msra.mxu0 0
  %3108 = vmatprep.subr.bf16.mxu0 0
  %3109 = vmatpush1.bf16.msra.mxu0 0
  %3110 = vmatprep.subr.bf16.mxu0 0
  %3111 = vmatpush1.bf16.msra.mxu0 0
  %3112 = vmatprep.subr.bf16.mxu0 0
  %3113 = vmatpush1.bf16.msra.mxu0 0
  %3114 = vmatprep.subr.bf16.mxu0 0
  %3115 = vmatpush1.bf16.msra.mxu0 0
  %3116 = vmatprep.subr.bf16.mxu0 0
  %3117 = vmatpush1.bf16.msra.mxu0 0
  %3118 = vmatprep.subr.bf16.mxu0 0
  %3119 = vmatpush1.bf16.msra.mxu0 0
  %3120 = vmatprep.subr.bf16.mxu0 0
  %3121 = vmatpush1.bf16.msra.mxu0 0
  %3122 = vmatprep.mubr.bf16.mxu0 0
  %3123 = vmatmul.mubr.bf16.gmra.mrb[0].mxu0 %v3088
  %v3124 = vpop.f32.mrb[0].mxu0
  %v3125 = vadd.f32 %v3074, %v3124
  %v3126 = vpop.f32.mrb[0].mxu0
  %v3127 = vpop.f32.mrb[0].mxu0
  %v3128 = vpop.f32.mrb[0].mxu0
  %3129 = vdwg.mxu0
  %3130 = vst [vmem:[%s9] sm:$0xff] %v3125
  // Predicated region
  $region38: #{_lambda_.1} parent=0 // pred_check
    _
  $region39: #{_lambda_.1} parent=0 // pred_check_branch
    %3132 = sbr.rel (0) target = $region41
  $region40: #{_lambda_.1} parent=0 // pred_region
    _
  $region41: #{_lambda_.1} parent=0 // pred_fallthru
    _
  // Predicated region
  $region42: #{_lambda_.1} parent=0 // pred_check
    _
  $region43: #{_lambda_.1} parent=0 // pred_check_branch
    %3134 = sbr.rel (0) target = $region45
  $region44: #{_lambda_.1} parent=0 // pred_region
    _
  $region45: #{_lambda_.1} parent=0 // pred_fallthru
    _

</llo_original>
